<compile_context>
chip_gen: v6e
topology: v6e:2x2x1
jax: 0.10.0
libtpu: 0.0.40
codegen_flags: <defaults>
</compile_context>

<pallas_src>
import functools
import math

import jax
import jax.numpy as jnp
from jax import lax
from jax.experimental import pallas as pl
from jax.experimental.pallas import tpu as pltpu

# ---- AELIF hyperparameters (defaults of AELIFPopulation.__init__) ----------
PARAMS = dict(
    tau_s=10.0,
    tau_w=4.0,
    threshold=-52.0,
    theta_rh=-60.0,
    delta_T=1.0,
    rest_pot=-62.0,
    reset_pot=-62.0,
    refrac_length=5.0,
    dt=0.1,
    a0=1.0,
    b=2.0,
    R=0.001,
)
TRACE_DECAY = math.exp(-PARAMS["dt"] / PARAMS["tau_s"])  # exp(-dt/tau_s)

# Population "shape": lane-dense neuron layout.  Each neuron tile is
# (ROWS, LANE_TILE) = (8, 256) = 2 vregs of independent work per time step;
# N_TILES tiles form a "parallel" grid axis (v7x: one per TensorCore).
ROWS = 8
LANE_TILE = 256
N_TILES = 2
N_LANES = N_TILES * LANE_TILE          # total neurons = ROWS * N_LANES = 4096

T_STEPS = 32                           # total simulation steps in the demo
T_BLOCK = 16                           # time steps fused per grid step


def _aelif_kernel(x_ref, v_in, w_in, rc_in, s_in, tr_in,
                  v_out, w_out, rc_out, s_out, tr_out, spk_out,
                  spk_scratch,
                  *, threshold, theta_rh, rest_pot, reset_pot,
                  refrac_length, dt, a0, R, delta_T,
                  dt_over_tau_s, dt_over_tau_w, inv_delta_T, b_dt,
                  trace_decay):
    t_blk = pl.program_id(1)   # time-chunk index (innermost, "arbitrary")

    # Load initial state into the resident output tiles.  Their block index is
    # constant over the time axis, so they live in VMEM across all time chunks
    # of this neuron tile and are written back to HBM exactly once.
    @pl.when(t_blk == 0)
    def _():
        v_out[...] = v_in[...]
        w_out[...] = w_in[...]
        rc_out[...] = rc_in[...]
        s_out[...] = s_in[...]
        tr_out[...] = tr_in[...]

    t_steps = x_ref.shape[0]   # = T_BLOCK (static)

    def step(i, carry):
        v, w, rc, s_prev, tr = carry
        x = x_ref[i]                              # (ROWS, LANE_TILE) current

        # ---- compute_potential (gated by refractory counter, per neuron) ----
        active = rc <= 0.0
        v_upd = v + (x + rest_pot - v
                     + delta_T * jnp.exp((v - theta_rh) * inv_delta_T)
                     - R * w) * dt_over_tau_s
        # (a0*(v_new - rest) - w + b*tau_w*s_prev) * dt/tau_w ; b*tau_w*dt/tau_w = b*dt
        w_upd = w + (a0 * (v_upd - rest_pot) - w) * dt_over_tau_w + b_dt * s_prev
        v1 = jnp.where(active, v_upd, v)
        w1 = jnp.where(active, w_upd, w)

        # ---- compute_spike ----
        s_new = v1 >= threshold

        # ---- refractory_and_reset ----
        rc_new = jnp.where(s_new, refrac_length, rc - dt)
        v2 = jnp.where(s_new, reset_pot, v1)

        # lower_bound is None by default -> no clamp.

        # ---- spike traces (additive_spike_trace=False, sum_input=False) ----
        tr_new = jnp.where(s_new, 1.0, tr * trace_decay)

        s_f = s_new.astype(jnp.float32)
        spk_scratch[i] = s_f                      # f32 dynamic store (cheap, VMEM)
        return (v2, w1, rc_new, s_f, tr_new)

    init = (v_out[...], w_out[...], rc_out[...], s_out[...], tr_out[...])
    v, w, rc, s, tr = lax.fori_loop(0, t_steps, step, init, unroll=True)

    v_out[...] = v
    w_out[...] = w
    rc_out[...] = rc
    s_out[...] = s
    tr_out[...] = tr
    # Single lane-dense static store of the whole chunk, narrowed to bf16
    # (halves the dominant T*N HBM write stream; cast only at the store).
    spk_out[...] = spk_scratch[...].astype(spk_out.dtype)


@functools.partial(jax.jit, donate_argnums=(1, 2, 3, 4, 5))
def aelif_run(x_seq, v, w, refrac_count, s, traces):
    """Run T fused AELIF steps.

    x_seq: (T, ROWS, N_LANES) float32 input current per step.
    v, w, refrac_count, s, traces: (ROWS, N_LANES) float32 state (donated).
    Returns (v, w, refrac_count, s, traces, spike_history[T, ROWS, N_LANES] bf16).
    """
    T = x_seq.shape[0]
    rows, n_lanes = v.shape
    assert T % T_BLOCK == 0, "T must be a multiple of T_BLOCK"
    assert n_lanes % LANE_TILE == 0, "neuron lanes must tile by LANE_TILE"
    n_tiles = n_lanes // LANE_TILE
    t_tiles = T // T_BLOCK
    p = PARAMS

    kernel = functools.partial(
        _aelif_kernel,
        threshold=p["threshold"], theta_rh=p["theta_rh"],
        rest_pot=p["rest_pot"], reset_pot=p["reset_pot"],
        refrac_length=p["refrac_length"], dt=p["dt"],
        a0=p["a0"], R=p["R"], delta_T=p["delta_T"],
        dt_over_tau_s=p["dt"] / p["tau_s"],
        dt_over_tau_w=p["dt"] / p["tau_w"],
        inv_delta_T=1.0 / p["delta_T"],
        b_dt=p["b"] * p["dt"],
        trace_decay=TRACE_DECAY,
    )

    # Resident per-neuron-tile state (constant block index along the time axis).
    state_spec = pl.BlockSpec((rows, LANE_TILE), lambda n, t: (0, n))
    # Streamed per-time-chunk blocks (x input and spike-history output).
    chunk_spec = pl.BlockSpec((T_BLOCK, rows, LANE_TILE), lambda n, t: (t, 0, n))

    out_shape = (
        jax.ShapeDtypeStruct((rows, n_lanes), jnp.float32),        # v
        jax.ShapeDtypeStruct((rows, n_lanes), jnp.float32),        # w
        jax.ShapeDtypeStruct((rows, n_lanes), jnp.float32),        # refrac_count
        jax.ShapeDtypeStruct((rows, n_lanes), jnp.float32),        # s (0/1 float)
        jax.ShapeDtypeStruct((rows, n_lanes), jnp.float32),        # traces
        jax.ShapeDtypeStruct((T, rows, n_lanes), jnp.bfloat16),    # spike history
    )

    return pl.pallas_call(
        kernel,
        grid=(n_tiles, t_tiles),
        in_specs=[chunk_spec, state_spec, state_spec,
                  state_spec, state_spec, state_spec],
        out_specs=(state_spec, state_spec, state_spec,
                   state_spec, state_spec, chunk_spec),
        out_shape=out_shape,
        scratch_shapes=[pltpu.VMEM((T_BLOCK, rows, LANE_TILE), jnp.float32)],
        # In-place state update: v/w/refrac_count/s/traces inputs alias the
        # corresponding outputs (input operand index -> output index).
        input_output_aliases={1: 0, 2: 1, 3: 2, 4: 3, 5: 4},
        compiler_params=pltpu.CompilerParams(
            # neuron tiles independent (v7x: one per TC); time is sequential.
            dimension_semantics=("parallel", "arbitrary"),
        ),
    )(x_seq, v, w, refrac_count, s, traces)


def aelif_run_ref(x_seq, v, w, refrac_count, s, traces):
    """Pure-JAX reference (same folded constants as the kernel)."""
    p = PARAMS
    dt_over_tau_s = p["dt"] / p["tau_s"]
    dt_over_tau_w = p["dt"] / p["tau_w"]
    inv_delta_T = 1.0 / p["delta_T"]
    b_dt = p["b"] * p["dt"]

    def step(carry, x):
        v, w, rc, s_prev, tr = carry
        active = rc <= 0.0
        v_upd = v + (x + p["rest_pot"] - v
                     + p["delta_T"] * jnp.exp((v - p["theta_rh"]) * inv_delta_T)
                     - p["R"] * w) * dt_over_tau_s
        w_upd = w + (p["a0"] * (v_upd - p["rest_pot"]) - w) * dt_over_tau_w \
                + b_dt * s_prev
        v1 = jnp.where(active, v_upd, v)
        w1 = jnp.where(active, w_upd, w)
        s_new = v1 >= p["threshold"]
        rc_new = jnp.where(s_new, p["refrac_length"], rc - p["dt"])
        v2 = jnp.where(s_new, p["reset_pot"], v1)
        tr_new = jnp.where(s_new, 1.0, tr * TRACE_DECAY)
        s_f = s_new.astype(jnp.float32)
        return (v2, w1, rc_new, s_f, tr_new), s_f

    (v, w, rc, s, tr), spikes = jax.lax.scan(
        step, (v, w, refrac_count, s, traces), x_seq)
    return v, w, rc, s, tr, spikes


if __name__ == "__main__":
    key = jax.random.PRNGKey(0)
    shape = (ROWS, N_LANES)

    # Time-varying input current, strong enough to drive spikes within T steps.
    x_seq = 120.0 * jax.random.uniform(key, (T_STEPS,) + shape, dtype=jnp.float32)

    # Initial state as produced by set_batch_size + reset_state_variables.
    v = jnp.full(shape, PARAMS["reset_pot"], dtype=jnp.float32)
    w = jnp.zeros(shape, dtype=jnp.float32)
    refrac_count = jnp.zeros(shape, dtype=jnp.float32)
    s = jnp.zeros(shape, dtype=jnp.float32)       # bool spikes stored as 0/1 float
    traces = jnp.zeros(shape, dtype=jnp.float32)

    # Compute the pure-JAX reference FIRST: the kernel call donates/aliases the
    # state arrays, so they are clobbered in place by aelif_run.
    refs = jax.block_until_ready(aelif_run_ref(x_seq, v, w, refrac_count, s, traces))

    outs = jax.block_until_ready(aelif_run(x_seq, v, w, refrac_count, s, traces))

    # Spiking dynamics are threshold-sensitive; the hardware EUP exp and XLA's
    # exp may differ in the last ulps, which over many steps could flip an
    # extremely rare borderline spike. Require (essentially) all elements match.
    names = ("v", "w", "refrac_count", "s", "traces", "spike_history")
    spikes_f32 = outs[5].astype(jnp.float32)
    cmp_outs = list(outs[:5]) + [spikes_f32]
    for name, o, r in zip(names, cmp_outs, refs):
        close = jnp.isclose(o, r, rtol=2e-3, atol=2e-3)
        frac = float(jnp.mean(close.astype(jnp.float32)))
        assert frac >= 0.999, f"{name}: only {frac:.5f} of elements match reference"

    assert float(jnp.sum(spikes_f32)) > 0.0, \
        "expected at least one spike in the simulation"

    print("KERNEL_OK")
</pallas_src>

<mosaic_0001>
module attributes {stable_mosaic.version = 11 : i64} {
  func.func @_aelif_kernel(%arg0: i32, %arg1: i32, %arg2: memref<16x8x256xf32, #tpu.memory_space<vmem>>, %arg3: memref<8x256xf32, #tpu.memory_space<vmem>>, %arg4: memref<8x256xf32, #tpu.memory_space<vmem>>, %arg5: memref<8x256xf32, #tpu.memory_space<vmem>>, %arg6: memref<8x256xf32, #tpu.memory_space<vmem>>, %arg7: memref<8x256xf32, #tpu.memory_space<vmem>>, %arg8: memref<8x256xf32, #tpu.memory_space<vmem>>, %arg9: memref<8x256xf32, #tpu.memory_space<vmem>>, %arg10: memref<8x256xf32, #tpu.memory_space<vmem>>, %arg11: memref<8x256xf32, #tpu.memory_space<vmem>>, %arg12: memref<8x256xf32, #tpu.memory_space<vmem>>, %arg13: memref<16x8x256xbf16, #tpu.memory_space<vmem>>, %arg14: memref<16x8x256xf32, #tpu.memory_space<vmem>>) attributes {dimension_semantics = [#tpu.dimension_semantics<parallel>, #tpu.dimension_semantics<arbitrary>], iteration_bounds = array<i64: 2, 2>, scalar_prefetch = 0 : i64, scratch_operands = 1 : i64, tpu.core_type = #tpu.core_type<tc>, window_params = [{transform_indices = @transform_0, window_bounds = array<i64: 16, 8, 256>}, {transform_indices = @transform_1, window_bounds = array<i64: 8, 256>}, {transform_indices = @transform_2, window_bounds = array<i64: 8, 256>}, {transform_indices = @transform_3, window_bounds = array<i64: 8, 256>}, {transform_indices = @transform_4, window_bounds = array<i64: 8, 256>}, {transform_indices = @transform_5, window_bounds = array<i64: 8, 256>}, {transform_indices = @transform_6, window_bounds = array<i64: 8, 256>}, {transform_indices = @transform_7, window_bounds = array<i64: 8, 256>}, {transform_indices = @transform_8, window_bounds = array<i64: 8, 256>}, {transform_indices = @transform_9, window_bounds = array<i64: 8, 256>}, {transform_indices = @transform_10, window_bounds = array<i64: 8, 256>}, {transform_indices = @transform_11, window_bounds = array<i64: 16, 8, 256>}]} {
    %c0_i32 = arith.constant 0 : i32
    %0 = arith.cmpi eq, %arg1, %c0_i32 : i32
    %1 = arith.extui %0 : i1 to i32
    %c0_i32_0 = arith.constant 0 : i32
    %2 = arith.cmpi ne, %1, %c0_i32_0 : i32
    scf.if %2 {
      %c0_362 = arith.constant 0 : index
      %c0_363 = arith.constant 0 : index
      %864 = vector.load %arg3[%c0_362, %c0_363] : memref<8x256xf32, #tpu.memory_space<vmem>>, vector<8x256xf32>
      %c0_364 = arith.constant 0 : index
      %c0_365 = arith.constant 0 : index
      %865 = vector.load %arg8[%c0_364, %c0_365] : memref<8x256xf32, #tpu.memory_space<vmem>>, vector<8x256xf32>
      tpu.vector_store %arg8[%c0_364, %c0_365], %864 {strides = array<i32>} : memref<8x256xf32, #tpu.memory_space<vmem>>, vector<8x256xf32>,
      %c0_366 = arith.constant 0 : index
      %c0_367 = arith.constant 0 : index
      %866 = vector.load %arg4[%c0_366, %c0_367] : memref<8x256xf32, #tpu.memory_space<vmem>>, vector<8x256xf32>
      %c0_368 = arith.constant 0 : index
      %c0_369 = arith.constant 0 : index
      %867 = vector.load %arg9[%c0_368, %c0_369] : memref<8x256xf32, #tpu.memory_space<vmem>>, vector<8x256xf32>
      tpu.vector_store %arg9[%c0_368, %c0_369], %866 {strides = array<i32>} : memref<8x256xf32, #tpu.memory_space<vmem>>, vector<8x256xf32>,
      %c0_370 = arith.constant 0 : index
      %c0_371 = arith.constant 0 : index
      %868 = vector.load %arg5[%c0_370, %c0_371] : memref<8x256xf32, #tpu.memory_space<vmem>>, vector<8x256xf32>
      %c0_372 = arith.constant 0 : index
      %c0_373 = arith.constant 0 : index
      %869 = vector.load %arg10[%c0_372, %c0_373] : memref<8x256xf32, #tpu.memory_space<vmem>>, vector<8x256xf32>
      tpu.vector_store %arg10[%c0_372, %c0_373], %868 {strides = array<i32>} : memref<8x256xf32, #tpu.memory_space<vmem>>, vector<8x256xf32>,
      %c0_374 = arith.constant 0 : index
      %c0_375 = arith.constant 0 : index
      %870 = vector.load %arg6[%c0_374, %c0_375] : memref<8x256xf32, #tpu.memory_space<vmem>>, vector<8x256xf32>
      %c0_376 = arith.constant 0 : index
      %c0_377 = arith.constant 0 : index
      %871 = vector.load %arg11[%c0_376, %c0_377] : memref<8x256xf32, #tpu.memory_space<vmem>>, vector<8x256xf32>
      tpu.vector_store %arg11[%c0_376, %c0_377], %870 {strides = array<i32>} : memref<8x256xf32, #tpu.memory_space<vmem>>, vector<8x256xf32>,
      %c0_378 = arith.constant 0 : index
      %c0_379 = arith.constant 0 : index
      %872 = vector.load %arg7[%c0_378, %c0_379] : memref<8x256xf32, #tpu.memory_space<vmem>>, vector<8x256xf32>
      %c0_380 = arith.constant 0 : index
      %c0_381 = arith.constant 0 : index
      %873 = vector.load %arg12[%c0_380, %c0_381] : memref<8x256xf32, #tpu.memory_space<vmem>>, vector<8x256xf32>
      tpu.vector_store %arg12[%c0_380, %c0_381], %872 {strides = array<i32>} : memref<8x256xf32, #tpu.memory_space<vmem>>, vector<8x256xf32>,
    } else {
    }
    %c0 = arith.constant 0 : index
    %c0_1 = arith.constant 0 : index
    %3 = vector.load %arg8[%c0, %c0_1] : memref<8x256xf32, #tpu.memory_space<vmem>>, vector<8x256xf32>
    %c0_2 = arith.constant 0 : index
    %c0_3 = arith.constant 0 : index
    %4 = vector.load %arg9[%c0_2, %c0_3] : memref<8x256xf32, #tpu.memory_space<vmem>>, vector<8x256xf32>
    %c0_4 = arith.constant 0 : index
    %c0_5 = arith.constant 0 : index
    %5 = vector.load %arg10[%c0_4, %c0_5] : memref<8x256xf32, #tpu.memory_space<vmem>>, vector<8x256xf32>
    %c0_6 = arith.constant 0 : index
    %c0_7 = arith.constant 0 : index
    %6 = vector.load %arg11[%c0_6, %c0_7] : memref<8x256xf32, #tpu.memory_space<vmem>>, vector<8x256xf32>
    %c0_8 = arith.constant 0 : index
    %c0_9 = arith.constant 0 : index
    %7 = vector.load %arg12[%c0_8, %c0_9] : memref<8x256xf32, #tpu.memory_space<vmem>>, vector<8x256xf32>
    %c0_i32_10 = arith.constant 0 : i32
    %8 = arith.index_cast %c0_i32_10 : i32 to index
    %c0_11 = arith.constant 0 : index
    %c0_12 = arith.constant 0 : index
    %9 = vector.load %arg2[%8, %c0_11, %c0_12] : memref<16x8x256xf32, #tpu.memory_space<vmem>>, vector<1x8x256xf32>
    %10 = vector.shape_cast %9 : vector<1x8x256xf32> to vector<8x256xf32>
    %cst = arith.constant 0.000000e+00 : f32
    %11 = vector.broadcast %cst : f32 to vector<8x256xf32>
    %12 = arith.cmpf ole, %5, %11 : vector<8x256xf32>
    %cst_13 = arith.constant -6.200000e+01 : f32
    %13 = vector.broadcast %cst_13 : f32 to vector<8x256xf32>
    %14 = arith.addf %10, %13 : vector<8x256xf32>
    %15 = arith.subf %14, %3 : vector<8x256xf32>
    %cst_14 = arith.constant -6.000000e+01 : f32
    %16 = vector.broadcast %cst_14 : f32 to vector<8x256xf32>
    %17 = arith.subf %3, %16 : vector<8x256xf32>
    %cst_15 = arith.constant 1.000000e+00 : f32
    %18 = vector.broadcast %cst_15 : f32 to vector<8x256xf32>
    %19 = arith.mulf %17, %18 : vector<8x256xf32>
    %20 = math.exp %19 : vector<8x256xf32>
    %cst_16 = arith.constant 1.000000e+00 : f32
    %21 = vector.broadcast %cst_16 : f32 to vector<8x256xf32>
    %22 = arith.mulf %21, %20 : vector<8x256xf32>
    %23 = arith.addf %15, %22 : vector<8x256xf32>
    %cst_17 = arith.constant 1.000000e-03 : f32
    %24 = vector.broadcast %cst_17 : f32 to vector<8x256xf32>
    %25 = arith.mulf %24, %4 : vector<8x256xf32>
    %26 = arith.subf %23, %25 : vector<8x256xf32>
    %cst_18 = arith.constant 0.00999999977 : f32
    %27 = vector.broadcast %cst_18 : f32 to vector<8x256xf32>
    %28 = arith.mulf %26, %27 : vector<8x256xf32>
    %29 = arith.addf %3, %28 : vector<8x256xf32>
    %cst_19 = arith.constant -6.200000e+01 : f32
    %30 = vector.broadcast %cst_19 : f32 to vector<8x256xf32>
    %31 = arith.subf %29, %30 : vector<8x256xf32>
    %cst_20 = arith.constant 1.000000e+00 : f32
    %32 = vector.broadcast %cst_20 : f32 to vector<8x256xf32>
    %33 = arith.mulf %32, %31 : vector<8x256xf32>
    %34 = arith.subf %33, %4 : vector<8x256xf32>
    %cst_21 = arith.constant 2.500000e-02 : f32
    %35 = vector.broadcast %cst_21 : f32 to vector<8x256xf32>
    %36 = arith.mulf %34, %35 : vector<8x256xf32>
    %37 = arith.addf %4, %36 : vector<8x256xf32>
    %cst_22 = arith.constant 2.000000e-01 : f32
    %38 = vector.broadcast %cst_22 : f32 to vector<8x256xf32>
    %39 = arith.mulf %38, %6 : vector<8x256xf32>
    %40 = arith.addf %37, %39 : vector<8x256xf32>
    %41 = arith.select %12, %29, %3 : vector<8x256xi1>, vector<8x256xf32>
    %42 = arith.select %12, %40, %4 : vector<8x256xi1>, vector<8x256xf32>
    %cst_23 = arith.constant -5.200000e+01 : f32
    %43 = vector.broadcast %cst_23 : f32 to vector<8x256xf32>
    %44 = arith.cmpf oge, %41, %43 : vector<8x256xf32>
    %cst_24 = arith.constant 1.000000e-01 : f32
    %45 = vector.broadcast %cst_24 : f32 to vector<8x256xf32>
    %46 = arith.subf %5, %45 : vector<8x256xf32>
    %cst_25 = arith.constant 5.000000e+00 : f32
    %47 = vector.broadcast %cst_25 : f32 to vector<8x256xf32>
    %48 = arith.select %44, %47, %46 : vector<8x256xi1>, vector<8x256xf32>
    %cst_26 = arith.constant -6.200000e+01 : f32
    %49 = vector.broadcast %cst_26 : f32 to vector<8x256xf32>
    %50 = arith.select %44, %49, %41 : vector<8x256xi1>, vector<8x256xf32>
    %cst_27 = arith.constant 0.990049839 : f32
    %51 = vector.broadcast %cst_27 : f32 to vector<8x256xf32>
    %52 = arith.mulf %7, %51 : vector<8x256xf32>
    %cst_28 = arith.constant 1.000000e+00 : f32
    %53 = vector.broadcast %cst_28 : f32 to vector<8x256xf32>
    %54 = arith.select %44, %53, %52 : vector<8x256xi1>, vector<8x256xf32>
    %55 = arith.extui %44 : vector<8x256xi1> to vector<8x256xi32>
    %56 = arith.sitofp %55 : vector<8x256xi32> to vector<8x256xf32>
    %57 = arith.index_cast %c0_i32_10 : i32 to index
    %c0_29 = arith.constant 0 : index
    %c0_30 = arith.constant 0 : index
    %58 = vector.load %arg14[%57, %c0_29, %c0_30] : memref<16x8x256xf32, #tpu.memory_space<vmem>>, vector<1x8x256xf32>
    %59 = vector.shape_cast %58 : vector<1x8x256xf32> to vector<8x256xf32>
    %60 = vector.shape_cast %56 : vector<8x256xf32> to vector<1x8x256xf32>
    tpu.vector_store %arg14[%57, %c0_29, %c0_30], %60 {strides = array<i32>} : memref<16x8x256xf32, #tpu.memory_space<vmem>>, vector<1x8x256xf32>,
    %c1_i32 = arith.constant 1 : i32
    %61 = arith.index_cast %c1_i32 : i32 to index
    %c0_31 = arith.constant 0 : index
    %c0_32 = arith.constant 0 : index
    %62 = vector.load %arg2[%61, %c0_31, %c0_32] : memref<16x8x256xf32, #tpu.memory_space<vmem>>, vector<1x8x256xf32>
    %63 = vector.shape_cast %62 : vector<1x8x256xf32> to vector<8x256xf32>
    %cst_33 = arith.constant 0.000000e+00 : f32
    %64 = vector.broadcast %cst_33 : f32 to vector<8x256xf32>
    %65 = arith.cmpf ole, %48, %64 : vector<8x256xf32>
    %cst_34 = arith.constant -6.200000e+01 : f32
    %66 = vector.broadcast %cst_34 : f32 to vector<8x256xf32>
    %67 = arith.addf %63, %66 : vector<8x256xf32>
    %68 = arith.subf %67, %50 : vector<8x256xf32>
    %cst_35 = arith.constant -6.000000e+01 : f32
    %69 = vector.broadcast %cst_35 : f32 to vector<8x256xf32>
    %70 = arith.subf %50, %69 : vector<8x256xf32>
    %cst_36 = arith.constant 1.000000e+00 : f32
    %71 = vector.broadcast %cst_36 : f32 to vector<8x256xf32>
    %72 = arith.mulf %70, %71 : vector<8x256xf32>
    %73 = math.exp %72 : vector<8x256xf32>
    %cst_37 = arith.constant 1.000000e+00 : f32
    %74 = vector.broadcast %cst_37 : f32 to vector<8x256xf32>
    %75 = arith.mulf %74, %73 : vector<8x256xf32>
    %76 = arith.addf %68, %75 : vector<8x256xf32>
    %cst_38 = arith.constant 1.000000e-03 : f32
    %77 = vector.broadcast %cst_38 : f32 to vector<8x256xf32>
    %78 = arith.mulf %77, %42 : vector<8x256xf32>
    %79 = arith.subf %76, %78 : vector<8x256xf32>
    %cst_39 = arith.constant 0.00999999977 : f32
    %80 = vector.broadcast %cst_39 : f32 to vector<8x256xf32>
    %81 = arith.mulf %79, %80 : vector<8x256xf32>
    %82 = arith.addf %50, %81 : vector<8x256xf32>
    %cst_40 = arith.constant -6.200000e+01 : f32
    %83 = vector.broadcast %cst_40 : f32 to vector<8x256xf32>
    %84 = arith.subf %82, %83 : vector<8x256xf32>
    %cst_41 = arith.constant 1.000000e+00 : f32
    %85 = vector.broadcast %cst_41 : f32 to vector<8x256xf32>
    %86 = arith.mulf %85, %84 : vector<8x256xf32>
    %87 = arith.subf %86, %42 : vector<8x256xf32>
    %cst_42 = arith.constant 2.500000e-02 : f32
    %88 = vector.broadcast %cst_42 : f32 to vector<8x256xf32>
    %89 = arith.mulf %87, %88 : vector<8x256xf32>
    %90 = arith.addf %42, %89 : vector<8x256xf32>
    %cst_43 = arith.constant 2.000000e-01 : f32
    %91 = vector.broadcast %cst_43 : f32 to vector<8x256xf32>
    %92 = arith.mulf %91, %56 : vector<8x256xf32>
    %93 = arith.addf %90, %92 : vector<8x256xf32>
    %94 = arith.select %65, %82, %50 : vector<8x256xi1>, vector<8x256xf32>
    %95 = arith.select %65, %93, %42 : vector<8x256xi1>, vector<8x256xf32>
    %cst_44 = arith.constant -5.200000e+01 : f32
    %96 = vector.broadcast %cst_44 : f32 to vector<8x256xf32>
    %97 = arith.cmpf oge, %94, %96 : vector<8x256xf32>
    %cst_45 = arith.constant 1.000000e-01 : f32
    %98 = vector.broadcast %cst_45 : f32 to vector<8x256xf32>
    %99 = arith.subf %48, %98 : vector<8x256xf32>
    %cst_46 = arith.constant 5.000000e+00 : f32
    %100 = vector.broadcast %cst_46 : f32 to vector<8x256xf32>
    %101 = arith.select %97, %100, %99 : vector<8x256xi1>, vector<8x256xf32>
    %cst_47 = arith.constant -6.200000e+01 : f32
    %102 = vector.broadcast %cst_47 : f32 to vector<8x256xf32>
    %103 = arith.select %97, %102, %94 : vector<8x256xi1>, vector<8x256xf32>
    %cst_48 = arith.constant 0.990049839 : f32
    %104 = vector.broadcast %cst_48 : f32 to vector<8x256xf32>
    %105 = arith.mulf %54, %104 : vector<8x256xf32>
    %cst_49 = arith.constant 1.000000e+00 : f32
    %106 = vector.broadcast %cst_49 : f32 to vector<8x256xf32>
    %107 = arith.select %97, %106, %105 : vector<8x256xi1>, vector<8x256xf32>
    %108 = arith.extui %97 : vector<8x256xi1> to vector<8x256xi32>
    %109 = arith.sitofp %108 : vector<8x256xi32> to vector<8x256xf32>
    %110 = arith.index_cast %c1_i32 : i32 to index
    %c0_50 = arith.constant 0 : index
    %c0_51 = arith.constant 0 : index
    %111 = vector.load %arg14[%110, %c0_50, %c0_51] : memref<16x8x256xf32, #tpu.memory_space<vmem>>, vector<1x8x256xf32>
    %112 = vector.shape_cast %111 : vector<1x8x256xf32> to vector<8x256xf32>
    %113 = vector.shape_cast %109 : vector<8x256xf32> to vector<1x8x256xf32>
    tpu.vector_store %arg14[%110, %c0_50, %c0_51], %113 {strides = array<i32>} : memref<16x8x256xf32, #tpu.memory_space<vmem>>, vector<1x8x256xf32>,
    %c2_i32 = arith.constant 2 : i32
    %114 = arith.index_cast %c2_i32 : i32 to index
    %c0_52 = arith.constant 0 : index
    %c0_53 = arith.constant 0 : index
    %115 = vector.load %arg2[%114, %c0_52, %c0_53] : memref<16x8x256xf32, #tpu.memory_space<vmem>>, vector<1x8x256xf32>
    %116 = vector.shape_cast %115 : vector<1x8x256xf32> to vector<8x256xf32>
    %cst_54 = arith.constant 0.000000e+00 : f32
    %117 = vector.broadcast %cst_54 : f32 to vector<8x256xf32>
    %118 = arith.cmpf ole, %101, %117 : vector<8x256xf32>
    %cst_55 = arith.constant -6.200000e+01 : f32
    %119 = vector.broadcast %cst_55 : f32 to vector<8x256xf32>
    %120 = arith.addf %116, %119 : vector<8x256xf32>
    %121 = arith.subf %120, %103 : vector<8x256xf32>
    %cst_56 = arith.constant -6.000000e+01 : f32
    %122 = vector.broadcast %cst_56 : f32 to vector<8x256xf32>
    %123 = arith.subf %103, %122 : vector<8x256xf32>
    %cst_57 = arith.constant 1.000000e+00 : f32
    %124 = vector.broadcast %cst_57 : f32 to vector<8x256xf32>
    %125 = arith.mulf %123, %124 : vector<8x256xf32>
    %126 = math.exp %125 : vector<8x256xf32>
    %cst_58 = arith.constant 1.000000e+00 : f32
    %127 = vector.broadcast %cst_58 : f32 to vector<8x256xf32>
    %128 = arith.mulf %127, %126 : vector<8x256xf32>
    %129 = arith.addf %121, %128 : vector<8x256xf32>
    %cst_59 = arith.constant 1.000000e-03 : f32
    %130 = vector.broadcast %cst_59 : f32 to vector<8x256xf32>
    %131 = arith.mulf %130, %95 : vector<8x256xf32>
    %132 = arith.subf %129, %131 : vector<8x256xf32>
    %cst_60 = arith.constant 0.00999999977 : f32
    %133 = vector.broadcast %cst_60 : f32 to vector<8x256xf32>
    %134 = arith.mulf %132, %133 : vector<8x256xf32>
    %135 = arith.addf %103, %134 : vector<8x256xf32>
    %cst_61 = arith.constant -6.200000e+01 : f32
    %136 = vector.broadcast %cst_61 : f32 to vector<8x256xf32>
    %137 = arith.subf %135, %136 : vector<8x256xf32>
    %cst_62 = arith.constant 1.000000e+00 : f32
    %138 = vector.broadcast %cst_62 : f32 to vector<8x256xf32>
    %139 = arith.mulf %138, %137 : vector<8x256xf32>
    %140 = arith.subf %139, %95 : vector<8x256xf32>
    %cst_63 = arith.constant 2.500000e-02 : f32
    %141 = vector.broadcast %cst_63 : f32 to vector<8x256xf32>
    %142 = arith.mulf %140, %141 : vector<8x256xf32>
    %143 = arith.addf %95, %142 : vector<8x256xf32>
    %cst_64 = arith.constant 2.000000e-01 : f32
    %144 = vector.broadcast %cst_64 : f32 to vector<8x256xf32>
    %145 = arith.mulf %144, %109 : vector<8x256xf32>
    %146 = arith.addf %143, %145 : vector<8x256xf32>
    %147 = arith.select %118, %135, %103 : vector<8x256xi1>, vector<8x256xf32>
    %148 = arith.select %118, %146, %95 : vector<8x256xi1>, vector<8x256xf32>
    %cst_65 = arith.constant -5.200000e+01 : f32
    %149 = vector.broadcast %cst_65 : f32 to vector<8x256xf32>
    %150 = arith.cmpf oge, %147, %149 : vector<8x256xf32>
    %cst_66 = arith.constant 1.000000e-01 : f32
    %151 = vector.broadcast %cst_66 : f32 to vector<8x256xf32>
    %152 = arith.subf %101, %151 : vector<8x256xf32>
    %cst_67 = arith.constant 5.000000e+00 : f32
    %153 = vector.broadcast %cst_67 : f32 to vector<8x256xf32>
    %154 = arith.select %150, %153, %152 : vector<8x256xi1>, vector<8x256xf32>
    %cst_68 = arith.constant -6.200000e+01 : f32
    %155 = vector.broadcast %cst_68 : f32 to vector<8x256xf32>
    %156 = arith.select %150, %155, %147 : vector<8x256xi1>, vector<8x256xf32>
    %cst_69 = arith.constant 0.990049839 : f32
    %157 = vector.broadcast %cst_69 : f32 to vector<8x256xf32>
    %158 = arith.mulf %107, %157 : vector<8x256xf32>
    %cst_70 = arith.constant 1.000000e+00 : f32
    %159 = vector.broadcast %cst_70 : f32 to vector<8x256xf32>
    %160 = arith.select %150, %159, %158 : vector<8x256xi1>, vector<8x256xf32>
    %161 = arith.extui %150 : vector<8x256xi1> to vector<8x256xi32>
    %162 = arith.sitofp %161 : vector<8x256xi32> to vector<8x256xf32>
    %163 = arith.index_cast %c2_i32 : i32 to index
    %c0_71 = arith.constant 0 : index
    %c0_72 = arith.constant 0 : index
    %164 = vector.load %arg14[%163, %c0_71, %c0_72] : memref<16x8x256xf32, #tpu.memory_space<vmem>>, vector<1x8x256xf32>
    %165 = vector.shape_cast %164 : vector<1x8x256xf32> to vector<8x256xf32>
    %166 = vector.shape_cast %162 : vector<8x256xf32> to vector<1x8x256xf32>
    tpu.vector_store %arg14[%163, %c0_71, %c0_72], %166 {strides = array<i32>} : memref<16x8x256xf32, #tpu.memory_space<vmem>>, vector<1x8x256xf32>,
    %c3_i32 = arith.constant 3 : i32
    %167 = arith.index_cast %c3_i32 : i32 to index
    %c0_73 = arith.constant 0 : index
    %c0_74 = arith.constant 0 : index
    %168 = vector.load %arg2[%167, %c0_73, %c0_74] : memref<16x8x256xf32, #tpu.memory_space<vmem>>, vector<1x8x256xf32>
    %169 = vector.shape_cast %168 : vector<1x8x256xf32> to vector<8x256xf32>
    %cst_75 = arith.constant 0.000000e+00 : f32
    %170 = vector.broadcast %cst_75 : f32 to vector<8x256xf32>
    %171 = arith.cmpf ole, %154, %170 : vector<8x256xf32>
    %cst_76 = arith.constant -6.200000e+01 : f32
    %172 = vector.broadcast %cst_76 : f32 to vector<8x256xf32>
    %173 = arith.addf %169, %172 : vector<8x256xf32>
    %174 = arith.subf %173, %156 : vector<8x256xf32>
    %cst_77 = arith.constant -6.000000e+01 : f32
    %175 = vector.broadcast %cst_77 : f32 to vector<8x256xf32>
    %176 = arith.subf %156, %175 : vector<8x256xf32>
    %cst_78 = arith.constant 1.000000e+00 : f32
    %177 = vector.broadcast %cst_78 : f32 to vector<8x256xf32>
    %178 = arith.mulf %176, %177 : vector<8x256xf32>
    %179 = math.exp %178 : vector<8x256xf32>
    %cst_79 = arith.constant 1.000000e+00 : f32
    %180 = vector.broadcast %cst_79 : f32 to vector<8x256xf32>
    %181 = arith.mulf %180, %179 : vector<8x256xf32>
    %182 = arith.addf %174, %181 : vector<8x256xf32>
    %cst_80 = arith.constant 1.000000e-03 : f32
    %183 = vector.broadcast %cst_80 : f32 to vector<8x256xf32>
    %184 = arith.mulf %183, %148 : vector<8x256xf32>
    %185 = arith.subf %182, %184 : vector<8x256xf32>
    %cst_81 = arith.constant 0.00999999977 : f32
    %186 = vector.broadcast %cst_81 : f32 to vector<8x256xf32>
    %187 = arith.mulf %185, %186 : vector<8x256xf32>
    %188 = arith.addf %156, %187 : vector<8x256xf32>
    %cst_82 = arith.constant -6.200000e+01 : f32
    %189 = vector.broadcast %cst_82 : f32 to vector<8x256xf32>
    %190 = arith.subf %188, %189 : vector<8x256xf32>
    %cst_83 = arith.constant 1.000000e+00 : f32
    %191 = vector.broadcast %cst_83 : f32 to vector<8x256xf32>
    %192 = arith.mulf %191, %190 : vector<8x256xf32>
    %193 = arith.subf %192, %148 : vector<8x256xf32>
    %cst_84 = arith.constant 2.500000e-02 : f32
    %194 = vector.broadcast %cst_84 : f32 to vector<8x256xf32>
    %195 = arith.mulf %193, %194 : vector<8x256xf32>
    %196 = arith.addf %148, %195 : vector<8x256xf32>
    %cst_85 = arith.constant 2.000000e-01 : f32
    %197 = vector.broadcast %cst_85 : f32 to vector<8x256xf32>
    %198 = arith.mulf %197, %162 : vector<8x256xf32>
    %199 = arith.addf %196, %198 : vector<8x256xf32>
    %200 = arith.select %171, %188, %156 : vector<8x256xi1>, vector<8x256xf32>
    %201 = arith.select %171, %199, %148 : vector<8x256xi1>, vector<8x256xf32>
    %cst_86 = arith.constant -5.200000e+01 : f32
    %202 = vector.broadcast %cst_86 : f32 to vector<8x256xf32>
    %203 = arith.cmpf oge, %200, %202 : vector<8x256xf32>
    %cst_87 = arith.constant 1.000000e-01 : f32
    %204 = vector.broadcast %cst_87 : f32 to vector<8x256xf32>
    %205 = arith.subf %154, %204 : vector<8x256xf32>
    %cst_88 = arith.constant 5.000000e+00 : f32
    %206 = vector.broadcast %cst_88 : f32 to vector<8x256xf32>
    %207 = arith.select %203, %206, %205 : vector<8x256xi1>, vector<8x256xf32>
    %cst_89 = arith.constant -6.200000e+01 : f32
    %208 = vector.broadcast %cst_89 : f32 to vector<8x256xf32>
    %209 = arith.select %203, %208, %200 : vector<8x256xi1>, vector<8x256xf32>
    %cst_90 = arith.constant 0.990049839 : f32
    %210 = vector.broadcast %cst_90 : f32 to vector<8x256xf32>
    %211 = arith.mulf %160, %210 : vector<8x256xf32>
    %cst_91 = arith.constant 1.000000e+00 : f32
    %212 = vector.broadcast %cst_91 : f32 to vector<8x256xf32>
    %213 = arith.select %203, %212, %211 : vector<8x256xi1>, vector<8x256xf32>
    %214 = arith.extui %203 : vector<8x256xi1> to vector<8x256xi32>
    %215 = arith.sitofp %214 : vector<8x256xi32> to vector<8x256xf32>
    %216 = arith.index_cast %c3_i32 : i32 to index
    %c0_92 = arith.constant 0 : index
    %c0_93 = arith.constant 0 : index
    %217 = vector.load %arg14[%216, %c0_92, %c0_93] : memref<16x8x256xf32, #tpu.memory_space<vmem>>, vector<1x8x256xf32>
    %218 = vector.shape_cast %217 : vector<1x8x256xf32> to vector<8x256xf32>
    %219 = vector.shape_cast %215 : vector<8x256xf32> to vector<1x8x256xf32>
    tpu.vector_store %arg14[%216, %c0_92, %c0_93], %219 {strides = array<i32>} : memref<16x8x256xf32, #tpu.memory_space<vmem>>, vector<1x8x256xf32>,
    %c4_i32 = arith.constant 4 : i32
    %220 = arith.index_cast %c4_i32 : i32 to index
    %c0_94 = arith.constant 0 : index
    %c0_95 = arith.constant 0 : index
    %221 = vector.load %arg2[%220, %c0_94, %c0_95] : memref<16x8x256xf32, #tpu.memory_space<vmem>>, vector<1x8x256xf32>
    %222 = vector.shape_cast %221 : vector<1x8x256xf32> to vector<8x256xf32>
    %cst_96 = arith.constant 0.000000e+00 : f32
    %223 = vector.broadcast %cst_96 : f32 to vector<8x256xf32>
    %224 = arith.cmpf ole, %207, %223 : vector<8x256xf32>
    %cst_97 = arith.constant -6.200000e+01 : f32
    %225 = vector.broadcast %cst_97 : f32 to vector<8x256xf32>
    %226 = arith.addf %222, %225 : vector<8x256xf32>
    %227 = arith.subf %226, %209 : vector<8x256xf32>
    %cst_98 = arith.constant -6.000000e+01 : f32
    %228 = vector.broadcast %cst_98 : f32 to vector<8x256xf32>
    %229 = arith.subf %209, %228 : vector<8x256xf32>
    %cst_99 = arith.constant 1.000000e+00 : f32
    %230 = vector.broadcast %cst_99 : f32 to vector<8x256xf32>
    %231 = arith.mulf %229, %230 : vector<8x256xf32>
    %232 = math.exp %231 : vector<8x256xf32>
    %cst_100 = arith.constant 1.000000e+00 : f32
    %233 = vector.broadcast %cst_100 : f32 to vector<8x256xf32>
    %234 = arith.mulf %233, %232 : vector<8x256xf32>
    %235 = arith.addf %227, %234 : vector<8x256xf32>
    %cst_101 = arith.constant 1.000000e-03 : f32
    %236 = vector.broadcast %cst_101 : f32 to vector<8x256xf32>
    %237 = arith.mulf %236, %201 : vector<8x256xf32>
    %238 = arith.subf %235, %237 : vector<8x256xf32>
    %cst_102 = arith.constant 0.00999999977 : f32
    %239 = vector.broadcast %cst_102 : f32 to vector<8x256xf32>
    %240 = arith.mulf %238, %239 : vector<8x256xf32>
    %241 = arith.addf %209, %240 : vector<8x256xf32>
    %cst_103 = arith.constant -6.200000e+01 : f32
    %242 = vector.broadcast %cst_103 : f32 to vector<8x256xf32>
    %243 = arith.subf %241, %242 : vector<8x256xf32>
    %cst_104 = arith.constant 1.000000e+00 : f32
    %244 = vector.broadcast %cst_104 : f32 to vector<8x256xf32>
    %245 = arith.mulf %244, %243 : vector<8x256xf32>
    %246 = arith.subf %245, %201 : vector<8x256xf32>
    %cst_105 = arith.constant 2.500000e-02 : f32
    %247 = vector.broadcast %cst_105 : f32 to vector<8x256xf32>
    %248 = arith.mulf %246, %247 : vector<8x256xf32>
    %249 = arith.addf %201, %248 : vector<8x256xf32>
    %cst_106 = arith.constant 2.000000e-01 : f32
    %250 = vector.broadcast %cst_106 : f32 to vector<8x256xf32>
    %251 = arith.mulf %250, %215 : vector<8x256xf32>
    %252 = arith.addf %249, %251 : vector<8x256xf32>
    %253 = arith.select %224, %241, %209 : vector<8x256xi1>, vector<8x256xf32>
    %254 = arith.select %224, %252, %201 : vector<8x256xi1>, vector<8x256xf32>
    %cst_107 = arith.constant -5.200000e+01 : f32
    %255 = vector.broadcast %cst_107 : f32 to vector<8x256xf32>
    %256 = arith.cmpf oge, %253, %255 : vector<8x256xf32>
    %cst_108 = arith.constant 1.000000e-01 : f32
    %257 = vector.broadcast %cst_108 : f32 to vector<8x256xf32>
    %258 = arith.subf %207, %257 : vector<8x256xf32>
    %cst_109 = arith.constant 5.000000e+00 : f32
    %259 = vector.broadcast %cst_109 : f32 to vector<8x256xf32>
    %260 = arith.select %256, %259, %258 : vector<8x256xi1>, vector<8x256xf32>
    %cst_110 = arith.constant -6.200000e+01 : f32
    %261 = vector.broadcast %cst_110 : f32 to vector<8x256xf32>
    %262 = arith.select %256, %261, %253 : vector<8x256xi1>, vector<8x256xf32>
    %cst_111 = arith.constant 0.990049839 : f32
    %263 = vector.broadcast %cst_111 : f32 to vector<8x256xf32>
    %264 = arith.mulf %213, %263 : vector<8x256xf32>
    %cst_112 = arith.constant 1.000000e+00 : f32
    %265 = vector.broadcast %cst_112 : f32 to vector<8x256xf32>
    %266 = arith.select %256, %265, %264 : vector<8x256xi1>, vector<8x256xf32>
    %267 = arith.extui %256 : vector<8x256xi1> to vector<8x256xi32>
    %268 = arith.sitofp %267 : vector<8x256xi32> to vector<8x256xf32>
    %269 = arith.index_cast %c4_i32 : i32 to index
    %c0_113 = arith.constant 0 : index
    %c0_114 = arith.constant 0 : index
    %270 = vector.load %arg14[%269, %c0_113, %c0_114] : memref<16x8x256xf32, #tpu.memory_space<vmem>>, vector<1x8x256xf32>
    %271 = vector.shape_cast %270 : vector<1x8x256xf32> to vector<8x256xf32>
    %272 = vector.shape_cast %268 : vector<8x256xf32> to vector<1x8x256xf32>
    tpu.vector_store %arg14[%269, %c0_113, %c0_114], %272 {strides = array<i32>} : memref<16x8x256xf32, #tpu.memory_space<vmem>>, vector<1x8x256xf32>,
    %c5_i32 = arith.constant 5 : i32
    %273 = arith.index_cast %c5_i32 : i32 to index
    %c0_115 = arith.constant 0 : index
    %c0_116 = arith.constant 0 : index
    %274 = vector.load %arg2[%273, %c0_115, %c0_116] : memref<16x8x256xf32, #tpu.memory_space<vmem>>, vector<1x8x256xf32>
    %275 = vector.shape_cast %274 : vector<1x8x256xf32> to vector<8x256xf32>
    %cst_117 = arith.constant 0.000000e+00 : f32
    %276 = vector.broadcast %cst_117 : f32 to vector<8x256xf32>
    %277 = arith.cmpf ole, %260, %276 : vector<8x256xf32>
    %cst_118 = arith.constant -6.200000e+01 : f32
    %278 = vector.broadcast %cst_118 : f32 to vector<8x256xf32>
    %279 = arith.addf %275, %278 : vector<8x256xf32>
    %280 = arith.subf %279, %262 : vector<8x256xf32>
    %cst_119 = arith.constant -6.000000e+01 : f32
    %281 = vector.broadcast %cst_119 : f32 to vector<8x256xf32>
    %282 = arith.subf %262, %281 : vector<8x256xf32>
    %cst_120 = arith.constant 1.000000e+00 : f32
    %283 = vector.broadcast %cst_120 : f32 to vector<8x256xf32>
    %284 = arith.mulf %282, %283 : vector<8x256xf32>
    %285 = math.exp %284 : vector<8x256xf32>
    %cst_121 = arith.constant 1.000000e+00 : f32
    %286 = vector.broadcast %cst_121 : f32 to vector<8x256xf32>
    %287 = arith.mulf %286, %285 : vector<8x256xf32>
    %288 = arith.addf %280, %287 : vector<8x256xf32>
    %cst_122 = arith.constant 1.000000e-03 : f32
    %289 = vector.broadcast %cst_122 : f32 to vector<8x256xf32>
    %290 = arith.mulf %289, %254 : vector<8x256xf32>
    %291 = arith.subf %288, %290 : vector<8x256xf32>
    %cst_123 = arith.constant 0.00999999977 : f32
    %292 = vector.broadcast %cst_123 : f32 to vector<8x256xf32>
    %293 = arith.mulf %291, %292 : vector<8x256xf32>
    %294 = arith.addf %262, %293 : vector<8x256xf32>
    %cst_124 = arith.constant -6.200000e+01 : f32
    %295 = vector.broadcast %cst_124 : f32 to vector<8x256xf32>
    %296 = arith.subf %294, %295 : vector<8x256xf32>
    %cst_125 = arith.constant 1.000000e+00 : f32
    %297 = vector.broadcast %cst_125 : f32 to vector<8x256xf32>
    %298 = arith.mulf %297, %296 : vector<8x256xf32>
    %299 = arith.subf %298, %254 : vector<8x256xf32>
    %cst_126 = arith.constant 2.500000e-02 : f32
    %300 = vector.broadcast %cst_126 : f32 to vector<8x256xf32>
    %301 = arith.mulf %299, %300 : vector<8x256xf32>
    %302 = arith.addf %254, %301 : vector<8x256xf32>
    %cst_127 = arith.constant 2.000000e-01 : f32
    %303 = vector.broadcast %cst_127 : f32 to vector<8x256xf32>
    %304 = arith.mulf %303, %268 : vector<8x256xf32>
    %305 = arith.addf %302, %304 : vector<8x256xf32>
    %306 = arith.select %277, %294, %262 : vector<8x256xi1>, vector<8x256xf32>
    %307 = arith.select %277, %305, %254 : vector<8x256xi1>, vector<8x256xf32>
    %cst_128 = arith.constant -5.200000e+01 : f32
    %308 = vector.broadcast %cst_128 : f32 to vector<8x256xf32>
    %309 = arith.cmpf oge, %306, %308 : vector<8x256xf32>
    %cst_129 = arith.constant 1.000000e-01 : f32
    %310 = vector.broadcast %cst_129 : f32 to vector<8x256xf32>
    %311 = arith.subf %260, %310 : vector<8x256xf32>
    %cst_130 = arith.constant 5.000000e+00 : f32
    %312 = vector.broadcast %cst_130 : f32 to vector<8x256xf32>
    %313 = arith.select %309, %312, %311 : vector<8x256xi1>, vector<8x256xf32>
    %cst_131 = arith.constant -6.200000e+01 : f32
    %314 = vector.broadcast %cst_131 : f32 to vector<8x256xf32>
    %315 = arith.select %309, %314, %306 : vector<8x256xi1>, vector<8x256xf32>
    %cst_132 = arith.constant 0.990049839 : f32
    %316 = vector.broadcast %cst_132 : f32 to vector<8x256xf32>
    %317 = arith.mulf %266, %316 : vector<8x256xf32>
    %cst_133 = arith.constant 1.000000e+00 : f32
    %318 = vector.broadcast %cst_133 : f32 to vector<8x256xf32>
    %319 = arith.select %309, %318, %317 : vector<8x256xi1>, vector<8x256xf32>
    %320 = arith.extui %309 : vector<8x256xi1> to vector<8x256xi32>
    %321 = arith.sitofp %320 : vector<8x256xi32> to vector<8x256xf32>
    %322 = arith.index_cast %c5_i32 : i32 to index
    %c0_134 = arith.constant 0 : index
    %c0_135 = arith.constant 0 : index
    %323 = vector.load %arg14[%322, %c0_134, %c0_135] : memref<16x8x256xf32, #tpu.memory_space<vmem>>, vector<1x8x256xf32>
    %324 = vector.shape_cast %323 : vector<1x8x256xf32> to vector<8x256xf32>
    %325 = vector.shape_cast %321 : vector<8x256xf32> to vector<1x8x256xf32>
    tpu.vector_store %arg14[%322, %c0_134, %c0_135], %325 {strides = array<i32>} : memref<16x8x256xf32, #tpu.memory_space<vmem>>, vector<1x8x256xf32>,
    %c6_i32 = arith.constant 6 : i32
    %326 = arith.index_cast %c6_i32 : i32 to index
    %c0_136 = arith.constant 0 : index
    %c0_137 = arith.constant 0 : index
    %327 = vector.load %arg2[%326, %c0_136, %c0_137] : memref<16x8x256xf32, #tpu.memory_space<vmem>>, vector<1x8x256xf32>
    %328 = vector.shape_cast %327 : vector<1x8x256xf32> to vector<8x256xf32>
    %cst_138 = arith.constant 0.000000e+00 : f32
    %329 = vector.broadcast %cst_138 : f32 to vector<8x256xf32>
    %330 = arith.cmpf ole, %313, %329 : vector<8x256xf32>
    %cst_139 = arith.constant -6.200000e+01 : f32
    %331 = vector.broadcast %cst_139 : f32 to vector<8x256xf32>
    %332 = arith.addf %328, %331 : vector<8x256xf32>
    %333 = arith.subf %332, %315 : vector<8x256xf32>
    %cst_140 = arith.constant -6.000000e+01 : f32
    %334 = vector.broadcast %cst_140 : f32 to vector<8x256xf32>
    %335 = arith.subf %315, %334 : vector<8x256xf32>
    %cst_141 = arith.constant 1.000000e+00 : f32
    %336 = vector.broadcast %cst_141 : f32 to vector<8x256xf32>
    %337 = arith.mulf %335, %336 : vector<8x256xf32>
    %338 = math.exp %337 : vector<8x256xf32>
    %cst_142 = arith.constant 1.000000e+00 : f32
    %339 = vector.broadcast %cst_142 : f32 to vector<8x256xf32>
    %340 = arith.mulf %339, %338 : vector<8x256xf32>
    %341 = arith.addf %333, %340 : vector<8x256xf32>
    %cst_143 = arith.constant 1.000000e-03 : f32
    %342 = vector.broadcast %cst_143 : f32 to vector<8x256xf32>
    %343 = arith.mulf %342, %307 : vector<8x256xf32>
    %344 = arith.subf %341, %343 : vector<8x256xf32>
    %cst_144 = arith.constant 0.00999999977 : f32
    %345 = vector.broadcast %cst_144 : f32 to vector<8x256xf32>
    %346 = arith.mulf %344, %345 : vector<8x256xf32>
    %347 = arith.addf %315, %346 : vector<8x256xf32>
    %cst_145 = arith.constant -6.200000e+01 : f32
    %348 = vector.broadcast %cst_145 : f32 to vector<8x256xf32>
    %349 = arith.subf %347, %348 : vector<8x256xf32>
    %cst_146 = arith.constant 1.000000e+00 : f32
    %350 = vector.broadcast %cst_146 : f32 to vector<8x256xf32>
    %351 = arith.mulf %350, %349 : vector<8x256xf32>
    %352 = arith.subf %351, %307 : vector<8x256xf32>
    %cst_147 = arith.constant 2.500000e-02 : f32
    %353 = vector.broadcast %cst_147 : f32 to vector<8x256xf32>
    %354 = arith.mulf %352, %353 : vector<8x256xf32>
    %355 = arith.addf %307, %354 : vector<8x256xf32>
    %cst_148 = arith.constant 2.000000e-01 : f32
    %356 = vector.broadcast %cst_148 : f32 to vector<8x256xf32>
    %357 = arith.mulf %356, %321 : vector<8x256xf32>
    %358 = arith.addf %355, %357 : vector<8x256xf32>
    %359 = arith.select %330, %347, %315 : vector<8x256xi1>, vector<8x256xf32>
    %360 = arith.select %330, %358, %307 : vector<8x256xi1>, vector<8x256xf32>
    %cst_149 = arith.constant -5.200000e+01 : f32
    %361 = vector.broadcast %cst_149 : f32 to vector<8x256xf32>
    %362 = arith.cmpf oge, %359, %361 : vector<8x256xf32>
    %cst_150 = arith.constant 1.000000e-01 : f32
    %363 = vector.broadcast %cst_150 : f32 to vector<8x256xf32>
    %364 = arith.subf %313, %363 : vector<8x256xf32>
    %cst_151 = arith.constant 5.000000e+00 : f32
    %365 = vector.broadcast %cst_151 : f32 to vector<8x256xf32>
    %366 = arith.select %362, %365, %364 : vector<8x256xi1>, vector<8x256xf32>
    %cst_152 = arith.constant -6.200000e+01 : f32
    %367 = vector.broadcast %cst_152 : f32 to vector<8x256xf32>
    %368 = arith.select %362, %367, %359 : vector<8x256xi1>, vector<8x256xf32>
    %cst_153 = arith.constant 0.990049839 : f32
    %369 = vector.broadcast %cst_153 : f32 to vector<8x256xf32>
    %370 = arith.mulf %319, %369 : vector<8x256xf32>
    %cst_154 = arith.constant 1.000000e+00 : f32
    %371 = vector.broadcast %cst_154 : f32 to vector<8x256xf32>
    %372 = arith.select %362, %371, %370 : vector<8x256xi1>, vector<8x256xf32>
    %373 = arith.extui %362 : vector<8x256xi1> to vector<8x256xi32>
    %374 = arith.sitofp %373 : vector<8x256xi32> to vector<8x256xf32>
    %375 = arith.index_cast %c6_i32 : i32 to index
    %c0_155 = arith.constant 0 : index
    %c0_156 = arith.constant 0 : index
    %376 = vector.load %arg14[%375, %c0_155, %c0_156] : memref<16x8x256xf32, #tpu.memory_space<vmem>>, vector<1x8x256xf32>
    %377 = vector.shape_cast %376 : vector<1x8x256xf32> to vector<8x256xf32>
    %378 = vector.shape_cast %374 : vector<8x256xf32> to vector<1x8x256xf32>
    tpu.vector_store %arg14[%375, %c0_155, %c0_156], %378 {strides = array<i32>} : memref<16x8x256xf32, #tpu.memory_space<vmem>>, vector<1x8x256xf32>,
    %c7_i32 = arith.constant 7 : i32
    %379 = arith.index_cast %c7_i32 : i32 to index
    %c0_157 = arith.constant 0 : index
    %c0_158 = arith.constant 0 : index
    %380 = vector.load %arg2[%379, %c0_157, %c0_158] : memref<16x8x256xf32, #tpu.memory_space<vmem>>, vector<1x8x256xf32>
    %381 = vector.shape_cast %380 : vector<1x8x256xf32> to vector<8x256xf32>
    %cst_159 = arith.constant 0.000000e+00 : f32
    %382 = vector.broadcast %cst_159 : f32 to vector<8x256xf32>
    %383 = arith.cmpf ole, %366, %382 : vector<8x256xf32>
    %cst_160 = arith.constant -6.200000e+01 : f32
    %384 = vector.broadcast %cst_160 : f32 to vector<8x256xf32>
    %385 = arith.addf %381, %384 : vector<8x256xf32>
    %386 = arith.subf %385, %368 : vector<8x256xf32>
    %cst_161 = arith.constant -6.000000e+01 : f32
    %387 = vector.broadcast %cst_161 : f32 to vector<8x256xf32>
    %388 = arith.subf %368, %387 : vector<8x256xf32>
    %cst_162 = arith.constant 1.000000e+00 : f32
    %389 = vector.broadcast %cst_162 : f32 to vector<8x256xf32>
    %390 = arith.mulf %388, %389 : vector<8x256xf32>
    %391 = math.exp %390 : vector<8x256xf32>
    %cst_163 = arith.constant 1.000000e+00 : f32
    %392 = vector.broadcast %cst_163 : f32 to vector<8x256xf32>
    %393 = arith.mulf %392, %391 : vector<8x256xf32>
    %394 = arith.addf %386, %393 : vector<8x256xf32>
    %cst_164 = arith.constant 1.000000e-03 : f32
    %395 = vector.broadcast %cst_164 : f32 to vector<8x256xf32>
    %396 = arith.mulf %395, %360 : vector<8x256xf32>
    %397 = arith.subf %394, %396 : vector<8x256xf32>
    %cst_165 = arith.constant 0.00999999977 : f32
    %398 = vector.broadcast %cst_165 : f32 to vector<8x256xf32>
    %399 = arith.mulf %397, %398 : vector<8x256xf32>
    %400 = arith.addf %368, %399 : vector<8x256xf32>
    %cst_166 = arith.constant -6.200000e+01 : f32
    %401 = vector.broadcast %cst_166 : f32 to vector<8x256xf32>
    %402 = arith.subf %400, %401 : vector<8x256xf32>
    %cst_167 = arith.constant 1.000000e+00 : f32
    %403 = vector.broadcast %cst_167 : f32 to vector<8x256xf32>
    %404 = arith.mulf %403, %402 : vector<8x256xf32>
    %405 = arith.subf %404, %360 : vector<8x256xf32>
    %cst_168 = arith.constant 2.500000e-02 : f32
    %406 = vector.broadcast %cst_168 : f32 to vector<8x256xf32>
    %407 = arith.mulf %405, %406 : vector<8x256xf32>
    %408 = arith.addf %360, %407 : vector<8x256xf32>
    %cst_169 = arith.constant 2.000000e-01 : f32
    %409 = vector.broadcast %cst_169 : f32 to vector<8x256xf32>
    %410 = arith.mulf %409, %374 : vector<8x256xf32>
    %411 = arith.addf %408, %410 : vector<8x256xf32>
    %412 = arith.select %383, %400, %368 : vector<8x256xi1>, vector<8x256xf32>
    %413 = arith.select %383, %411, %360 : vector<8x256xi1>, vector<8x256xf32>
    %cst_170 = arith.constant -5.200000e+01 : f32
    %414 = vector.broadcast %cst_170 : f32 to vector<8x256xf32>
    %415 = arith.cmpf oge, %412, %414 : vector<8x256xf32>
    %cst_171 = arith.constant 1.000000e-01 : f32
    %416 = vector.broadcast %cst_171 : f32 to vector<8x256xf32>
    %417 = arith.subf %366, %416 : vector<8x256xf32>
    %cst_172 = arith.constant 5.000000e+00 : f32
    %418 = vector.broadcast %cst_172 : f32 to vector<8x256xf32>
    %419 = arith.select %415, %418, %417 : vector<8x256xi1>, vector<8x256xf32>
    %cst_173 = arith.constant -6.200000e+01 : f32
    %420 = vector.broadcast %cst_173 : f32 to vector<8x256xf32>
    %421 = arith.select %415, %420, %412 : vector<8x256xi1>, vector<8x256xf32>
    %cst_174 = arith.constant 0.990049839 : f32
    %422 = vector.broadcast %cst_174 : f32 to vector<8x256xf32>
    %423 = arith.mulf %372, %422 : vector<8x256xf32>
    %cst_175 = arith.constant 1.000000e+00 : f32
    %424 = vector.broadcast %cst_175 : f32 to vector<8x256xf32>
    %425 = arith.select %415, %424, %423 : vector<8x256xi1>, vector<8x256xf32>
    %426 = arith.extui %415 : vector<8x256xi1> to vector<8x256xi32>
    %427 = arith.sitofp %426 : vector<8x256xi32> to vector<8x256xf32>
    %428 = arith.index_cast %c7_i32 : i32 to index
    %c0_176 = arith.constant 0 : index
    %c0_177 = arith.constant 0 : index
    %429 = vector.load %arg14[%428, %c0_176, %c0_177] : memref<16x8x256xf32, #tpu.memory_space<vmem>>, vector<1x8x256xf32>
    %430 = vector.shape_cast %429 : vector<1x8x256xf32> to vector<8x256xf32>
    %431 = vector.shape_cast %427 : vector<8x256xf32> to vector<1x8x256xf32>
    tpu.vector_store %arg14[%428, %c0_176, %c0_177], %431 {strides = array<i32>} : memref<16x8x256xf32, #tpu.memory_space<vmem>>, vector<1x8x256xf32>,
    %c8_i32 = arith.constant 8 : i32
    %432 = arith.index_cast %c8_i32 : i32 to index
    %c0_178 = arith.constant 0 : index
    %c0_179 = arith.constant 0 : index
    %433 = vector.load %arg2[%432, %c0_178, %c0_179] : memref<16x8x256xf32, #tpu.memory_space<vmem>>, vector<1x8x256xf32>
    %434 = vector.shape_cast %433 : vector<1x8x256xf32> to vector<8x256xf32>
    %cst_180 = arith.constant 0.000000e+00 : f32
    %435 = vector.broadcast %cst_180 : f32 to vector<8x256xf32>
    %436 = arith.cmpf ole, %419, %435 : vector<8x256xf32>
    %cst_181 = arith.constant -6.200000e+01 : f32
    %437 = vector.broadcast %cst_181 : f32 to vector<8x256xf32>
    %438 = arith.addf %434, %437 : vector<8x256xf32>
    %439 = arith.subf %438, %421 : vector<8x256xf32>
    %cst_182 = arith.constant -6.000000e+01 : f32
    %440 = vector.broadcast %cst_182 : f32 to vector<8x256xf32>
    %441 = arith.subf %421, %440 : vector<8x256xf32>
    %cst_183 = arith.constant 1.000000e+00 : f32
    %442 = vector.broadcast %cst_183 : f32 to vector<8x256xf32>
    %443 = arith.mulf %441, %442 : vector<8x256xf32>
    %444 = math.exp %443 : vector<8x256xf32>
    %cst_184 = arith.constant 1.000000e+00 : f32
    %445 = vector.broadcast %cst_184 : f32 to vector<8x256xf32>
    %446 = arith.mulf %445, %444 : vector<8x256xf32>
    %447 = arith.addf %439, %446 : vector<8x256xf32>
    %cst_185 = arith.constant 1.000000e-03 : f32
    %448 = vector.broadcast %cst_185 : f32 to vector<8x256xf32>
    %449 = arith.mulf %448, %413 : vector<8x256xf32>
    %450 = arith.subf %447, %449 : vector<8x256xf32>
    %cst_186 = arith.constant 0.00999999977 : f32
    %451 = vector.broadcast %cst_186 : f32 to vector<8x256xf32>
    %452 = arith.mulf %450, %451 : vector<8x256xf32>
    %453 = arith.addf %421, %452 : vector<8x256xf32>
    %cst_187 = arith.constant -6.200000e+01 : f32
    %454 = vector.broadcast %cst_187 : f32 to vector<8x256xf32>
    %455 = arith.subf %453, %454 : vector<8x256xf32>
    %cst_188 = arith.constant 1.000000e+00 : f32
    %456 = vector.broadcast %cst_188 : f32 to vector<8x256xf32>
    %457 = arith.mulf %456, %455 : vector<8x256xf32>
    %458 = arith.subf %457, %413 : vector<8x256xf32>
    %cst_189 = arith.constant 2.500000e-02 : f32
    %459 = vector.broadcast %cst_189 : f32 to vector<8x256xf32>
    %460 = arith.mulf %458, %459 : vector<8x256xf32>
    %461 = arith.addf %413, %460 : vector<8x256xf32>
    %cst_190 = arith.constant 2.000000e-01 : f32
    %462 = vector.broadcast %cst_190 : f32 to vector<8x256xf32>
    %463 = arith.mulf %462, %427 : vector<8x256xf32>
    %464 = arith.addf %461, %463 : vector<8x256xf32>
    %465 = arith.select %436, %453, %421 : vector<8x256xi1>, vector<8x256xf32>
    %466 = arith.select %436, %464, %413 : vector<8x256xi1>, vector<8x256xf32>
    %cst_191 = arith.constant -5.200000e+01 : f32
    %467 = vector.broadcast %cst_191 : f32 to vector<8x256xf32>
    %468 = arith.cmpf oge, %465, %467 : vector<8x256xf32>
    %cst_192 = arith.constant 1.000000e-01 : f32
    %469 = vector.broadcast %cst_192 : f32 to vector<8x256xf32>
    %470 = arith.subf %419, %469 : vector<8x256xf32>
    %cst_193 = arith.constant 5.000000e+00 : f32
    %471 = vector.broadcast %cst_193 : f32 to vector<8x256xf32>
    %472 = arith.select %468, %471, %470 : vector<8x256xi1>, vector<8x256xf32>
    %cst_194 = arith.constant -6.200000e+01 : f32
    %473 = vector.broadcast %cst_194 : f32 to vector<8x256xf32>
    %474 = arith.select %468, %473, %465 : vector<8x256xi1>, vector<8x256xf32>
    %cst_195 = arith.constant 0.990049839 : f32
    %475 = vector.broadcast %cst_195 : f32 to vector<8x256xf32>
    %476 = arith.mulf %425, %475 : vector<8x256xf32>
    %cst_196 = arith.constant 1.000000e+00 : f32
    %477 = vector.broadcast %cst_196 : f32 to vector<8x256xf32>
    %478 = arith.select %468, %477, %476 : vector<8x256xi1>, vector<8x256xf32>
    %479 = arith.extui %468 : vector<8x256xi1> to vector<8x256xi32>
    %480 = arith.sitofp %479 : vector<8x256xi32> to vector<8x256xf32>
    %481 = arith.index_cast %c8_i32 : i32 to index
    %c0_197 = arith.constant 0 : index
    %c0_198 = arith.constant 0 : index
    %482 = vector.load %arg14[%481, %c0_197, %c0_198] : memref<16x8x256xf32, #tpu.memory_space<vmem>>, vector<1x8x256xf32>
    %483 = vector.shape_cast %482 : vector<1x8x256xf32> to vector<8x256xf32>
    %484 = vector.shape_cast %480 : vector<8x256xf32> to vector<1x8x256xf32>
    tpu.vector_store %arg14[%481, %c0_197, %c0_198], %484 {strides = array<i32>} : memref<16x8x256xf32, #tpu.memory_space<vmem>>, vector<1x8x256xf32>,
    %c9_i32 = arith.constant 9 : i32
    %485 = arith.index_cast %c9_i32 : i32 to index
    %c0_199 = arith.constant 0 : index
    %c0_200 = arith.constant 0 : index
    %486 = vector.load %arg2[%485, %c0_199, %c0_200] : memref<16x8x256xf32, #tpu.memory_space<vmem>>, vector<1x8x256xf32>
    %487 = vector.shape_cast %486 : vector<1x8x256xf32> to vector<8x256xf32>
    %cst_201 = arith.constant 0.000000e+00 : f32
    %488 = vector.broadcast %cst_201 : f32 to vector<8x256xf32>
    %489 = arith.cmpf ole, %472, %488 : vector<8x256xf32>
    %cst_202 = arith.constant -6.200000e+01 : f32
    %490 = vector.broadcast %cst_202 : f32 to vector<8x256xf32>
    %491 = arith.addf %487, %490 : vector<8x256xf32>
    %492 = arith.subf %491, %474 : vector<8x256xf32>
    %cst_203 = arith.constant -6.000000e+01 : f32
    %493 = vector.broadcast %cst_203 : f32 to vector<8x256xf32>
    %494 = arith.subf %474, %493 : vector<8x256xf32>
    %cst_204 = arith.constant 1.000000e+00 : f32
    %495 = vector.broadcast %cst_204 : f32 to vector<8x256xf32>
    %496 = arith.mulf %494, %495 : vector<8x256xf32>
    %497 = math.exp %496 : vector<8x256xf32>
    %cst_205 = arith.constant 1.000000e+00 : f32
    %498 = vector.broadcast %cst_205 : f32 to vector<8x256xf32>
    %499 = arith.mulf %498, %497 : vector<8x256xf32>
    %500 = arith.addf %492, %499 : vector<8x256xf32>
    %cst_206 = arith.constant 1.000000e-03 : f32
    %501 = vector.broadcast %cst_206 : f32 to vector<8x256xf32>
    %502 = arith.mulf %501, %466 : vector<8x256xf32>
    %503 = arith.subf %500, %502 : vector<8x256xf32>
    %cst_207 = arith.constant 0.00999999977 : f32
    %504 = vector.broadcast %cst_207 : f32 to vector<8x256xf32>
    %505 = arith.mulf %503, %504 : vector<8x256xf32>
    %506 = arith.addf %474, %505 : vector<8x256xf32>
    %cst_208 = arith.constant -6.200000e+01 : f32
    %507 = vector.broadcast %cst_208 : f32 to vector<8x256xf32>
    %508 = arith.subf %506, %507 : vector<8x256xf32>
    %cst_209 = arith.constant 1.000000e+00 : f32
    %509 = vector.broadcast %cst_209 : f32 to vector<8x256xf32>
    %510 = arith.mulf %509, %508 : vector<8x256xf32>
    %511 = arith.subf %510, %466 : vector<8x256xf32>
    %cst_210 = arith.constant 2.500000e-02 : f32
    %512 = vector.broadcast %cst_210 : f32 to vector<8x256xf32>
    %513 = arith.mulf %511, %512 : vector<8x256xf32>
    %514 = arith.addf %466, %513 : vector<8x256xf32>
    %cst_211 = arith.constant 2.000000e-01 : f32
    %515 = vector.broadcast %cst_211 : f32 to vector<8x256xf32>
    %516 = arith.mulf %515, %480 : vector<8x256xf32>
    %517 = arith.addf %514, %516 : vector<8x256xf32>
    %518 = arith.select %489, %506, %474 : vector<8x256xi1>, vector<8x256xf32>
    %519 = arith.select %489, %517, %466 : vector<8x256xi1>, vector<8x256xf32>
    %cst_212 = arith.constant -5.200000e+01 : f32
    %520 = vector.broadcast %cst_212 : f32 to vector<8x256xf32>
    %521 = arith.cmpf oge, %518, %520 : vector<8x256xf32>
    %cst_213 = arith.constant 1.000000e-01 : f32
    %522 = vector.broadcast %cst_213 : f32 to vector<8x256xf32>
    %523 = arith.subf %472, %522 : vector<8x256xf32>
    %cst_214 = arith.constant 5.000000e+00 : f32
    %524 = vector.broadcast %cst_214 : f32 to vector<8x256xf32>
    %525 = arith.select %521, %524, %523 : vector<8x256xi1>, vector<8x256xf32>
    %cst_215 = arith.constant -6.200000e+01 : f32
    %526 = vector.broadcast %cst_215 : f32 to vector<8x256xf32>
    %527 = arith.select %521, %526, %518 : vector<8x256xi1>, vector<8x256xf32>
    %cst_216 = arith.constant 0.990049839 : f32
    %528 = vector.broadcast %cst_216 : f32 to vector<8x256xf32>
    %529 = arith.mulf %478, %528 : vector<8x256xf32>
    %cst_217 = arith.constant 1.000000e+00 : f32
    %530 = vector.broadcast %cst_217 : f32 to vector<8x256xf32>
    %531 = arith.select %521, %530, %529 : vector<8x256xi1>, vector<8x256xf32>
    %532 = arith.extui %521 : vector<8x256xi1> to vector<8x256xi32>
    %533 = arith.sitofp %532 : vector<8x256xi32> to vector<8x256xf32>
    %534 = arith.index_cast %c9_i32 : i32 to index
    %c0_218 = arith.constant 0 : index
    %c0_219 = arith.constant 0 : index
    %535 = vector.load %arg14[%534, %c0_218, %c0_219] : memref<16x8x256xf32, #tpu.memory_space<vmem>>, vector<1x8x256xf32>
    %536 = vector.shape_cast %535 : vector<1x8x256xf32> to vector<8x256xf32>
    %537 = vector.shape_cast %533 : vector<8x256xf32> to vector<1x8x256xf32>
    tpu.vector_store %arg14[%534, %c0_218, %c0_219], %537 {strides = array<i32>} : memref<16x8x256xf32, #tpu.memory_space<vmem>>, vector<1x8x256xf32>,
    %c10_i32 = arith.constant 10 : i32
    %538 = arith.index_cast %c10_i32 : i32 to index
    %c0_220 = arith.constant 0 : index
    %c0_221 = arith.constant 0 : index
    %539 = vector.load %arg2[%538, %c0_220, %c0_221] : memref<16x8x256xf32, #tpu.memory_space<vmem>>, vector<1x8x256xf32>
    %540 = vector.shape_cast %539 : vector<1x8x256xf32> to vector<8x256xf32>
    %cst_222 = arith.constant 0.000000e+00 : f32
    %541 = vector.broadcast %cst_222 : f32 to vector<8x256xf32>
    %542 = arith.cmpf ole, %525, %541 : vector<8x256xf32>
    %cst_223 = arith.constant -6.200000e+01 : f32
    %543 = vector.broadcast %cst_223 : f32 to vector<8x256xf32>
    %544 = arith.addf %540, %543 : vector<8x256xf32>
    %545 = arith.subf %544, %527 : vector<8x256xf32>
    %cst_224 = arith.constant -6.000000e+01 : f32
    %546 = vector.broadcast %cst_224 : f32 to vector<8x256xf32>
    %547 = arith.subf %527, %546 : vector<8x256xf32>
    %cst_225 = arith.constant 1.000000e+00 : f32
    %548 = vector.broadcast %cst_225 : f32 to vector<8x256xf32>
    %549 = arith.mulf %547, %548 : vector<8x256xf32>
    %550 = math.exp %549 : vector<8x256xf32>
    %cst_226 = arith.constant 1.000000e+00 : f32
    %551 = vector.broadcast %cst_226 : f32 to vector<8x256xf32>
    %552 = arith.mulf %551, %550 : vector<8x256xf32>
    %553 = arith.addf %545, %552 : vector<8x256xf32>
    %cst_227 = arith.constant 1.000000e-03 : f32
    %554 = vector.broadcast %cst_227 : f32 to vector<8x256xf32>
    %555 = arith.mulf %554, %519 : vector<8x256xf32>
    %556 = arith.subf %553, %555 : vector<8x256xf32>
    %cst_228 = arith.constant 0.00999999977 : f32
    %557 = vector.broadcast %cst_228 : f32 to vector<8x256xf32>
    %558 = arith.mulf %556, %557 : vector<8x256xf32>
    %559 = arith.addf %527, %558 : vector<8x256xf32>
    %cst_229 = arith.constant -6.200000e+01 : f32
    %560 = vector.broadcast %cst_229 : f32 to vector<8x256xf32>
    %561 = arith.subf %559, %560 : vector<8x256xf32>
    %cst_230 = arith.constant 1.000000e+00 : f32
    %562 = vector.broadcast %cst_230 : f32 to vector<8x256xf32>
    %563 = arith.mulf %562, %561 : vector<8x256xf32>
    %564 = arith.subf %563, %519 : vector<8x256xf32>
    %cst_231 = arith.constant 2.500000e-02 : f32
    %565 = vector.broadcast %cst_231 : f32 to vector<8x256xf32>
    %566 = arith.mulf %564, %565 : vector<8x256xf32>
    %567 = arith.addf %519, %566 : vector<8x256xf32>
    %cst_232 = arith.constant 2.000000e-01 : f32
    %568 = vector.broadcast %cst_232 : f32 to vector<8x256xf32>
    %569 = arith.mulf %568, %533 : vector<8x256xf32>
    %570 = arith.addf %567, %569 : vector<8x256xf32>
    %571 = arith.select %542, %559, %527 : vector<8x256xi1>, vector<8x256xf32>
    %572 = arith.select %542, %570, %519 : vector<8x256xi1>, vector<8x256xf32>
    %cst_233 = arith.constant -5.200000e+01 : f32
    %573 = vector.broadcast %cst_233 : f32 to vector<8x256xf32>
    %574 = arith.cmpf oge, %571, %573 : vector<8x256xf32>
    %cst_234 = arith.constant 1.000000e-01 : f32
    %575 = vector.broadcast %cst_234 : f32 to vector<8x256xf32>
    %576 = arith.subf %525, %575 : vector<8x256xf32>
    %cst_235 = arith.constant 5.000000e+00 : f32
    %577 = vector.broadcast %cst_235 : f32 to vector<8x256xf32>
    %578 = arith.select %574, %577, %576 : vector<8x256xi1>, vector<8x256xf32>
    %cst_236 = arith.constant -6.200000e+01 : f32
    %579 = vector.broadcast %cst_236 : f32 to vector<8x256xf32>
    %580 = arith.select %574, %579, %571 : vector<8x256xi1>, vector<8x256xf32>
    %cst_237 = arith.constant 0.990049839 : f32
    %581 = vector.broadcast %cst_237 : f32 to vector<8x256xf32>
    %582 = arith.mulf %531, %581 : vector<8x256xf32>
    %cst_238 = arith.constant 1.000000e+00 : f32
    %583 = vector.broadcast %cst_238 : f32 to vector<8x256xf32>
    %584 = arith.select %574, %583, %582 : vector<8x256xi1>, vector<8x256xf32>
    %585 = arith.extui %574 : vector<8x256xi1> to vector<8x256xi32>
    %586 = arith.sitofp %585 : vector<8x256xi32> to vector<8x256xf32>
    %587 = arith.index_cast %c10_i32 : i32 to index
    %c0_239 = arith.constant 0 : index
    %c0_240 = arith.constant 0 : index
    %588 = vector.load %arg14[%587, %c0_239, %c0_240] : memref<16x8x256xf32, #tpu.memory_space<vmem>>, vector<1x8x256xf32>
    %589 = vector.shape_cast %588 : vector<1x8x256xf32> to vector<8x256xf32>
    %590 = vector.shape_cast %586 : vector<8x256xf32> to vector<1x8x256xf32>
    tpu.vector_store %arg14[%587, %c0_239, %c0_240], %590 {strides = array<i32>} : memref<16x8x256xf32, #tpu.memory_space<vmem>>, vector<1x8x256xf32>,
    %c11_i32 = arith.constant 11 : i32
    %591 = arith.index_cast %c11_i32 : i32 to index
    %c0_241 = arith.constant 0 : index
    %c0_242 = arith.constant 0 : index
    %592 = vector.load %arg2[%591, %c0_241, %c0_242] : memref<16x8x256xf32, #tpu.memory_space<vmem>>, vector<1x8x256xf32>
    %593 = vector.shape_cast %592 : vector<1x8x256xf32> to vector<8x256xf32>
    %cst_243 = arith.constant 0.000000e+00 : f32
    %594 = vector.broadcast %cst_243 : f32 to vector<8x256xf32>
    %595 = arith.cmpf ole, %578, %594 : vector<8x256xf32>
    %cst_244 = arith.constant -6.200000e+01 : f32
    %596 = vector.broadcast %cst_244 : f32 to vector<8x256xf32>
    %597 = arith.addf %593, %596 : vector<8x256xf32>
    %598 = arith.subf %597, %580 : vector<8x256xf32>
    %cst_245 = arith.constant -6.000000e+01 : f32
    %599 = vector.broadcast %cst_245 : f32 to vector<8x256xf32>
    %600 = arith.subf %580, %599 : vector<8x256xf32>
    %cst_246 = arith.constant 1.000000e+00 : f32
    %601 = vector.broadcast %cst_246 : f32 to vector<8x256xf32>
    %602 = arith.mulf %600, %601 : vector<8x256xf32>
    %603 = math.exp %602 : vector<8x256xf32>
    %cst_247 = arith.constant 1.000000e+00 : f32
    %604 = vector.broadcast %cst_247 : f32 to vector<8x256xf32>
    %605 = arith.mulf %604, %603 : vector<8x256xf32>
    %606 = arith.addf %598, %605 : vector<8x256xf32>
    %cst_248 = arith.constant 1.000000e-03 : f32
    %607 = vector.broadcast %cst_248 : f32 to vector<8x256xf32>
    %608 = arith.mulf %607, %572 : vector<8x256xf32>
    %609 = arith.subf %606, %608 : vector<8x256xf32>
    %cst_249 = arith.constant 0.00999999977 : f32
    %610 = vector.broadcast %cst_249 : f32 to vector<8x256xf32>
    %611 = arith.mulf %609, %610 : vector<8x256xf32>
    %612 = arith.addf %580, %611 : vector<8x256xf32>
    %cst_250 = arith.constant -6.200000e+01 : f32
    %613 = vector.broadcast %cst_250 : f32 to vector<8x256xf32>
    %614 = arith.subf %612, %613 : vector<8x256xf32>
    %cst_251 = arith.constant 1.000000e+00 : f32
    %615 = vector.broadcast %cst_251 : f32 to vector<8x256xf32>
    %616 = arith.mulf %615, %614 : vector<8x256xf32>
    %617 = arith.subf %616, %572 : vector<8x256xf32>
    %cst_252 = arith.constant 2.500000e-02 : f32
    %618 = vector.broadcast %cst_252 : f32 to vector<8x256xf32>
    %619 = arith.mulf %617, %618 : vector<8x256xf32>
    %620 = arith.addf %572, %619 : vector<8x256xf32>
    %cst_253 = arith.constant 2.000000e-01 : f32
    %621 = vector.broadcast %cst_253 : f32 to vector<8x256xf32>
    %622 = arith.mulf %621, %586 : vector<8x256xf32>
    %623 = arith.addf %620, %622 : vector<8x256xf32>
    %624 = arith.select %595, %612, %580 : vector<8x256xi1>, vector<8x256xf32>
    %625 = arith.select %595, %623, %572 : vector<8x256xi1>, vector<8x256xf32>
    %cst_254 = arith.constant -5.200000e+01 : f32
    %626 = vector.broadcast %cst_254 : f32 to vector<8x256xf32>
    %627 = arith.cmpf oge, %624, %626 : vector<8x256xf32>
    %cst_255 = arith.constant 1.000000e-01 : f32
    %628 = vector.broadcast %cst_255 : f32 to vector<8x256xf32>
    %629 = arith.subf %578, %628 : vector<8x256xf32>
    %cst_256 = arith.constant 5.000000e+00 : f32
    %630 = vector.broadcast %cst_256 : f32 to vector<8x256xf32>
    %631 = arith.select %627, %630, %629 : vector<8x256xi1>, vector<8x256xf32>
    %cst_257 = arith.constant -6.200000e+01 : f32
    %632 = vector.broadcast %cst_257 : f32 to vector<8x256xf32>
    %633 = arith.select %627, %632, %624 : vector<8x256xi1>, vector<8x256xf32>
    %cst_258 = arith.constant 0.990049839 : f32
    %634 = vector.broadcast %cst_258 : f32 to vector<8x256xf32>
    %635 = arith.mulf %584, %634 : vector<8x256xf32>
    %cst_259 = arith.constant 1.000000e+00 : f32
    %636 = vector.broadcast %cst_259 : f32 to vector<8x256xf32>
    %637 = arith.select %627, %636, %635 : vector<8x256xi1>, vector<8x256xf32>
    %638 = arith.extui %627 : vector<8x256xi1> to vector<8x256xi32>
    %639 = arith.sitofp %638 : vector<8x256xi32> to vector<8x256xf32>
    %640 = arith.index_cast %c11_i32 : i32 to index
    %c0_260 = arith.constant 0 : index
    %c0_261 = arith.constant 0 : index
    %641 = vector.load %arg14[%640, %c0_260, %c0_261] : memref<16x8x256xf32, #tpu.memory_space<vmem>>, vector<1x8x256xf32>
    %642 = vector.shape_cast %641 : vector<1x8x256xf32> to vector<8x256xf32>
    %643 = vector.shape_cast %639 : vector<8x256xf32> to vector<1x8x256xf32>
    tpu.vector_store %arg14[%640, %c0_260, %c0_261], %643 {strides = array<i32>} : memref<16x8x256xf32, #tpu.memory_space<vmem>>, vector<1x8x256xf32>,
    %c12_i32 = arith.constant 12 : i32
    %644 = arith.index_cast %c12_i32 : i32 to index
    %c0_262 = arith.constant 0 : index
    %c0_263 = arith.constant 0 : index
    %645 = vector.load %arg2[%644, %c0_262, %c0_263] : memref<16x8x256xf32, #tpu.memory_space<vmem>>, vector<1x8x256xf32>
    %646 = vector.shape_cast %645 : vector<1x8x256xf32> to vector<8x256xf32>
    %cst_264 = arith.constant 0.000000e+00 : f32
    %647 = vector.broadcast %cst_264 : f32 to vector<8x256xf32>
    %648 = arith.cmpf ole, %631, %647 : vector<8x256xf32>
    %cst_265 = arith.constant -6.200000e+01 : f32
    %649 = vector.broadcast %cst_265 : f32 to vector<8x256xf32>
    %650 = arith.addf %646, %649 : vector<8x256xf32>
    %651 = arith.subf %650, %633 : vector<8x256xf32>
    %cst_266 = arith.constant -6.000000e+01 : f32
    %652 = vector.broadcast %cst_266 : f32 to vector<8x256xf32>
    %653 = arith.subf %633, %652 : vector<8x256xf32>
    %cst_267 = arith.constant 1.000000e+00 : f32
    %654 = vector.broadcast %cst_267 : f32 to vector<8x256xf32>
    %655 = arith.mulf %653, %654 : vector<8x256xf32>
    %656 = math.exp %655 : vector<8x256xf32>
    %cst_268 = arith.constant 1.000000e+00 : f32
    %657 = vector.broadcast %cst_268 : f32 to vector<8x256xf32>
    %658 = arith.mulf %657, %656 : vector<8x256xf32>
    %659 = arith.addf %651, %658 : vector<8x256xf32>
    %cst_269 = arith.constant 1.000000e-03 : f32
    %660 = vector.broadcast %cst_269 : f32 to vector<8x256xf32>
    %661 = arith.mulf %660, %625 : vector<8x256xf32>
    %662 = arith.subf %659, %661 : vector<8x256xf32>
    %cst_270 = arith.constant 0.00999999977 : f32
    %663 = vector.broadcast %cst_270 : f32 to vector<8x256xf32>
    %664 = arith.mulf %662, %663 : vector<8x256xf32>
    %665 = arith.addf %633, %664 : vector<8x256xf32>
    %cst_271 = arith.constant -6.200000e+01 : f32
    %666 = vector.broadcast %cst_271 : f32 to vector<8x256xf32>
    %667 = arith.subf %665, %666 : vector<8x256xf32>
    %cst_272 = arith.constant 1.000000e+00 : f32
    %668 = vector.broadcast %cst_272 : f32 to vector<8x256xf32>
    %669 = arith.mulf %668, %667 : vector<8x256xf32>
    %670 = arith.subf %669, %625 : vector<8x256xf32>
    %cst_273 = arith.constant 2.500000e-02 : f32
    %671 = vector.broadcast %cst_273 : f32 to vector<8x256xf32>
    %672 = arith.mulf %670, %671 : vector<8x256xf32>
    %673 = arith.addf %625, %672 : vector<8x256xf32>
    %cst_274 = arith.constant 2.000000e-01 : f32
    %674 = vector.broadcast %cst_274 : f32 to vector<8x256xf32>
    %675 = arith.mulf %674, %639 : vector<8x256xf32>
    %676 = arith.addf %673, %675 : vector<8x256xf32>
    %677 = arith.select %648, %665, %633 : vector<8x256xi1>, vector<8x256xf32>
    %678 = arith.select %648, %676, %625 : vector<8x256xi1>, vector<8x256xf32>
    %cst_275 = arith.constant -5.200000e+01 : f32
    %679 = vector.broadcast %cst_275 : f32 to vector<8x256xf32>
    %680 = arith.cmpf oge, %677, %679 : vector<8x256xf32>
    %cst_276 = arith.constant 1.000000e-01 : f32
    %681 = vector.broadcast %cst_276 : f32 to vector<8x256xf32>
    %682 = arith.subf %631, %681 : vector<8x256xf32>
    %cst_277 = arith.constant 5.000000e+00 : f32
    %683 = vector.broadcast %cst_277 : f32 to vector<8x256xf32>
    %684 = arith.select %680, %683, %682 : vector<8x256xi1>, vector<8x256xf32>
    %cst_278 = arith.constant -6.200000e+01 : f32
    %685 = vector.broadcast %cst_278 : f32 to vector<8x256xf32>
    %686 = arith.select %680, %685, %677 : vector<8x256xi1>, vector<8x256xf32>
    %cst_279 = arith.constant 0.990049839 : f32
    %687 = vector.broadcast %cst_279 : f32 to vector<8x256xf32>
    %688 = arith.mulf %637, %687 : vector<8x256xf32>
    %cst_280 = arith.constant 1.000000e+00 : f32
    %689 = vector.broadcast %cst_280 : f32 to vector<8x256xf32>
    %690 = arith.select %680, %689, %688 : vector<8x256xi1>, vector<8x256xf32>
    %691 = arith.extui %680 : vector<8x256xi1> to vector<8x256xi32>
    %692 = arith.sitofp %691 : vector<8x256xi32> to vector<8x256xf32>
    %693 = arith.index_cast %c12_i32 : i32 to index
    %c0_281 = arith.constant 0 : index
    %c0_282 = arith.constant 0 : index
    %694 = vector.load %arg14[%693, %c0_281, %c0_282] : memref<16x8x256xf32, #tpu.memory_space<vmem>>, vector<1x8x256xf32>
    %695 = vector.shape_cast %694 : vector<1x8x256xf32> to vector<8x256xf32>
    %696 = vector.shape_cast %692 : vector<8x256xf32> to vector<1x8x256xf32>
    tpu.vector_store %arg14[%693, %c0_281, %c0_282], %696 {strides = array<i32>} : memref<16x8x256xf32, #tpu.memory_space<vmem>>, vector<1x8x256xf32>,
    %c13_i32 = arith.constant 13 : i32
    %697 = arith.index_cast %c13_i32 : i32 to index
    %c0_283 = arith.constant 0 : index
    %c0_284 = arith.constant 0 : index
    %698 = vector.load %arg2[%697, %c0_283, %c0_284] : memref<16x8x256xf32, #tpu.memory_space<vmem>>, vector<1x8x256xf32>
    %699 = vector.shape_cast %698 : vector<1x8x256xf32> to vector<8x256xf32>
    %cst_285 = arith.constant 0.000000e+00 : f32
    %700 = vector.broadcast %cst_285 : f32 to vector<8x256xf32>
    %701 = arith.cmpf ole, %684, %700 : vector<8x256xf32>
    %cst_286 = arith.constant -6.200000e+01 : f32
    %702 = vector.broadcast %cst_286 : f32 to vector<8x256xf32>
    %703 = arith.addf %699, %702 : vector<8x256xf32>
    %704 = arith.subf %703, %686 : vector<8x256xf32>
    %cst_287 = arith.constant -6.000000e+01 : f32
    %705 = vector.broadcast %cst_287 : f32 to vector<8x256xf32>
    %706 = arith.subf %686, %705 : vector<8x256xf32>
    %cst_288 = arith.constant 1.000000e+00 : f32
    %707 = vector.broadcast %cst_288 : f32 to vector<8x256xf32>
    %708 = arith.mulf %706, %707 : vector<8x256xf32>
    %709 = math.exp %708 : vector<8x256xf32>
    %cst_289 = arith.constant 1.000000e+00 : f32
    %710 = vector.broadcast %cst_289 : f32 to vector<8x256xf32>
    %711 = arith.mulf %710, %709 : vector<8x256xf32>
    %712 = arith.addf %704, %711 : vector<8x256xf32>
    %cst_290 = arith.constant 1.000000e-03 : f32
    %713 = vector.broadcast %cst_290 : f32 to vector<8x256xf32>
    %714 = arith.mulf %713, %678 : vector<8x256xf32>
    %715 = arith.subf %712, %714 : vector<8x256xf32>
    %cst_291 = arith.constant 0.00999999977 : f32
    %716 = vector.broadcast %cst_291 : f32 to vector<8x256xf32>
    %717 = arith.mulf %715, %716 : vector<8x256xf32>
    %718 = arith.addf %686, %717 : vector<8x256xf32>
    %cst_292 = arith.constant -6.200000e+01 : f32
    %719 = vector.broadcast %cst_292 : f32 to vector<8x256xf32>
    %720 = arith.subf %718, %719 : vector<8x256xf32>
    %cst_293 = arith.constant 1.000000e+00 : f32
    %721 = vector.broadcast %cst_293 : f32 to vector<8x256xf32>
    %722 = arith.mulf %721, %720 : vector<8x256xf32>
    %723 = arith.subf %722, %678 : vector<8x256xf32>
    %cst_294 = arith.constant 2.500000e-02 : f32
    %724 = vector.broadcast %cst_294 : f32 to vector<8x256xf32>
    %725 = arith.mulf %723, %724 : vector<8x256xf32>
    %726 = arith.addf %678, %725 : vector<8x256xf32>
    %cst_295 = arith.constant 2.000000e-01 : f32
    %727 = vector.broadcast %cst_295 : f32 to vector<8x256xf32>
    %728 = arith.mulf %727, %692 : vector<8x256xf32>
    %729 = arith.addf %726, %728 : vector<8x256xf32>
    %730 = arith.select %701, %718, %686 : vector<8x256xi1>, vector<8x256xf32>
    %731 = arith.select %701, %729, %678 : vector<8x256xi1>, vector<8x256xf32>
    %cst_296 = arith.constant -5.200000e+01 : f32
    %732 = vector.broadcast %cst_296 : f32 to vector<8x256xf32>
    %733 = arith.cmpf oge, %730, %732 : vector<8x256xf32>
    %cst_297 = arith.constant 1.000000e-01 : f32
    %734 = vector.broadcast %cst_297 : f32 to vector<8x256xf32>
    %735 = arith.subf %684, %734 : vector<8x256xf32>
    %cst_298 = arith.constant 5.000000e+00 : f32
    %736 = vector.broadcast %cst_298 : f32 to vector<8x256xf32>
    %737 = arith.select %733, %736, %735 : vector<8x256xi1>, vector<8x256xf32>
    %cst_299 = arith.constant -6.200000e+01 : f32
    %738 = vector.broadcast %cst_299 : f32 to vector<8x256xf32>
    %739 = arith.select %733, %738, %730 : vector<8x256xi1>, vector<8x256xf32>
    %cst_300 = arith.constant 0.990049839 : f32
    %740 = vector.broadcast %cst_300 : f32 to vector<8x256xf32>
    %741 = arith.mulf %690, %740 : vector<8x256xf32>
    %cst_301 = arith.constant 1.000000e+00 : f32
    %742 = vector.broadcast %cst_301 : f32 to vector<8x256xf32>
    %743 = arith.select %733, %742, %741 : vector<8x256xi1>, vector<8x256xf32>
    %744 = arith.extui %733 : vector<8x256xi1> to vector<8x256xi32>
    %745 = arith.sitofp %744 : vector<8x256xi32> to vector<8x256xf32>
    %746 = arith.index_cast %c13_i32 : i32 to index
    %c0_302 = arith.constant 0 : index
    %c0_303 = arith.constant 0 : index
    %747 = vector.load %arg14[%746, %c0_302, %c0_303] : memref<16x8x256xf32, #tpu.memory_space<vmem>>, vector<1x8x256xf32>
    %748 = vector.shape_cast %747 : vector<1x8x256xf32> to vector<8x256xf32>
    %749 = vector.shape_cast %745 : vector<8x256xf32> to vector<1x8x256xf32>
    tpu.vector_store %arg14[%746, %c0_302, %c0_303], %749 {strides = array<i32>} : memref<16x8x256xf32, #tpu.memory_space<vmem>>, vector<1x8x256xf32>,
    %c14_i32 = arith.constant 14 : i32
    %750 = arith.index_cast %c14_i32 : i32 to index
    %c0_304 = arith.constant 0 : index
    %c0_305 = arith.constant 0 : index
    %751 = vector.load %arg2[%750, %c0_304, %c0_305] : memref<16x8x256xf32, #tpu.memory_space<vmem>>, vector<1x8x256xf32>
    %752 = vector.shape_cast %751 : vector<1x8x256xf32> to vector<8x256xf32>
    %cst_306 = arith.constant 0.000000e+00 : f32
    %753 = vector.broadcast %cst_306 : f32 to vector<8x256xf32>
    %754 = arith.cmpf ole, %737, %753 : vector<8x256xf32>
    %cst_307 = arith.constant -6.200000e+01 : f32
    %755 = vector.broadcast %cst_307 : f32 to vector<8x256xf32>
    %756 = arith.addf %752, %755 : vector<8x256xf32>
    %757 = arith.subf %756, %739 : vector<8x256xf32>
    %cst_308 = arith.constant -6.000000e+01 : f32
    %758 = vector.broadcast %cst_308 : f32 to vector<8x256xf32>
    %759 = arith.subf %739, %758 : vector<8x256xf32>
    %cst_309 = arith.constant 1.000000e+00 : f32
    %760 = vector.broadcast %cst_309 : f32 to vector<8x256xf32>
    %761 = arith.mulf %759, %760 : vector<8x256xf32>
    %762 = math.exp %761 : vector<8x256xf32>
    %cst_310 = arith.constant 1.000000e+00 : f32
    %763 = vector.broadcast %cst_310 : f32 to vector<8x256xf32>
    %764 = arith.mulf %763, %762 : vector<8x256xf32>
    %765 = arith.addf %757, %764 : vector<8x256xf32>
    %cst_311 = arith.constant 1.000000e-03 : f32
    %766 = vector.broadcast %cst_311 : f32 to vector<8x256xf32>
    %767 = arith.mulf %766, %731 : vector<8x256xf32>
    %768 = arith.subf %765, %767 : vector<8x256xf32>
    %cst_312 = arith.constant 0.00999999977 : f32
    %769 = vector.broadcast %cst_312 : f32 to vector<8x256xf32>
    %770 = arith.mulf %768, %769 : vector<8x256xf32>
    %771 = arith.addf %739, %770 : vector<8x256xf32>
    %cst_313 = arith.constant -6.200000e+01 : f32
    %772 = vector.broadcast %cst_313 : f32 to vector<8x256xf32>
    %773 = arith.subf %771, %772 : vector<8x256xf32>
    %cst_314 = arith.constant 1.000000e+00 : f32
    %774 = vector.broadcast %cst_314 : f32 to vector<8x256xf32>
    %775 = arith.mulf %774, %773 : vector<8x256xf32>
    %776 = arith.subf %775, %731 : vector<8x256xf32>
    %cst_315 = arith.constant 2.500000e-02 : f32
    %777 = vector.broadcast %cst_315 : f32 to vector<8x256xf32>
    %778 = arith.mulf %776, %777 : vector<8x256xf32>
    %779 = arith.addf %731, %778 : vector<8x256xf32>
    %cst_316 = arith.constant 2.000000e-01 : f32
    %780 = vector.broadcast %cst_316 : f32 to vector<8x256xf32>
    %781 = arith.mulf %780, %745 : vector<8x256xf32>
    %782 = arith.addf %779, %781 : vector<8x256xf32>
    %783 = arith.select %754, %771, %739 : vector<8x256xi1>, vector<8x256xf32>
    %784 = arith.select %754, %782, %731 : vector<8x256xi1>, vector<8x256xf32>
    %cst_317 = arith.constant -5.200000e+01 : f32
    %785 = vector.broadcast %cst_317 : f32 to vector<8x256xf32>
    %786 = arith.cmpf oge, %783, %785 : vector<8x256xf32>
    %cst_318 = arith.constant 1.000000e-01 : f32
    %787 = vector.broadcast %cst_318 : f32 to vector<8x256xf32>
    %788 = arith.subf %737, %787 : vector<8x256xf32>
    %cst_319 = arith.constant 5.000000e+00 : f32
    %789 = vector.broadcast %cst_319 : f32 to vector<8x256xf32>
    %790 = arith.select %786, %789, %788 : vector<8x256xi1>, vector<8x256xf32>
    %cst_320 = arith.constant -6.200000e+01 : f32
    %791 = vector.broadcast %cst_320 : f32 to vector<8x256xf32>
    %792 = arith.select %786, %791, %783 : vector<8x256xi1>, vector<8x256xf32>
    %cst_321 = arith.constant 0.990049839 : f32
    %793 = vector.broadcast %cst_321 : f32 to vector<8x256xf32>
    %794 = arith.mulf %743, %793 : vector<8x256xf32>
    %cst_322 = arith.constant 1.000000e+00 : f32
    %795 = vector.broadcast %cst_322 : f32 to vector<8x256xf32>
    %796 = arith.select %786, %795, %794 : vector<8x256xi1>, vector<8x256xf32>
    %797 = arith.extui %786 : vector<8x256xi1> to vector<8x256xi32>
    %798 = arith.sitofp %797 : vector<8x256xi32> to vector<8x256xf32>
    %799 = arith.index_cast %c14_i32 : i32 to index
    %c0_323 = arith.constant 0 : index
    %c0_324 = arith.constant 0 : index
    %800 = vector.load %arg14[%799, %c0_323, %c0_324] : memref<16x8x256xf32, #tpu.memory_space<vmem>>, vector<1x8x256xf32>
    %801 = vector.shape_cast %800 : vector<1x8x256xf32> to vector<8x256xf32>
    %802 = vector.shape_cast %798 : vector<8x256xf32> to vector<1x8x256xf32>
    tpu.vector_store %arg14[%799, %c0_323, %c0_324], %802 {strides = array<i32>} : memref<16x8x256xf32, #tpu.memory_space<vmem>>, vector<1x8x256xf32>,
    %c15_i32 = arith.constant 15 : i32
    %803 = arith.index_cast %c15_i32 : i32 to index
    %c0_325 = arith.constant 0 : index
    %c0_326 = arith.constant 0 : index
    %804 = vector.load %arg2[%803, %c0_325, %c0_326] : memref<16x8x256xf32, #tpu.memory_space<vmem>>, vector<1x8x256xf32>
    %805 = vector.shape_cast %804 : vector<1x8x256xf32> to vector<8x256xf32>
    %cst_327 = arith.constant 0.000000e+00 : f32
    %806 = vector.broadcast %cst_327 : f32 to vector<8x256xf32>
    %807 = arith.cmpf ole, %790, %806 : vector<8x256xf32>
    %cst_328 = arith.constant -6.200000e+01 : f32
    %808 = vector.broadcast %cst_328 : f32 to vector<8x256xf32>
    %809 = arith.addf %805, %808 : vector<8x256xf32>
    %810 = arith.subf %809, %792 : vector<8x256xf32>
    %cst_329 = arith.constant -6.000000e+01 : f32
    %811 = vector.broadcast %cst_329 : f32 to vector<8x256xf32>
    %812 = arith.subf %792, %811 : vector<8x256xf32>
    %cst_330 = arith.constant 1.000000e+00 : f32
    %813 = vector.broadcast %cst_330 : f32 to vector<8x256xf32>
    %814 = arith.mulf %812, %813 : vector<8x256xf32>
    %815 = math.exp %814 : vector<8x256xf32>
    %cst_331 = arith.constant 1.000000e+00 : f32
    %816 = vector.broadcast %cst_331 : f32 to vector<8x256xf32>
    %817 = arith.mulf %816, %815 : vector<8x256xf32>
    %818 = arith.addf %810, %817 : vector<8x256xf32>
    %cst_332 = arith.constant 1.000000e-03 : f32
    %819 = vector.broadcast %cst_332 : f32 to vector<8x256xf32>
    %820 = arith.mulf %819, %784 : vector<8x256xf32>
    %821 = arith.subf %818, %820 : vector<8x256xf32>
    %cst_333 = arith.constant 0.00999999977 : f32
    %822 = vector.broadcast %cst_333 : f32 to vector<8x256xf32>
    %823 = arith.mulf %821, %822 : vector<8x256xf32>
    %824 = arith.addf %792, %823 : vector<8x256xf32>
    %cst_334 = arith.constant -6.200000e+01 : f32
    %825 = vector.broadcast %cst_334 : f32 to vector<8x256xf32>
    %826 = arith.subf %824, %825 : vector<8x256xf32>
    %cst_335 = arith.constant 1.000000e+00 : f32
    %827 = vector.broadcast %cst_335 : f32 to vector<8x256xf32>
    %828 = arith.mulf %827, %826 : vector<8x256xf32>
    %829 = arith.subf %828, %784 : vector<8x256xf32>
    %cst_336 = arith.constant 2.500000e-02 : f32
    %830 = vector.broadcast %cst_336 : f32 to vector<8x256xf32>
    %831 = arith.mulf %829, %830 : vector<8x256xf32>
    %832 = arith.addf %784, %831 : vector<8x256xf32>
    %cst_337 = arith.constant 2.000000e-01 : f32
    %833 = vector.broadcast %cst_337 : f32 to vector<8x256xf32>
    %834 = arith.mulf %833, %798 : vector<8x256xf32>
    %835 = arith.addf %832, %834 : vector<8x256xf32>
    %836 = arith.select %807, %824, %792 : vector<8x256xi1>, vector<8x256xf32>
    %837 = arith.select %807, %835, %784 : vector<8x256xi1>, vector<8x256xf32>
    %cst_338 = arith.constant -5.200000e+01 : f32
    %838 = vector.broadcast %cst_338 : f32 to vector<8x256xf32>
    %839 = arith.cmpf oge, %836, %838 : vector<8x256xf32>
    %cst_339 = arith.constant 1.000000e-01 : f32
    %840 = vector.broadcast %cst_339 : f32 to vector<8x256xf32>
    %841 = arith.subf %790, %840 : vector<8x256xf32>
    %cst_340 = arith.constant 5.000000e+00 : f32
    %842 = vector.broadcast %cst_340 : f32 to vector<8x256xf32>
    %843 = arith.select %839, %842, %841 : vector<8x256xi1>, vector<8x256xf32>
    %cst_341 = arith.constant -6.200000e+01 : f32
    %844 = vector.broadcast %cst_341 : f32 to vector<8x256xf32>
    %845 = arith.select %839, %844, %836 : vector<8x256xi1>, vector<8x256xf32>
    %cst_342 = arith.constant 0.990049839 : f32
    %846 = vector.broadcast %cst_342 : f32 to vector<8x256xf32>
    %847 = arith.mulf %796, %846 : vector<8x256xf32>
    %cst_343 = arith.constant 1.000000e+00 : f32
    %848 = vector.broadcast %cst_343 : f32 to vector<8x256xf32>
    %849 = arith.select %839, %848, %847 : vector<8x256xi1>, vector<8x256xf32>
    %850 = arith.extui %839 : vector<8x256xi1> to vector<8x256xi32>
    %851 = arith.sitofp %850 : vector<8x256xi32> to vector<8x256xf32>
    %852 = arith.index_cast %c15_i32 : i32 to index
    %c0_344 = arith.constant 0 : index
    %c0_345 = arith.constant 0 : index
    %853 = vector.load %arg14[%852, %c0_344, %c0_345] : memref<16x8x256xf32, #tpu.memory_space<vmem>>, vector<1x8x256xf32>
    %854 = vector.shape_cast %853 : vector<1x8x256xf32> to vector<8x256xf32>
    %855 = vector.shape_cast %851 : vector<8x256xf32> to vector<1x8x256xf32>
    tpu.vector_store %arg14[%852, %c0_344, %c0_345], %855 {strides = array<i32>} : memref<16x8x256xf32, #tpu.memory_space<vmem>>, vector<1x8x256xf32>,
    %c16_i32 = arith.constant 16 : i32
    %c0_346 = arith.constant 0 : index
    %c0_347 = arith.constant 0 : index
    %856 = vector.load %arg8[%c0_346, %c0_347] : memref<8x256xf32, #tpu.memory_space<vmem>>, vector<8x256xf32>
    tpu.vector_store %arg8[%c0_346, %c0_347], %845 {strides = array<i32>} : memref<8x256xf32, #tpu.memory_space<vmem>>, vector<8x256xf32>,
    %c0_348 = arith.constant 0 : index
    %c0_349 = arith.constant 0 : index
    %857 = vector.load %arg9[%c0_348, %c0_349] : memref<8x256xf32, #tpu.memory_space<vmem>>, vector<8x256xf32>
    tpu.vector_store %arg9[%c0_348, %c0_349], %837 {strides = array<i32>} : memref<8x256xf32, #tpu.memory_space<vmem>>, vector<8x256xf32>,
    %c0_350 = arith.constant 0 : index
    %c0_351 = arith.constant 0 : index
    %858 = vector.load %arg10[%c0_350, %c0_351] : memref<8x256xf32, #tpu.memory_space<vmem>>, vector<8x256xf32>
    tpu.vector_store %arg10[%c0_350, %c0_351], %843 {strides = array<i32>} : memref<8x256xf32, #tpu.memory_space<vmem>>, vector<8x256xf32>,
    %c0_352 = arith.constant 0 : index
    %c0_353 = arith.constant 0 : index
    %859 = vector.load %arg11[%c0_352, %c0_353] : memref<8x256xf32, #tpu.memory_space<vmem>>, vector<8x256xf32>
    tpu.vector_store %arg11[%c0_352, %c0_353], %851 {strides = array<i32>} : memref<8x256xf32, #tpu.memory_space<vmem>>, vector<8x256xf32>,
    %c0_354 = arith.constant 0 : index
    %c0_355 = arith.constant 0 : index
    %860 = vector.load %arg12[%c0_354, %c0_355] : memref<8x256xf32, #tpu.memory_space<vmem>>, vector<8x256xf32>
    tpu.vector_store %arg12[%c0_354, %c0_355], %849 {strides = array<i32>} : memref<8x256xf32, #tpu.memory_space<vmem>>, vector<8x256xf32>,
    %c0_356 = arith.constant 0 : index
    %c0_357 = arith.constant 0 : index
    %c0_358 = arith.constant 0 : index
    %861 = vector.load %arg14[%c0_356, %c0_357, %c0_358] : memref<16x8x256xf32, #tpu.memory_space<vmem>>, vector<16x8x256xf32>
    %862 = arith.truncf %861 : vector<16x8x256xf32> to vector<16x8x256xbf16>
    %c0_359 = arith.constant 0 : index
    %c0_360 = arith.constant 0 : index
    %c0_361 = arith.constant 0 : index
    %863 = vector.load %arg13[%c0_359, %c0_360, %c0_361] : memref<16x8x256xbf16, #tpu.memory_space<vmem>>, vector<16x8x256xbf16>
    tpu.vector_store %arg13[%c0_359, %c0_360, %c0_361], %862 {strides = array<i32>} : memref<16x8x256xbf16, #tpu.memory_space<vmem>>, vector<16x8x256xbf16>,
    return
  }
  func.func @transform_0(%arg0: i32, %arg1: i32) -> (i32, i32, i32) {
    %c0_i32 = arith.constant 0 : i32
    %c0_i32_0 = arith.constant 0 : i32
    return %arg1, %c0_i32, %arg0 : i32, i32, i32
  }
  func.func @transform_1(%arg0: i32, %arg1: i32) -> (i32, i32) {
    %c0_i32 = arith.constant 0 : i32
    %c0_i32_0 = arith.constant 0 : i32
    return %c0_i32, %arg0 : i32, i32
  }
  func.func @transform_2(%arg0: i32, %arg1: i32) -> (i32, i32) {
    %c0_i32 = arith.constant 0 : i32
    %c0_i32_0 = arith.constant 0 : i32
    return %c0_i32, %arg0 : i32, i32
  }
  func.func @transform_3(%arg0: i32, %arg1: i32) -> (i32, i32) {
    %c0_i32 = arith.constant 0 : i32
    %c0_i32_0 = arith.constant 0 : i32
    return %c0_i32, %arg0 : i32, i32
  }
  func.func @transform_4(%arg0: i32, %arg1: i32) -> (i32, i32) {
    %c0_i32 = arith.constant 0 : i32
    %c0_i32_0 = arith.constant 0 : i32
    return %c0_i32, %arg0 : i32, i32
  }
  func.func @transform_5(%arg0: i32, %arg1: i32) -> (i32, i32) {
    %c0_i32 = arith.constant 0 : i32
    %c0_i32_0 = arith.constant 0 : i32
    return %c0_i32, %arg0 : i32, i32
  }
  func.func @transform_6(%arg0: i32, %arg1: i32) -> (i32, i32) {
    %c0_i32 = arith.constant 0 : i32
    %c0_i32_0 = arith.constant 0 : i32
    return %c0_i32, %arg0 : i32, i32
  }
  func.func @transform_7(%arg0: i32, %arg1: i32) -> (i32, i32) {
    %c0_i32 = arith.constant 0 : i32
    %c0_i32_0 = arith.constant 0 : i32
    return %c0_i32, %arg0 : i32, i32
  }
  func.func @transform_8(%arg0: i32, %arg1: i32) -> (i32, i32) {
    %c0_i32 = arith.constant 0 : i32
    %c0_i32_0 = arith.constant 0 : i32
    return %c0_i32, %arg0 : i32, i32
  }
  func.func @transform_9(%arg0: i32, %arg1: i32) -> (i32, i32) {
    %c0_i32 = arith.constant 0 : i32
    %c0_i32_0 = arith.constant 0 : i32
    return %c0_i32, %arg0 : i32, i32
  }
  func.func @transform_10(%arg0: i32, %arg1: i32) -> (i32, i32) {
    %c0_i32 = arith.constant 0 : i32
    %c0_i32_0 = arith.constant 0 : i32
    return %c0_i32, %arg0 : i32, i32
  }
  func.func @transform_11(%arg0: i32, %arg1: i32) -> (i32, i32, i32) {
    %c0_i32 = arith.constant 0 : i32
    %c0_i32_0 = arith.constant 0 : i32
    return %arg1, %c0_i32, %arg0 : i32, i32, i32
  }
}

</mosaic_0001>

<llo_original>
// kernel: aelif_run.1
$region0: #{aelif_run.1}
  #allocation0 [shape = 'u32[]', space=smem, size = 0x4, offset = 0x4, fixed_abs, tag = 'smem constant byte address 0x4 - core index']
  #allocation1 [shape = 'u32[144,128]{1,0:T(1,128)}', space=vmem, size = 0x12000, scoped, tag = 'internal scratch']
  #allocation2 [shape = 'f32[16,8,256]{2,1,0:T(8,128)}', space=vmem, size = 0x20000, scoped, tag = 'scratch operand']
  %s0 = inlined_call_operand.hbm [shape: f32[32,8,512], index: 0, kind: input, shape index: {}]
  %s1 = inlined_call_operand.hbm [shape: f32[8,512], index: 1, kind: input, shape index: {}, may-alias: {1,6}]
  %s2 = inlined_call_operand.hbm [shape: f32[8,512], index: 2, kind: input, shape index: {}, may-alias: {2,7}]
  %s3 = inlined_call_operand.hbm [shape: f32[8,512], index: 3, kind: input, shape index: {}, may-alias: {3,8}]
  %s4 = inlined_call_operand.hbm [shape: f32[8,512], index: 4, kind: input, shape index: {}, may-alias: {4,9}]
  %s5 = inlined_call_operand.hbm [shape: f32[8,512], index: 5, kind: input, shape index: {}, may-alias: {5,10}]
  %s6 = inlined_call_operand.hbm [shape: f32[8,512], index: 6, kind: output, shape index: {0}, may-alias: {1,6}]
  %s7 = inlined_call_operand.hbm [shape: f32[8,512], index: 7, kind: output, shape index: {1}, may-alias: {2,7}]
  %s8 = inlined_call_operand.hbm [shape: f32[8,512], index: 8, kind: output, shape index: {2}, may-alias: {3,8}]
  %s9 = inlined_call_operand.hbm [shape: f32[8,512], index: 9, kind: output, shape index: {3}, may-alias: {4,9}]
  %s10 = inlined_call_operand.hbm [shape: f32[8,512], index: 10, kind: output, shape index: {4}, may-alias: {5,10}]
  %s11 = inlined_call_operand.hbm [shape: bf16[32,8,512], index: 11, kind: output, shape index: {5}]
  %12 = xla_tuple %s6, %s7, %s8, %s9, %s10, %s11
  %s13 = sld [smem:[#allocation0]]
  $region125: #{aelif_run.1} parent=0
    _
  %s15 = ssub.s32 1, %s13
  %s16 = scalar_select 0, %s15, %s13
  $region1: #{aelif_run.1} parent=0
    #allocation3 [shape = 'u8[262144]{0}', space=vmem, size = 0x40000, scoped, tag = 'input window, operand 0']
    #allocation4 [shape = 's32[2]{0}', space=sflag, size = 0x8, scoped, tag = 'scoped memory for aelif_run.1']
    #allocation5 [shape = 's32[2]{0}', space=sflag, size = 0x8, scoped, tag = 'scoped memory for aelif_run.1']
    #allocation6 [shape = 'u8[16384]{0}', space=vmem, size = 0x4000, scoped, tag = 'input window, operand 1']
    #allocation7 [shape = 's32[2]{0}', space=sflag, size = 0x8, scoped, tag = 'scoped memory for aelif_run.1']
    #allocation8 [shape = 'u8[16384]{0}', space=vmem, size = 0x4000, scoped, tag = 'input window, operand 2']
    #allocation9 [shape = 'u8[16384]{0}', space=vmem, size = 0x4000, scoped, tag = 'input window, operand 3']
    #allocation10 [shape = 's32[2]{0}', space=sflag, size = 0x8, scoped, tag = 'scoped memory for aelif_run.1']
    #allocation11 [shape = 'u8[16384]{0}', space=vmem, size = 0x4000, scoped, tag = 'input window, operand 4']
    #allocation12 [shape = 'u8[16384]{0}', space=vmem, size = 0x4000, scoped, tag = 'input window, operand 5']
    #allocation13 [shape = 's32[2]{0}', space=sflag, size = 0x8, scoped, tag = 'scoped memory for aelif_run.1']
    #allocation14 [shape = 'u8[16384]{0}', space=vmem, size = 0x4000, scoped, tag = 'output window, operand 0']
    #allocation15 [shape = 'u8[16384]{0}', space=vmem, size = 0x4000, scoped, tag = 'output window, operand 1']
    #allocation16 [shape = 's32[2]{0}', space=sflag, size = 0x8, scoped, tag = 'scoped memory for aelif_run.1']
    #allocation17 [shape = 'u8[16384]{0}', space=vmem, size = 0x4000, scoped, tag = 'output window, operand 2']
    #allocation18 [shape = 'u8[16384]{0}', space=vmem, size = 0x4000, scoped, tag = 'output window, operand 3']
    #allocation19 [shape = 's32[2]{0}', space=sflag, size = 0x8, scoped, tag = 'scoped memory for aelif_run.1']
    #allocation20 [shape = 'u8[16384]{0}', space=vmem, size = 0x4000, scoped, tag = 'output window, operand 4']
    #allocation21 [shape = 'u8[131072]{0}', space=vmem, size = 0x20000, scoped, tag = 'output window, operand 5']
    #allocation22 [shape = 's32[2]{0}', space=sflag, size = 0x8, scoped, tag = 'scoped memory for aelif_run.1']
    %17 = vsyncpa [#allocation4], 0
    %s18 = scalar_lea.sflag [#allocation4], 1
    %19 = vsyncpa %s18, 0
    %20 = vsyncpa [#allocation7], 0
    %s21 = scalar_lea.sflag [#allocation7], 1
    %22 = vsyncpa %s21, 0
    %23 = vsyncpa [#allocation10], 0
    %s24 = scalar_lea.sflag [#allocation10], 1
    %25 = vsyncpa %s24, 0
    %26 = vsyncpa [#allocation13], 0
    %s27 = scalar_lea.sflag [#allocation13], 1
    %28 = vsyncpa %s27, 0
    %29 = vsyncpa [#allocation5], 0
    %s30 = scalar_lea.sflag [#allocation5], 1
    %31 = vsyncpa %s30, 0
    %32 = vsyncpa [#allocation16], 0
    %s33 = scalar_lea.sflag [#allocation16], 1
    %34 = vsyncpa %s33, 0
    %35 = vsyncpa [#allocation19], 0
    %s36 = scalar_lea.sflag [#allocation19], 1
    %37 = vsyncpa %s36, 0
    %38 = vsyncpa [#allocation22], 0
    %s39 = scalar_lea.sflag [#allocation22], 1
    %40 = vsyncpa %s39, 0
    loop: start=0, step=1, limit=6
    $region2: #{aelif_run.1} parent=1 // loop_pre_header
      _
    $region3: #{aelif_run.1} parent=1 // loop_header
      %s42 = sphi 0, %s46
      %p43 = scmp.ge.s32.totalorder %s42, 6
      %s49 = sphi 0, %s61
      %s50 = sphi 0, %s57
      %s51 = sphi 0, %s49
      %s52 = sphi 0, %s50
      %s53 = sphi 0, %s51
      %s54 = sphi 0, %s52
      %s66 = sphi 0, %s68
      %s69 = sphi 0, %s66
      %s70 = sphi 0, %s69
      %s86 = sphi 0, %s70
      %s92 = sphi 0, %s94
      %s95 = sphi 0, %s92
      %s96 = sphi 0, %s95
      %s112 = sphi 0, %s96
      %s118 = sphi 0, %s120
      %s121 = sphi 0, %s118
      %s122 = sphi 0, %s121
      %s138 = sphi 0, %s122
      %s144 = sphi 0, %s146
      %s147 = sphi 0, %s144
      %s148 = sphi 0, %s147
      %s164 = sphi 0, %s148
      %s170 = sphi 0, %s172
      %s173 = sphi 0, %s170
      %s174 = sphi 0, %s173
      %s190 = sphi 0, %s174
      %s196 = sphi 0, %s198
      %s199 = sphi 0, %s196
      %s200 = sphi 0, %s199
      %s216 = sphi 0, %s200
      %s222 = sphi 0, %s224
      %s225 = sphi 0, %s222
      %s226 = sphi 0, %s225
      %s242 = sphi 0, %s226
      %s248 = sphi 0, %s250
      %s251 = sphi 0, %s248
      %s252 = sphi 0, %s251
      %s268 = sphi 0, %s252
      %s274 = sphi 0, %s276
      %s277 = sphi 0, %s274
      %s278 = sphi 0, %s277
      %s294 = sphi 0, %s278
      %s300 = sphi 0, %s302
      %s303 = sphi 0, %s300
      %s304 = sphi 0, %s303
      %s320 = sphi 0, %s304
      %s326 = sphi 0, %s328
      %s329 = sphi 0, %s326
      %s330 = sphi 0, %s329
      %s346 = sphi 0, %s330
      %s354 = sphi 0, %s356
      %s357 = sphi 0, %s354
      %s358 = sphi 0, %s357
      %s374 = sphi 0, %s358
    $region4: #{aelif_run.1} parent=1 // loop_header_branch
      %45 = sbr.rel (%p43) target = $region8
    $region5: #{aelif_run.1} parent=1 // loop_body
      %s47 = ssub.s32 %s42, 1
      %s48 = ssub.s32 %s42, 2
      %s55 = sadd.s32 1, %s50
      %p56 = scmp.ge.s32.totalorder %s55, 2
      %s57 = scalar_select %p56, 0, %s55
      %s58 = sadd.s32 1, %s49
      %s59 = scalar_select %p56, %s58, %s49
      %p60 = scmp.ge.s32.totalorder %s59, 2
      %s61 = scalar_select %p60, 0, %s59
      %s62 = ssub.s32 %s50, %s57
      %s63 = ssub.s32 %s49, %s61
      %s64 = sor.u32 %s62, %s63
      %p65 = scmp.eq.s32.totalorder %s64, 0
      %s67 = sadd.s32 %s66, 1
      %s68 = scalar_select %p65, %s66, %s67
      %p71 = pneg %p65
      %p72 = scmp.eq.s32.totalorder %s42, 3
      %p73 = por %p71, %p72
      %p74 = scmp.ne.s32.totalorder %s66, %s69
      %p75 = scmp.eq.s32.totalorder %s42, 0
      %p76 = por %p74, %p75
      %p77 = scmp.ne.s32.totalorder %s66, %s69
      %p78 = scmp.eq.s32.totalorder %s47, 3
      %p79 = por %p77, %p78
      %p80 = scmp.ne.s32.totalorder %s69, %s70
      %p81 = scmp.eq.s32.totalorder %s47, 0
      %p82 = por %p80, %p81
      %p83 = scmp.ne.s32.totalorder %s69, %s70
      %p84 = scmp.eq.s32.totalorder %s48, 3
      %p85 = por %p83, %p84
      %p87 = scmp.ne.s32.totalorder %s70, %s86
      %p88 = scmp.eq.s32.totalorder %s48, 0
      %p89 = por %p87, %p88
      %s90 = ssub.s32 %s49, %s61
      %p91 = scmp.eq.s32.totalorder %s90, 0
      %s93 = sadd.s32 %s92, 1
      %s94 = scalar_select %p91, %s92, %s93
      %p97 = pneg %p91
      %p98 = scmp.eq.s32.totalorder %s42, 3
      %p99 = por %p97, %p98
      %p100 = scmp.ne.s32.totalorder %s92, %s95
      %p101 = scmp.eq.s32.totalorder %s42, 0
      %p102 = por %p100, %p101
      %p103 = scmp.ne.s32.totalorder %s92, %s95
      %p104 = scmp.eq.s32.totalorder %s47, 3
      %p105 = por %p103, %p104
      %p106 = scmp.ne.s32.totalorder %s95, %s96
      %p107 = scmp.eq.s32.totalorder %s47, 0
      %p108 = por %p106, %p107
      %p109 = scmp.ne.s32.totalorder %s95, %s96
      %p110 = scmp.eq.s32.totalorder %s48, 3
      %p111 = por %p109, %p110
      %p113 = scmp.ne.s32.totalorder %s96, %s112
      %p114 = scmp.eq.s32.totalorder %s48, 0
      %p115 = por %p113, %p114
      %s116 = ssub.s32 %s49, %s61
      %p117 = scmp.eq.s32.totalorder %s116, 0
      %s119 = sadd.s32 %s118, 1
      %s120 = scalar_select %p117, %s118, %s119
      %p123 = pneg %p117
      %p124 = scmp.eq.s32.totalorder %s42, 3
      %p125 = por %p123, %p124
      %p126 = scmp.ne.s32.totalorder %s118, %s121
      %p127 = scmp.eq.s32.totalorder %s42, 0
      %p128 = por %p126, %p127
      %p129 = scmp.ne.s32.totalorder %s118, %s121
      %p130 = scmp.eq.s32.totalorder %s47, 3
      %p131 = por %p129, %p130
      %p132 = scmp.ne.s32.totalorder %s121, %s122
      %p133 = scmp.eq.s32.totalorder %s47, 0
      %p134 = por %p132, %p133
      %p135 = scmp.ne.s32.totalorder %s121, %s122
      %p136 = scmp.eq.s32.totalorder %s48, 3
      %p137 = por %p135, %p136
      %p139 = scmp.ne.s32.totalorder %s122, %s138
      %p140 = scmp.eq.s32.totalorder %s48, 0
      %p141 = por %p139, %p140
      %s142 = ssub.s32 %s49, %s61
      %p143 = scmp.eq.s32.totalorder %s142, 0
      %s145 = sadd.s32 %s144, 1
      %s146 = scalar_select %p143, %s144, %s145
      %p149 = pneg %p143
      %p150 = scmp.eq.s32.totalorder %s42, 3
      %p151 = por %p149, %p150
      %p152 = scmp.ne.s32.totalorder %s144, %s147
      %p153 = scmp.eq.s32.totalorder %s42, 0
      %p154 = por %p152, %p153
      %p155 = scmp.ne.s32.totalorder %s144, %s147
      %p156 = scmp.eq.s32.totalorder %s47, 3
      %p157 = por %p155, %p156
      %p158 = scmp.ne.s32.totalorder %s147, %s148
      %p159 = scmp.eq.s32.totalorder %s47, 0
      %p160 = por %p158, %p159
      %p161 = scmp.ne.s32.totalorder %s147, %s148
      %p162 = scmp.eq.s32.totalorder %s48, 3
      %p163 = por %p161, %p162
      %p165 = scmp.ne.s32.totalorder %s148, %s164
      %p166 = scmp.eq.s32.totalorder %s48, 0
      %p167 = por %p165, %p166
      %s168 = ssub.s32 %s49, %s61
      %p169 = scmp.eq.s32.totalorder %s168, 0
      %s171 = sadd.s32 %s170, 1
      %s172 = scalar_select %p169, %s170, %s171
      %p175 = pneg %p169
      %p176 = scmp.eq.s32.totalorder %s42, 3
      %p177 = por %p175, %p176
      %p178 = scmp.ne.s32.totalorder %s170, %s173
      %p179 = scmp.eq.s32.totalorder %s42, 0
      %p180 = por %p178, %p179
      %p181 = scmp.ne.s32.totalorder %s170, %s173
      %p182 = scmp.eq.s32.totalorder %s47, 3
      %p183 = por %p181, %p182
      %p184 = scmp.ne.s32.totalorder %s173, %s174
      %p185 = scmp.eq.s32.totalorder %s47, 0
      %p186 = por %p184, %p185
      %p187 = scmp.ne.s32.totalorder %s173, %s174
      %p188 = scmp.eq.s32.totalorder %s48, 3
      %p189 = por %p187, %p188
      %p191 = scmp.ne.s32.totalorder %s174, %s190
      %p192 = scmp.eq.s32.totalorder %s48, 0
      %p193 = por %p191, %p192
      %s194 = ssub.s32 %s49, %s61
      %p195 = scmp.eq.s32.totalorder %s194, 0
      %s197 = sadd.s32 %s196, 1
      %s198 = scalar_select %p195, %s196, %s197
      %p201 = pneg %p195
      %p202 = scmp.eq.s32.totalorder %s42, 3
      %p203 = por %p201, %p202
      %p204 = scmp.ne.s32.totalorder %s196, %s199
      %p205 = scmp.eq.s32.totalorder %s42, 0
      %p206 = por %p204, %p205
      %p207 = scmp.ne.s32.totalorder %s196, %s199
      %p208 = scmp.eq.s32.totalorder %s47, 3
      %p209 = por %p207, %p208
      %p210 = scmp.ne.s32.totalorder %s199, %s200
      %p211 = scmp.eq.s32.totalorder %s47, 0
      %p212 = por %p210, %p211
      %p213 = scmp.ne.s32.totalorder %s199, %s200
      %p214 = scmp.eq.s32.totalorder %s48, 3
      %p215 = por %p213, %p214
      %p217 = scmp.ne.s32.totalorder %s200, %s216
      %p218 = scmp.eq.s32.totalorder %s48, 0
      %p219 = por %p217, %p218
      %s220 = ssub.s32 %s49, %s61
      %p221 = scmp.eq.s32.totalorder %s220, 0
      %s223 = sadd.s32 %s222, 1
      %s224 = scalar_select %p221, %s222, %s223
      %p227 = pneg %p221
      %p228 = scmp.eq.s32.totalorder %s42, 3
      %p229 = por %p227, %p228
      %p230 = scmp.ne.s32.totalorder %s222, %s225
      %p231 = scmp.eq.s32.totalorder %s42, 0
      %p232 = por %p230, %p231
      %p233 = scmp.ne.s32.totalorder %s222, %s225
      %p234 = scmp.eq.s32.totalorder %s47, 3
      %p235 = por %p233, %p234
      %p236 = scmp.ne.s32.totalorder %s225, %s226
      %p237 = scmp.eq.s32.totalorder %s47, 0
      %p238 = por %p236, %p237
      %p239 = scmp.ne.s32.totalorder %s225, %s226
      %p240 = scmp.eq.s32.totalorder %s48, 3
      %p241 = por %p239, %p240
      %p243 = scmp.ne.s32.totalorder %s226, %s242
      %p244 = scmp.eq.s32.totalorder %s48, 0
      %p245 = por %p243, %p244
      %s246 = ssub.s32 %s49, %s61
      %p247 = scmp.eq.s32.totalorder %s246, 0
      %s249 = sadd.s32 %s248, 1
      %s250 = scalar_select %p247, %s248, %s249
      %p253 = pneg %p247
      %p254 = scmp.eq.s32.totalorder %s42, 3
      %p255 = por %p253, %p254
      %p256 = scmp.ne.s32.totalorder %s248, %s251
      %p257 = scmp.eq.s32.totalorder %s42, 0
      %p258 = por %p256, %p257
      %p259 = scmp.ne.s32.totalorder %s248, %s251
      %p260 = scmp.eq.s32.totalorder %s47, 3
      %p261 = por %p259, %p260
      %p262 = scmp.ne.s32.totalorder %s251, %s252
      %p263 = scmp.eq.s32.totalorder %s47, 0
      %p264 = por %p262, %p263
      %p265 = scmp.ne.s32.totalorder %s251, %s252
      %p266 = scmp.eq.s32.totalorder %s48, 3
      %p267 = por %p265, %p266
      %p269 = scmp.ne.s32.totalorder %s252, %s268
      %p270 = scmp.eq.s32.totalorder %s48, 0
      %p271 = por %p269, %p270
      %s272 = ssub.s32 %s49, %s61
      %p273 = scmp.eq.s32.totalorder %s272, 0
      %s275 = sadd.s32 %s274, 1
      %s276 = scalar_select %p273, %s274, %s275
      %p279 = pneg %p273
      %p280 = scmp.eq.s32.totalorder %s42, 3
      %p281 = por %p279, %p280
      %p282 = scmp.ne.s32.totalorder %s274, %s277
      %p283 = scmp.eq.s32.totalorder %s42, 0
      %p284 = por %p282, %p283
      %p285 = scmp.ne.s32.totalorder %s274, %s277
      %p286 = scmp.eq.s32.totalorder %s47, 3
      %p287 = por %p285, %p286
      %p288 = scmp.ne.s32.totalorder %s277, %s278
      %p289 = scmp.eq.s32.totalorder %s47, 0
      %p290 = por %p288, %p289
      %p291 = scmp.ne.s32.totalorder %s277, %s278
      %p292 = scmp.eq.s32.totalorder %s48, 3
      %p293 = por %p291, %p292
      %p295 = scmp.ne.s32.totalorder %s278, %s294
      %p296 = scmp.eq.s32.totalorder %s48, 0
      %p297 = por %p295, %p296
      %s298 = ssub.s32 %s49, %s61
      %p299 = scmp.eq.s32.totalorder %s298, 0
      %s301 = sadd.s32 %s300, 1
      %s302 = scalar_select %p299, %s300, %s301
      %p305 = pneg %p299
      %p306 = scmp.eq.s32.totalorder %s42, 3
      %p307 = por %p305, %p306
      %p308 = scmp.ne.s32.totalorder %s300, %s303
      %p309 = scmp.eq.s32.totalorder %s42, 0
      %p310 = por %p308, %p309
      %p311 = scmp.ne.s32.totalorder %s300, %s303
      %p312 = scmp.eq.s32.totalorder %s47, 3
      %p313 = por %p311, %p312
      %p314 = scmp.ne.s32.totalorder %s303, %s304
      %p315 = scmp.eq.s32.totalorder %s47, 0
      %p316 = por %p314, %p315
      %p317 = scmp.ne.s32.totalorder %s303, %s304
      %p318 = scmp.eq.s32.totalorder %s48, 3
      %p319 = por %p317, %p318
      %p321 = scmp.ne.s32.totalorder %s304, %s320
      %p322 = scmp.eq.s32.totalorder %s48, 0
      %p323 = por %p321, %p322
      %s324 = ssub.s32 %s49, %s61
      %p325 = scmp.eq.s32.totalorder %s324, 0
      %s327 = sadd.s32 %s326, 1
      %s328 = scalar_select %p325, %s326, %s327
      %p331 = pneg %p325
      %p332 = scmp.eq.s32.totalorder %s42, 3
      %p333 = por %p331, %p332
      %p334 = scmp.ne.s32.totalorder %s326, %s329
      %p335 = scmp.eq.s32.totalorder %s42, 0
      %p336 = por %p334, %p335
      %p337 = scmp.ne.s32.totalorder %s326, %s329
      %p338 = scmp.eq.s32.totalorder %s47, 3
      %p339 = por %p337, %p338
      %p340 = scmp.ne.s32.totalorder %s329, %s330
      %p341 = scmp.eq.s32.totalorder %s47, 0
      %p342 = por %p340, %p341
      %p343 = scmp.ne.s32.totalorder %s329, %s330
      %p344 = scmp.eq.s32.totalorder %s48, 3
      %p345 = por %p343, %p344
      %p347 = scmp.ne.s32.totalorder %s330, %s346
      %p348 = scmp.eq.s32.totalorder %s48, 0
      %p349 = por %p347, %p348
      %s350 = ssub.s32 %s50, %s57
      %s351 = ssub.s32 %s49, %s61
      %s352 = sor.u32 %s350, %s351
      %p353 = scmp.eq.s32.totalorder %s352, 0
      %s355 = sadd.s32 %s354, 1
      %s356 = scalar_select %p353, %s354, %s355
      %p359 = pneg %p353
      %p360 = scmp.eq.s32.totalorder %s42, 3
      %p361 = por %p359, %p360
      %p362 = scmp.ne.s32.totalorder %s354, %s357
      %p363 = scmp.eq.s32.totalorder %s42, 0
      %p364 = por %p362, %p363
      %p365 = scmp.ne.s32.totalorder %s354, %s357
      %p366 = scmp.eq.s32.totalorder %s47, 3
      %p367 = por %p365, %p366
      %p368 = scmp.ne.s32.totalorder %s357, %s358
      %p369 = scmp.eq.s32.totalorder %s47, 0
      %p370 = por %p368, %p369
      %p371 = scmp.ne.s32.totalorder %s357, %s358
      %p372 = scmp.eq.s32.totalorder %s48, 3
      %p373 = por %p371, %p372
      %p375 = scmp.ne.s32.totalorder %s358, %s374
      %p376 = scmp.eq.s32.totalorder %s48, 0
      %p377 = por %p375, %p376
      %p378 = scmp.le.s32.totalorder 1, %s42
      %p379 = scmp.lt.s32.totalorder %s42, 5
      %p380 = pnand %p378, %p379
      %p381 = pneg %p380
      // Predicated region
      $region9: #{aelif_run.1} parent=5 // pred_check
        _
      $region10: #{aelif_run.1} parent=5 // pred_check_branch
        %383 = sbr.rel (%p380) target = $region12
      $region11: #{aelif_run.1} parent=5 // pred_region
        %s384 = ssub.s32 %s42, 1
      $region12: #{aelif_run.1} parent=5 // pred_fallthru
        _
      %p385 = scmp.lt.s32.totalorder %s42, 4
      // Predicated region
      $region13: #{aelif_run.1} parent=5 // pred_check
        %p386 = pneg %p385
      $region14: #{aelif_run.1} parent=5 // pred_check_branch
        %388 = sbr.rel (%p386) target = $region16
      $region15: #{aelif_run.1} parent=5 // pred_region
        // Predicated region
        $region17: #{aelif_run.1} parent=15 // pred_check
          %p389 = pneg %p76
        $region18: #{aelif_run.1} parent=15 // pred_check_branch
          %391 = sbr.rel (%p389) target = $region20
        $region19: #{aelif_run.1} parent=15 // pred_region
          %s392 = sand.u32 %s66, 1
          %s393 = scalar_lea.sflag [#allocation4], %s392
          %s394 = sand.u32 %s66, 1
          %s395 = smul.addr %s394, 256
          %s396 = scalar_lea.vmem [#allocation3], %s395
          %s397 = smul.u32 16, %s50
          %s398 = smul.u32 2, %s49
          %s400 = ssub.s32 4096, 4096
          %401 = vsyncadd %s393, %s400
          %s402 = smul.addr %s397, 4
          %s403 = sadd.s32 %s398, %s402
          %s404 = smul.addr %s403, 128
          %s405 = scalar_lea.hbm %s0, %s404
          %s406 = sshll.u32 %s396, 4
          %s407 = int_to_ptr.vmem [resolvable:$true] %s406
          %412 = dma.hbm_to_vmem [thread:$0]  %s405, 4096, %s407, %s393, 512, 256, 16
        $region20: #{aelif_run.1} parent=15 // pred_fallthru
          _
        // Predicated region
        $region21: #{aelif_run.1} parent=15 // pred_check
          %p413 = pneg %p102
        $region22: #{aelif_run.1} parent=15 // pred_check_branch
          %415 = sbr.rel (%p413) target = $region24
        $region23: #{aelif_run.1} parent=15 // pred_region
          %s416 = sand.u32 %s42, 1
          %s417 = scalar_lea.sflag [#allocation7], %s416
          %s418 = sand.u32 %s92, 1
          %s419 = smul.addr %s418, 16
          %s420 = scalar_lea.vmem [#allocation6], %s419
          %s421 = smul.u32 2, %s49
          %s423 = ssub.s32 256, 256
          %424 = vsyncadd %s417, %s423
          %s425 = smul.addr %s421, 128
          %s426 = scalar_lea.hbm %s1, %s425
          %s428 = sshll.u32 %s420, 4
          %s429 = int_to_ptr.vmem [resolvable:$true] %s428
          %431 = dma.hbm_to_vmem [thread:$0]  %s426, 256, %s429, %s417
        $region24: #{aelif_run.1} parent=15 // pred_fallthru
          _
        // Predicated region
        $region25: #{aelif_run.1} parent=15 // pred_check
          %p432 = pneg %p128
        $region26: #{aelif_run.1} parent=15 // pred_check_branch
          %434 = sbr.rel (%p432) target = $region28
        $region27: #{aelif_run.1} parent=15 // pred_region
          %s435 = sand.u32 %s42, 1
          %s436 = scalar_lea.sflag [#allocation7], %s435
          %s437 = sand.u32 %s118, 1
          %s438 = smul.addr %s437, 16
          %s439 = scalar_lea.vmem [#allocation8], %s438
          %s440 = smul.u32 2, %s49
          %s442 = ssub.s32 256, 256
          %443 = vsyncadd %s436, %s442
          %s444 = smul.addr %s440, 128
          %s445 = scalar_lea.hbm %s2, %s444
          %s447 = sshll.u32 %s439, 4
          %s448 = int_to_ptr.vmem [resolvable:$true] %s447
          %450 = dma.hbm_to_vmem [thread:$0]  %s445, 256, %s448, %s436
        $region28: #{aelif_run.1} parent=15 // pred_fallthru
          _
        // Predicated region
        $region29: #{aelif_run.1} parent=15 // pred_check
          %p451 = pneg %p154
        $region30: #{aelif_run.1} parent=15 // pred_check_branch
          %453 = sbr.rel (%p451) target = $region32
        $region31: #{aelif_run.1} parent=15 // pred_region
          %s454 = sand.u32 %s42, 1
          %s455 = scalar_lea.sflag [#allocation10], %s454
          %s456 = sand.u32 %s144, 1
          %s457 = smul.addr %s456, 16
          %s458 = scalar_lea.vmem [#allocation9], %s457
          %s459 = smul.u32 2, %s49
          %s461 = ssub.s32 256, 256
          %462 = vsyncadd %s455, %s461
          %s463 = smul.addr %s459, 128
          %s464 = scalar_lea.hbm %s3, %s463
          %s466 = sshll.u32 %s458, 4
          %s467 = int_to_ptr.vmem [resolvable:$true] %s466
          %469 = dma.hbm_to_vmem [thread:$0]  %s464, 256, %s467, %s455
        $region32: #{aelif_run.1} parent=15 // pred_fallthru
          _
        // Predicated region
        $region33: #{aelif_run.1} parent=15 // pred_check
          %p470 = pneg %p180
        $region34: #{aelif_run.1} parent=15 // pred_check_branch
          %472 = sbr.rel (%p470) target = $region36
        $region35: #{aelif_run.1} parent=15 // pred_region
          %s473 = sand.u32 %s42, 1
          %s474 = scalar_lea.sflag [#allocation10], %s473
          %s475 = sand.u32 %s170, 1
          %s476 = smul.addr %s475, 16
          %s477 = scalar_lea.vmem [#allocation11], %s476
          %s478 = smul.u32 2, %s49
          %s480 = ssub.s32 256, 256
          %481 = vsyncadd %s474, %s480
          %s482 = smul.addr %s478, 128
          %s483 = scalar_lea.hbm %s4, %s482
          %s485 = sshll.u32 %s477, 4
          %s486 = int_to_ptr.vmem [resolvable:$true] %s485
          %488 = dma.hbm_to_vmem [thread:$0]  %s483, 256, %s486, %s474
        $region36: #{aelif_run.1} parent=15 // pred_fallthru
          _
        // Predicated region
        $region37: #{aelif_run.1} parent=15 // pred_check
          %p489 = pneg %p206
        $region38: #{aelif_run.1} parent=15 // pred_check_branch
          %491 = sbr.rel (%p489) target = $region40
        $region39: #{aelif_run.1} parent=15 // pred_region
          %s492 = sand.u32 %s196, 1
          %s493 = scalar_lea.sflag [#allocation13], %s492
          %s494 = sand.u32 %s196, 1
          %s495 = smul.addr %s494, 16
          %s496 = scalar_lea.vmem [#allocation12], %s495
          %s497 = smul.u32 2, %s49
          %s499 = ssub.s32 256, 256
          %500 = vsyncadd %s493, %s499
          %s501 = smul.addr %s497, 128
          %s502 = scalar_lea.hbm %s5, %s501
          %s504 = sshll.u32 %s496, 4
          %s505 = int_to_ptr.vmem [resolvable:$true] %s504
          %507 = dma.hbm_to_vmem [thread:$0]  %s502, 256, %s505, %s493
        $region40: #{aelif_run.1} parent=15 // pred_fallthru
          _
      $region16: #{aelif_run.1} parent=5 // pred_fallthru
        _
      %p508 = scmp.le.s32.totalorder 1, %s42
      %p509 = scmp.lt.s32.totalorder %s42, 5
      %p510 = pnand %p508, %p509
      %p511 = pneg %p510
      // Predicated region
      $region41: #{aelif_run.1} parent=5 // pred_check
        _
      $region42: #{aelif_run.1} parent=5 // pred_check_branch
        %513 = sbr.rel (%p510) target = $region44
      $region43: #{aelif_run.1} parent=5 // pred_region
        %s514 = ssub.s32 %s42, 1
        %s515 = sand.u32 %s69, 1
        %s516 = scalar_lea.sflag [#allocation4], %s515
        %s517 = sand.u32 %s69, 1
        %s518 = smul.addr %s517, 256
        %s519 = scalar_lea.vmem [#allocation3], %s518
        // Predicated region
        $region45: #{aelif_run.1} parent=43 // pred_check
          %p520 = pneg %p82
        $region46: #{aelif_run.1} parent=43 // pred_check_branch
          %522 = sbr.rel (%p520) target = $region48
        $region47: #{aelif_run.1} parent=43 // pred_region
          %523 = dma.done %s516, 4096
        $region48: #{aelif_run.1} parent=43 // pred_fallthru
          _
        %s524 = sand.u32 %s47, 1
        %s525 = scalar_lea.sflag [#allocation7], %s524
        %s526 = sand.u32 %s95, 1
        %s527 = smul.addr %s526, 16
        %s528 = scalar_lea.vmem [#allocation6], %s527
        // Predicated region
        $region49: #{aelif_run.1} parent=43 // pred_check
          %p529 = pneg %p108
        $region50: #{aelif_run.1} parent=43 // pred_check_branch
          %531 = sbr.rel (%p529) target = $region52
        $region51: #{aelif_run.1} parent=43 // pred_region
          %532 = dma.done %s525, 256
        $region52: #{aelif_run.1} parent=43 // pred_fallthru
          _
        %s533 = sand.u32 %s47, 1
        %s534 = scalar_lea.sflag [#allocation7], %s533
        %s535 = sand.u32 %s121, 1
        %s536 = smul.addr %s535, 16
        %s537 = scalar_lea.vmem [#allocation8], %s536
        // Predicated region
        $region53: #{aelif_run.1} parent=43 // pred_check
          %p538 = pneg %p134
        $region54: #{aelif_run.1} parent=43 // pred_check_branch
          %540 = sbr.rel (%p538) target = $region56
        $region55: #{aelif_run.1} parent=43 // pred_region
          %541 = dma.done %s534, 256
        $region56: #{aelif_run.1} parent=43 // pred_fallthru
          _
        %s542 = sand.u32 %s47, 1
        %s543 = scalar_lea.sflag [#allocation10], %s542
        %s544 = sand.u32 %s147, 1
        %s545 = smul.addr %s544, 16
        %s546 = scalar_lea.vmem [#allocation9], %s545
        // Predicated region
        $region57: #{aelif_run.1} parent=43 // pred_check
          %p547 = pneg %p160
        $region58: #{aelif_run.1} parent=43 // pred_check_branch
          %549 = sbr.rel (%p547) target = $region60
        $region59: #{aelif_run.1} parent=43 // pred_region
          %550 = dma.done %s543, 256
        $region60: #{aelif_run.1} parent=43 // pred_fallthru
          _
        %s551 = sand.u32 %s47, 1
        %s552 = scalar_lea.sflag [#allocation10], %s551
        %s553 = sand.u32 %s173, 1
        %s554 = smul.addr %s553, 16
        %s555 = scalar_lea.vmem [#allocation11], %s554
        // Predicated region
        $region61: #{aelif_run.1} parent=43 // pred_check
          %p556 = pneg %p186
        $region62: #{aelif_run.1} parent=43 // pred_check_branch
          %558 = sbr.rel (%p556) target = $region64
        $region63: #{aelif_run.1} parent=43 // pred_region
          %559 = dma.done %s552, 256
        $region64: #{aelif_run.1} parent=43 // pred_fallthru
          _
        %s560 = sand.u32 %s199, 1
        %s561 = scalar_lea.sflag [#allocation13], %s560
        %s562 = sand.u32 %s199, 1
        %s563 = smul.addr %s562, 16
        %s564 = scalar_lea.vmem [#allocation12], %s563
        // Predicated region
        $region65: #{aelif_run.1} parent=43 // pred_check
          %p565 = pneg %p212
        $region66: #{aelif_run.1} parent=43 // pred_check_branch
          %567 = sbr.rel (%p565) target = $region68
        $region67: #{aelif_run.1} parent=43 // pred_region
          %568 = dma.done %s561, 256
        $region68: #{aelif_run.1} parent=43 // pred_fallthru
          _
        %s569 = sand.u32 %s69, 1
        %s570 = scalar_lea.sflag [#allocation4], %s569
        %s571 = sand.u32 %s69, 1
        %s572 = smul.addr %s571, 256
        %s573 = scalar_lea.vmem [#allocation3], %s572
        %p574 = pneg %p82
        %p575 = pneg %p79
        %s576 = sand.u32 %s47, 1
        %s577 = scalar_lea.sflag [#allocation7], %s576
        %s578 = sand.u32 %s95, 1
        %s579 = smul.addr %s578, 16
        %s580 = scalar_lea.vmem [#allocation6], %s579
        %p581 = pneg %p108
        %p582 = pneg %p105
        %s583 = sand.u32 %s47, 1
        %s584 = scalar_lea.sflag [#allocation7], %s583
        %s585 = sand.u32 %s121, 1
        %s586 = smul.addr %s585, 16
        %s587 = scalar_lea.vmem [#allocation8], %s586
        %p588 = pneg %p134
        %p589 = pneg %p131
        %s590 = sand.u32 %s47, 1
        %s591 = scalar_lea.sflag [#allocation10], %s590
        %s592 = sand.u32 %s147, 1
        %s593 = smul.addr %s592, 16
        %s594 = scalar_lea.vmem [#allocation9], %s593
        %p595 = pneg %p160
        %p596 = pneg %p157
        %s597 = sand.u32 %s47, 1
        %s598 = scalar_lea.sflag [#allocation10], %s597
        %s599 = sand.u32 %s173, 1
        %s600 = smul.addr %s599, 16
        %s601 = scalar_lea.vmem [#allocation11], %s600
        %p602 = pneg %p186
        %p603 = pneg %p183
        %s604 = sand.u32 %s199, 1
        %s605 = scalar_lea.sflag [#allocation13], %s604
        %s606 = sand.u32 %s199, 1
        %s607 = smul.addr %s606, 16
        %s608 = scalar_lea.vmem [#allocation12], %s607
        %p609 = pneg %p212
        %p610 = pneg %p209
        %p611 = pneg %p238
        %p612 = pneg %p235
        %s613 = sand.u32 %s225, 1
        %s614 = scalar_lea.sflag [#allocation5], %s613
        %s615 = sand.u32 %s225, 1
        %s616 = smul.addr %s615, 16
        %s617 = scalar_lea.vmem [#allocation14], %s616
        %p618 = pneg %p264
        %p619 = pneg %p261
        %s620 = sand.u32 %s47, 1
        %s621 = scalar_lea.sflag [#allocation16], %s620
        %s622 = sand.u32 %s251, 1
        %s623 = smul.addr %s622, 16
        %s624 = scalar_lea.vmem [#allocation15], %s623
        %p625 = pneg %p290
        %p626 = pneg %p287
        %s627 = sand.u32 %s47, 1
        %s628 = scalar_lea.sflag [#allocation16], %s627
        %s629 = sand.u32 %s277, 1
        %s630 = smul.addr %s629, 16
        %s631 = scalar_lea.vmem [#allocation17], %s630
        %p632 = pneg %p316
        %p633 = pneg %p313
        %s634 = sand.u32 %s47, 1
        %s635 = scalar_lea.sflag [#allocation19], %s634
        %s636 = sand.u32 %s303, 1
        %s637 = smul.addr %s636, 16
        %s638 = scalar_lea.vmem [#allocation18], %s637
        %p639 = pneg %p342
        %p640 = pneg %p339
        %s641 = sand.u32 %s47, 1
        %s642 = scalar_lea.sflag [#allocation19], %s641
        %s643 = sand.u32 %s329, 1
        %s644 = smul.addr %s643, 16
        %s645 = scalar_lea.vmem [#allocation20], %s644
        %p646 = pneg %p370
        %p647 = pneg %p367
        %s648 = sand.u32 %s357, 1
        %s649 = scalar_lea.sflag [#allocation22], %s648
        %s650 = sand.u32 %s357, 1
        %s651 = smul.addr %s650, 128
        %s652 = scalar_lea.vmem [#allocation21], %s651
        %s653 = smul.u32 16, %s52
        %s654 = smul.u32 2, %s51
        %s655 = smul.u32 2, %s51
        %s656 = smul.u32 2, %s51
        %s657 = smul.u32 2, %s51
        %s658 = smul.u32 2, %s51
        %s659 = smul.u32 2, %s51
        %s660 = smul.u32 2, %s51
        %s661 = smul.u32 2, %s51
        %s662 = smul.u32 2, %s51
        %s663 = smul.u32 2, %s51
        %s664 = smul.u32 2, %s51
        %s665 = smul.u32 16, %s52
        %s666 = smul.u32 2, %s51
        %p667 = scmp.eq.s32.totalorder %s52, 0
        // Predicated region
        $region69: #{aelif_run.1} parent=43 // pred_check
          %p668 = pneg %p667
        $region70: #{aelif_run.1} parent=43 // pred_check_branch
          %670 = sbr.rel (%p668) target = $region72
        $region71: #{aelif_run.1} parent=43 // pred_region
          %v671 = vld [vmem:[%s528] sm:$0xff]
          %v672 = vld [vmem:[%s528 + $0x8] sm:$0xff]
          %673 = vst [vmem:[%s617] sm:$0xff] %v671
          %674 = vst [vmem:[%s617 + $0x8] sm:$0xff] %v672
          %v675 = vld [vmem:[%s537] sm:$0xff]
          %v676 = vld [vmem:[%s537 + $0x8] sm:$0xff]
          %677 = vst [vmem:[%s624] sm:$0xff] %v675
          %678 = vst [vmem:[%s624 + $0x8] sm:$0xff] %v676
          %v679 = vld [vmem:[%s546] sm:$0xff]
          %v680 = vld [vmem:[%s546 + $0x8] sm:$0xff]
          %681 = vst [vmem:[%s631] sm:$0xff] %v679
          %682 = vst [vmem:[%s631 + $0x8] sm:$0xff] %v680
          %v683 = vld [vmem:[%s555] sm:$0xff]
          %v684 = vld [vmem:[%s555 + $0x8] sm:$0xff]
          %685 = vst [vmem:[%s638] sm:$0xff] %v683
          %686 = vst [vmem:[%s638 + $0x8] sm:$0xff] %v684
          %v687 = vld [vmem:[%s564] sm:$0xff]
          %v688 = vld [vmem:[%s564 + $0x8] sm:$0xff]
          %689 = vst [vmem:[%s645] sm:$0xff] %v687
          %690 = vst [vmem:[%s645 + $0x8] sm:$0xff] %v688
        $region72: #{aelif_run.1} parent=43 // pred_fallthru
          _
        %v691 = vld [vmem:[%s617] sm:$0xff]
        %v692 = vld [vmem:[%s617 + $0x8] sm:$0xff]
        %v693 = vld [vmem:[%s624] sm:$0xff]
        %v694 = vld [vmem:[%s624 + $0x8] sm:$0xff]
        %v695 = vld [vmem:[%s631] sm:$0xff]
        %v696 = vld [vmem:[%s631 + $0x8] sm:$0xff]
        %v697 = vld [vmem:[%s638] sm:$0xff]
        %v698 = vld [vmem:[%s638 + $0x8] sm:$0xff]
        %v699 = vld [vmem:[%s645] sm:$0xff]
        %v700 = vld [vmem:[%s645 + $0x8] sm:$0xff]
        %v701 = vld [vmem:[%s519] sm:$0xff]
        %v702 = vld [vmem:[%s519 + $0x8] sm:$0xff]
        %vm703 = vcmp.le.f32.partialorder %v695, 0.0
        %vm704 = vcmp.le.f32.partialorder %v696, 0.0
        %v705 = vadd.f32 %v701, -62.0
        %v706 = vadd.f32 %v702, -62.0
        %v707 = vsub.f32 %v705, %v691
        %v708 = vsub.f32 %v706, %v692
        %v709 = vsub.f32 %v691, -60.0
        %v710 = vsub.f32 %v692, -60.0
        %v711 = vmul.f32 %v709, 1.442695
        %v712 = vpow.pop %v711
        %v713 = vmul.f32 %v710, 1.442695
        %v714 = vpow.pop %v713
        %v715 = vadd.f32 %v707, %v712
        %v716 = vadd.f32 %v708, %v714
        %v717 = vmul.f32 %v693, 0.001
        %v718 = vmul.f32 %v694, 0.001
        %v719 = vsub.f32 %v715, %v717
        %v720 = vsub.f32 %v716, %v718
        %v721 = vmul.f32 %v719, 0.01
        %v722 = vmul.f32 %v720, 0.01
        %v723 = vadd.f32 %v691, %v721
        %v724 = vadd.f32 %v692, %v722
        %v725 = vsub.f32 %v723, -62.0
        %v726 = vsub.f32 %v724, -62.0
        %v727 = vsub.f32 %v725, %v693
        %v728 = vsub.f32 %v726, %v694
        %v729 = vmul.f32 %v727, 0.025
        %v730 = vmul.f32 %v728, 0.025
        %v731 = vadd.f32 %v693, %v729
        %v732 = vadd.f32 %v694, %v730
        %v733 = vmul.f32 %v697, 0.2
        %v734 = vmul.f32 %v698, 0.2
        %v735 = vadd.f32 %v731, %v733
        %v736 = vadd.f32 %v732, %v734
        %v737 = vsel %vm703, %v723, %v691
        %v738 = vsel %vm704, %v724, %v692
        %v739 = vsel %vm703, %v735, %v693
        %v740 = vsel %vm704, %v736, %v694
        %vm741 = vcmp.ge.f32.partialorder %v737, -52.0
        %vm742 = vcmp.ge.f32.partialorder %v738, -52.0
        %v743 = vsub.f32 %v695, 0.1
        %v744 = vsub.f32 %v696, 0.1
        %v745 = vsel %vm741, 5.0, %v743
        %v746 = vsel %vm742, 5.0, %v744
        %v747 = vsel %vm741, -62.0, %v737
        %v748 = vsel %vm742, -62.0, %v738
        %v749 = vmul.f32 %v699, 0.99004984
        %v750 = vmul.f32 %v700, 0.99004984
        %v751 = vsel %vm741, 1.0, %v749
        %v752 = vsel %vm742, 1.0, %v750
        %v753 = vsel %vm741, 1, 0
        %v754 = vsel %vm742, 1, 0
        %v755 = vcvt.s32.f32 %v753
        %v756 = vcvt.s32.f32 %v754
        %757 = vst [vmem:[#allocation2] sm:$0xff] %v755
        %758 = vst [vmem:[#allocation2 + $0x8] sm:$0xff] %v756
        %s759 = scalar_lea.vmem %s519, 16 [#allocation3]
        %v760 = vld [vmem:[%s759] sm:$0xff]
        %v761 = vld [vmem:[%s759 + $0x8] sm:$0xff]
        %vm762 = vcmp.le.f32.partialorder %v745, 0.0
        %vm763 = vcmp.le.f32.partialorder %v746, 0.0
        %v764 = vadd.f32 %v760, -62.0
        %v765 = vadd.f32 %v761, -62.0
        %v766 = vsub.f32 %v764, %v747
        %v767 = vsub.f32 %v765, %v748
        %v768 = vsub.f32 %v747, -60.0
        %v769 = vsub.f32 %v748, -60.0
        %v770 = vmul.f32 %v768, 1.442695
        %v771 = vpow.pop %v770
        %v772 = vmul.f32 %v769, 1.442695
        %v773 = vpow.pop %v772
        %v774 = vadd.f32 %v766, %v771
        %v775 = vadd.f32 %v767, %v773
        %v776 = vmul.f32 %v739, 0.001
        %v777 = vmul.f32 %v740, 0.001
        %v778 = vsub.f32 %v774, %v776
        %v779 = vsub.f32 %v775, %v777
        %v780 = vmul.f32 %v778, 0.01
        %v781 = vmul.f32 %v779, 0.01
        %v782 = vadd.f32 %v747, %v780
        %v783 = vadd.f32 %v748, %v781
        %v784 = vsub.f32 %v782, -62.0
        %v785 = vsub.f32 %v783, -62.0
        %v786 = vsub.f32 %v784, %v739
        %v787 = vsub.f32 %v785, %v740
        %v788 = vmul.f32 %v786, 0.025
        %v789 = vmul.f32 %v787, 0.025
        %v790 = vadd.f32 %v739, %v788
        %v791 = vadd.f32 %v740, %v789
        %v792 = vmul.f32 %v755, 0.2
        %v793 = vmul.f32 %v756, 0.2
        %v794 = vadd.f32 %v790, %v792
        %v795 = vadd.f32 %v791, %v793
        %v796 = vsel %vm762, %v782, %v747
        %v797 = vsel %vm763, %v783, %v748
        %v798 = vsel %vm762, %v794, %v739
        %v799 = vsel %vm763, %v795, %v740
        %vm800 = vcmp.ge.f32.partialorder %v796, -52.0
        %vm801 = vcmp.ge.f32.partialorder %v797, -52.0
        %v802 = vsub.f32 %v745, 0.1
        %v803 = vsub.f32 %v746, 0.1
        %v804 = vsel %vm800, 5.0, %v802
        %v805 = vsel %vm801, 5.0, %v803
        %v806 = vsel %vm800, -62.0, %v796
        %v807 = vsel %vm801, -62.0, %v797
        %v808 = vmul.f32 %v751, 0.99004984
        %v809 = vmul.f32 %v752, 0.99004984
        %v810 = vsel %vm800, 1.0, %v808
        %v811 = vsel %vm801, 1.0, %v809
        %v812 = vsel %vm800, 1, 0
        %v813 = vsel %vm801, 1, 0
        %v814 = vcvt.s32.f32 %v812
        %v815 = vcvt.s32.f32 %v813
        %s816 = scalar_lea.vmem [#allocation2], 16
        %817 = vst [vmem:[%s816] sm:$0xff] %v814
        %818 = vst [vmem:[%s816 + $0x8] sm:$0xff] %v815
        %s819 = scalar_lea.vmem %s519, 32 [#allocation3]
        %v820 = vld [vmem:[%s819] sm:$0xff]
        %v821 = vld [vmem:[%s819 + $0x8] sm:$0xff]
        %vm822 = vcmp.le.f32.partialorder %v804, 0.0
        %vm823 = vcmp.le.f32.partialorder %v805, 0.0
        %v824 = vadd.f32 %v820, -62.0
        %v825 = vadd.f32 %v821, -62.0
        %v826 = vsub.f32 %v824, %v806
        %v827 = vsub.f32 %v825, %v807
        %v828 = vsub.f32 %v806, -60.0
        %v829 = vsub.f32 %v807, -60.0
        %v830 = vmul.f32 %v828, 1.442695
        %v831 = vpow.pop %v830
        %v832 = vmul.f32 %v829, 1.442695
        %v833 = vpow.pop %v832
        %v834 = vadd.f32 %v826, %v831
        %v835 = vadd.f32 %v827, %v833
        %v836 = vmul.f32 %v798, 0.001
        %v837 = vmul.f32 %v799, 0.001
        %v838 = vsub.f32 %v834, %v836
        %v839 = vsub.f32 %v835, %v837
        %v840 = vmul.f32 %v838, 0.01
        %v841 = vmul.f32 %v839, 0.01
        %v842 = vadd.f32 %v806, %v840
        %v843 = vadd.f32 %v807, %v841
        %v844 = vsub.f32 %v842, -62.0
        %v845 = vsub.f32 %v843, -62.0
        %v846 = vsub.f32 %v844, %v798
        %v847 = vsub.f32 %v845, %v799
        %v848 = vmul.f32 %v846, 0.025
        %v849 = vmul.f32 %v847, 0.025
        %v850 = vadd.f32 %v798, %v848
        %v851 = vadd.f32 %v799, %v849
        %v852 = vmul.f32 %v814, 0.2
        %v853 = vmul.f32 %v815, 0.2
        %v854 = vadd.f32 %v850, %v852
        %v855 = vadd.f32 %v851, %v853
        %v856 = vsel %vm822, %v842, %v806
        %v857 = vsel %vm823, %v843, %v807
        %v858 = vsel %vm822, %v854, %v798
        %v859 = vsel %vm823, %v855, %v799
        %vm860 = vcmp.ge.f32.partialorder %v856, -52.0
        %vm861 = vcmp.ge.f32.partialorder %v857, -52.0
        %v862 = vsub.f32 %v804, 0.1
        %v863 = vsub.f32 %v805, 0.1
        %v864 = vsel %vm860, 5.0, %v862
        %v865 = vsel %vm861, 5.0, %v863
        %v866 = vsel %vm860, -62.0, %v856
        %v867 = vsel %vm861, -62.0, %v857
        %v868 = vmul.f32 %v810, 0.99004984
        %v869 = vmul.f32 %v811, 0.99004984
        %v870 = vsel %vm860, 1.0, %v868
        %v871 = vsel %vm861, 1.0, %v869
        %v872 = vsel %vm860, 1, 0
        %v873 = vsel %vm861, 1, 0
        %v874 = vcvt.s32.f32 %v872
        %v875 = vcvt.s32.f32 %v873
        %s876 = scalar_lea.vmem [#allocation2], 32
        %877 = vst [vmem:[%s876] sm:$0xff] %v874
        %878 = vst [vmem:[%s876 + $0x8] sm:$0xff] %v875
        %s879 = scalar_lea.vmem %s519, 48 [#allocation3]
        %v880 = vld [vmem:[%s879] sm:$0xff]
        %v881 = vld [vmem:[%s879 + $0x8] sm:$0xff]
        %vm882 = vcmp.le.f32.partialorder %v864, 0.0
        %vm883 = vcmp.le.f32.partialorder %v865, 0.0
        %v884 = vadd.f32 %v880, -62.0
        %v885 = vadd.f32 %v881, -62.0
        %v886 = vsub.f32 %v884, %v866
        %v887 = vsub.f32 %v885, %v867
        %v888 = vsub.f32 %v866, -60.0
        %v889 = vsub.f32 %v867, -60.0
        %v890 = vmul.f32 %v888, 1.442695
        %v891 = vpow.pop %v890
        %v892 = vmul.f32 %v889, 1.442695
        %v893 = vpow.pop %v892
        %v894 = vadd.f32 %v886, %v891
        %v895 = vadd.f32 %v887, %v893
        %v896 = vmul.f32 %v858, 0.001
        %v897 = vmul.f32 %v859, 0.001
        %v898 = vsub.f32 %v894, %v896
        %v899 = vsub.f32 %v895, %v897
        %v900 = vmul.f32 %v898, 0.01
        %v901 = vmul.f32 %v899, 0.01
        %v902 = vadd.f32 %v866, %v900
        %v903 = vadd.f32 %v867, %v901
        %v904 = vsub.f32 %v902, -62.0
        %v905 = vsub.f32 %v903, -62.0
        %v906 = vsub.f32 %v904, %v858
        %v907 = vsub.f32 %v905, %v859
        %v908 = vmul.f32 %v906, 0.025
        %v909 = vmul.f32 %v907, 0.025
        %v910 = vadd.f32 %v858, %v908
        %v911 = vadd.f32 %v859, %v909
        %v912 = vmul.f32 %v874, 0.2
        %v913 = vmul.f32 %v875, 0.2
        %v914 = vadd.f32 %v910, %v912
        %v915 = vadd.f32 %v911, %v913
        %v916 = vsel %vm882, %v902, %v866
        %v917 = vsel %vm883, %v903, %v867
        %v918 = vsel %vm882, %v914, %v858
        %v919 = vsel %vm883, %v915, %v859
        %vm920 = vcmp.ge.f32.partialorder %v916, -52.0
        %vm921 = vcmp.ge.f32.partialorder %v917, -52.0
        %v922 = vsub.f32 %v864, 0.1
        %v923 = vsub.f32 %v865, 0.1
        %v924 = vsel %vm920, 5.0, %v922
        %v925 = vsel %vm921, 5.0, %v923
        %v926 = vsel %vm920, -62.0, %v916
        %v927 = vsel %vm921, -62.0, %v917
        %v928 = vmul.f32 %v870, 0.99004984
        %v929 = vmul.f32 %v871, 0.99004984
        %v930 = vsel %vm920, 1.0, %v928
        %v931 = vsel %vm921, 1.0, %v929
        %v932 = vsel %vm920, 1, 0
        %v933 = vsel %vm921, 1, 0
        %v934 = vcvt.s32.f32 %v932
        %v935 = vcvt.s32.f32 %v933
        %s936 = scalar_lea.vmem [#allocation2], 48
        %937 = vst [vmem:[%s936] sm:$0xff] %v934
        %938 = vst [vmem:[%s936 + $0x8] sm:$0xff] %v935
        %s939 = scalar_lea.vmem %s519, 64 [#allocation3]
        %v940 = vld [vmem:[%s939] sm:$0xff]
        %v941 = vld [vmem:[%s939 + $0x8] sm:$0xff]
        %vm942 = vcmp.le.f32.partialorder %v924, 0.0
        %vm943 = vcmp.le.f32.partialorder %v925, 0.0
        %v944 = vadd.f32 %v940, -62.0
        %v945 = vadd.f32 %v941, -62.0
        %v946 = vsub.f32 %v944, %v926
        %v947 = vsub.f32 %v945, %v927
        %v948 = vsub.f32 %v926, -60.0
        %v949 = vsub.f32 %v927, -60.0
        %v950 = vmul.f32 %v948, 1.442695
        %v951 = vpow.pop %v950
        %v952 = vmul.f32 %v949, 1.442695
        %v953 = vpow.pop %v952
        %v954 = vadd.f32 %v946, %v951
        %v955 = vadd.f32 %v947, %v953
        %v956 = vmul.f32 %v918, 0.001
        %v957 = vmul.f32 %v919, 0.001
        %v958 = vsub.f32 %v954, %v956
        %v959 = vsub.f32 %v955, %v957
        %v960 = vmul.f32 %v958, 0.01
        %v961 = vmul.f32 %v959, 0.01
        %v962 = vadd.f32 %v926, %v960
        %v963 = vadd.f32 %v927, %v961
        %v964 = vsub.f32 %v962, -62.0
        %v965 = vsub.f32 %v963, -62.0
        %v966 = vsub.f32 %v964, %v918
        %v967 = vsub.f32 %v965, %v919
        %v968 = vmul.f32 %v966, 0.025
        %v969 = vmul.f32 %v967, 0.025
        %v970 = vadd.f32 %v918, %v968
        %v971 = vadd.f32 %v919, %v969
        %v972 = vmul.f32 %v934, 0.2
        %v973 = vmul.f32 %v935, 0.2
        %v974 = vadd.f32 %v970, %v972
        %v975 = vadd.f32 %v971, %v973
        %v976 = vsel %vm942, %v962, %v926
        %v977 = vsel %vm943, %v963, %v927
        %v978 = vsel %vm942, %v974, %v918
        %v979 = vsel %vm943, %v975, %v919
        %vm980 = vcmp.ge.f32.partialorder %v976, -52.0
        %vm981 = vcmp.ge.f32.partialorder %v977, -52.0
        %v982 = vsub.f32 %v924, 0.1
        %v983 = vsub.f32 %v925, 0.1
        %v984 = vsel %vm980, 5.0, %v982
        %v985 = vsel %vm981, 5.0, %v983
        %v986 = vsel %vm980, -62.0, %v976
        %v987 = vsel %vm981, -62.0, %v977
        %v988 = vmul.f32 %v930, 0.99004984
        %v989 = vmul.f32 %v931, 0.99004984
        %v990 = vsel %vm980, 1.0, %v988
        %v991 = vsel %vm981, 1.0, %v989
        %v992 = vsel %vm980, 1, 0
        %v993 = vsel %vm981, 1, 0
        %v994 = vcvt.s32.f32 %v992
        %v995 = vcvt.s32.f32 %v993
        %s996 = scalar_lea.vmem [#allocation2], 64
        %997 = vst [vmem:[%s996] sm:$0xff] %v994
        %998 = vst [vmem:[%s996 + $0x8] sm:$0xff] %v995
        %s999 = scalar_lea.vmem %s519, 80 [#allocation3]
        %v1000 = vld [vmem:[%s999] sm:$0xff]
        %v1001 = vld [vmem:[%s999 + $0x8] sm:$0xff]
        %vm1002 = vcmp.le.f32.partialorder %v984, 0.0
        %vm1003 = vcmp.le.f32.partialorder %v985, 0.0
        %v1004 = vadd.f32 %v1000, -62.0
        %v1005 = vadd.f32 %v1001, -62.0
        %v1006 = vsub.f32 %v1004, %v986
        %v1007 = vsub.f32 %v1005, %v987
        %v1008 = vsub.f32 %v986, -60.0
        %v1009 = vsub.f32 %v987, -60.0
        %v1010 = vmul.f32 %v1008, 1.442695
        %v1011 = vpow.pop %v1010
        %v1012 = vmul.f32 %v1009, 1.442695
        %v1013 = vpow.pop %v1012
        %v1014 = vadd.f32 %v1006, %v1011
        %v1015 = vadd.f32 %v1007, %v1013
        %v1016 = vmul.f32 %v978, 0.001
        %v1017 = vmul.f32 %v979, 0.001
        %v1018 = vsub.f32 %v1014, %v1016
        %v1019 = vsub.f32 %v1015, %v1017
        %v1020 = vmul.f32 %v1018, 0.01
        %v1021 = vmul.f32 %v1019, 0.01
        %v1022 = vadd.f32 %v986, %v1020
        %v1023 = vadd.f32 %v987, %v1021
        %v1024 = vsub.f32 %v1022, -62.0
        %v1025 = vsub.f32 %v1023, -62.0
        %v1026 = vsub.f32 %v1024, %v978
        %v1027 = vsub.f32 %v1025, %v979
        %v1028 = vmul.f32 %v1026, 0.025
        %v1029 = vmul.f32 %v1027, 0.025
        %v1030 = vadd.f32 %v978, %v1028
        %v1031 = vadd.f32 %v979, %v1029
        %v1032 = vmul.f32 %v994, 0.2
        %v1033 = vmul.f32 %v995, 0.2
        %v1034 = vadd.f32 %v1030, %v1032
        %v1035 = vadd.f32 %v1031, %v1033
        %v1036 = vsel %vm1002, %v1022, %v986
        %v1037 = vsel %vm1003, %v1023, %v987
        %v1038 = vsel %vm1002, %v1034, %v978
        %v1039 = vsel %vm1003, %v1035, %v979
        %vm1040 = vcmp.ge.f32.partialorder %v1036, -52.0
        %vm1041 = vcmp.ge.f32.partialorder %v1037, -52.0
        %v1042 = vsub.f32 %v984, 0.1
        %v1043 = vsub.f32 %v985, 0.1
        %v1044 = vsel %vm1040, 5.0, %v1042
        %v1045 = vsel %vm1041, 5.0, %v1043
        %v1046 = vsel %vm1040, -62.0, %v1036
        %v1047 = vsel %vm1041, -62.0, %v1037
        %v1048 = vmul.f32 %v990, 0.99004984
        %v1049 = vmul.f32 %v991, 0.99004984
        %v1050 = vsel %vm1040, 1.0, %v1048
        %v1051 = vsel %vm1041, 1.0, %v1049
        %v1052 = vsel %vm1040, 1, 0
        %v1053 = vsel %vm1041, 1, 0
        %v1054 = vcvt.s32.f32 %v1052
        %v1055 = vcvt.s32.f32 %v1053
        %s1056 = scalar_lea.vmem [#allocation2], 80
        %1057 = vst [vmem:[%s1056] sm:$0xff] %v1054
        %1058 = vst [vmem:[%s1056 + $0x8] sm:$0xff] %v1055
        %s1059 = scalar_lea.vmem %s519, 96 [#allocation3]
        %v1060 = vld [vmem:[%s1059] sm:$0xff]
        %v1061 = vld [vmem:[%s1059 + $0x8] sm:$0xff]
        %vm1062 = vcmp.le.f32.partialorder %v1044, 0.0
        %vm1063 = vcmp.le.f32.partialorder %v1045, 0.0
        %v1064 = vadd.f32 %v1060, -62.0
        %v1065 = vadd.f32 %v1061, -62.0
        %v1066 = vsub.f32 %v1064, %v1046
        %v1067 = vsub.f32 %v1065, %v1047
        %v1068 = vsub.f32 %v1046, -60.0
        %v1069 = vsub.f32 %v1047, -60.0
        %v1070 = vmul.f32 %v1068, 1.442695
        %v1071 = vpow.pop %v1070
        %v1072 = vmul.f32 %v1069, 1.442695
        %v1073 = vpow.pop %v1072
        %v1074 = vadd.f32 %v1066, %v1071
        %v1075 = vadd.f32 %v1067, %v1073
        %v1076 = vmul.f32 %v1038, 0.001
        %v1077 = vmul.f32 %v1039, 0.001
        %v1078 = vsub.f32 %v1074, %v1076
        %v1079 = vsub.f32 %v1075, %v1077
        %v1080 = vmul.f32 %v1078, 0.01
        %v1081 = vmul.f32 %v1079, 0.01
        %v1082 = vadd.f32 %v1046, %v1080
        %v1083 = vadd.f32 %v1047, %v1081
        %v1084 = vsub.f32 %v1082, -62.0
        %v1085 = vsub.f32 %v1083, -62.0
        %v1086 = vsub.f32 %v1084, %v1038
        %v1087 = vsub.f32 %v1085, %v1039
        %v1088 = vmul.f32 %v1086, 0.025
        %v1089 = vmul.f32 %v1087, 0.025
        %v1090 = vadd.f32 %v1038, %v1088
        %v1091 = vadd.f32 %v1039, %v1089
        %v1092 = vmul.f32 %v1054, 0.2
        %v1093 = vmul.f32 %v1055, 0.2
        %v1094 = vadd.f32 %v1090, %v1092
        %v1095 = vadd.f32 %v1091, %v1093
        %v1096 = vsel %vm1062, %v1082, %v1046
        %v1097 = vsel %vm1063, %v1083, %v1047
        %v1098 = vsel %vm1062, %v1094, %v1038
        %v1099 = vsel %vm1063, %v1095, %v1039
        %vm1100 = vcmp.ge.f32.partialorder %v1096, -52.0
        %vm1101 = vcmp.ge.f32.partialorder %v1097, -52.0
        %v1102 = vsub.f32 %v1044, 0.1
        %v1103 = vsub.f32 %v1045, 0.1
        %v1104 = vsel %vm1100, 5.0, %v1102
        %v1105 = vsel %vm1101, 5.0, %v1103
        %v1106 = vsel %vm1100, -62.0, %v1096
        %v1107 = vsel %vm1101, -62.0, %v1097
        %v1108 = vmul.f32 %v1050, 0.99004984
        %v1109 = vmul.f32 %v1051, 0.99004984
        %v1110 = vsel %vm1100, 1.0, %v1108
        %v1111 = vsel %vm1101, 1.0, %v1109
        %v1112 = vsel %vm1100, 1, 0
        %v1113 = vsel %vm1101, 1, 0
        %v1114 = vcvt.s32.f32 %v1112
        %v1115 = vcvt.s32.f32 %v1113
        %s1116 = scalar_lea.vmem [#allocation2], 96
        %1117 = vst [vmem:[%s1116] sm:$0xff] %v1114
        %1118 = vst [vmem:[%s1116 + $0x8] sm:$0xff] %v1115
        %s1119 = scalar_lea.vmem %s519, 112 [#allocation3]
        %v1120 = vld [vmem:[%s1119] sm:$0xff]
        %v1121 = vld [vmem:[%s1119 + $0x8] sm:$0xff]
        %vm1122 = vcmp.le.f32.partialorder %v1104, 0.0
        %vm1123 = vcmp.le.f32.partialorder %v1105, 0.0
        %v1124 = vadd.f32 %v1120, -62.0
        %v1125 = vadd.f32 %v1121, -62.0
        %v1126 = vsub.f32 %v1124, %v1106
        %v1127 = vsub.f32 %v1125, %v1107
        %v1128 = vsub.f32 %v1106, -60.0
        %v1129 = vsub.f32 %v1107, -60.0
        %v1130 = vmul.f32 %v1128, 1.442695
        %v1131 = vpow.pop %v1130
        %v1132 = vmul.f32 %v1129, 1.442695
        %v1133 = vpow.pop %v1132
        %v1134 = vadd.f32 %v1126, %v1131
        %v1135 = vadd.f32 %v1127, %v1133
        %v1136 = vmul.f32 %v1098, 0.001
        %v1137 = vmul.f32 %v1099, 0.001
        %v1138 = vsub.f32 %v1134, %v1136
        %v1139 = vsub.f32 %v1135, %v1137
        %v1140 = vmul.f32 %v1138, 0.01
        %v1141 = vmul.f32 %v1139, 0.01
        %v1142 = vadd.f32 %v1106, %v1140
        %v1143 = vadd.f32 %v1107, %v1141
        %v1144 = vsub.f32 %v1142, -62.0
        %v1145 = vsub.f32 %v1143, -62.0
        %v1146 = vsub.f32 %v1144, %v1098
        %v1147 = vsub.f32 %v1145, %v1099
        %v1148 = vmul.f32 %v1146, 0.025
        %v1149 = vmul.f32 %v1147, 0.025
        %v1150 = vadd.f32 %v1098, %v1148
        %v1151 = vadd.f32 %v1099, %v1149
        %v1152 = vmul.f32 %v1114, 0.2
        %v1153 = vmul.f32 %v1115, 0.2
        %v1154 = vadd.f32 %v1150, %v1152
        %v1155 = vadd.f32 %v1151, %v1153
        %v1156 = vsel %vm1122, %v1142, %v1106
        %v1157 = vsel %vm1123, %v1143, %v1107
        %v1158 = vsel %vm1122, %v1154, %v1098
        %v1159 = vsel %vm1123, %v1155, %v1099
        %vm1160 = vcmp.ge.f32.partialorder %v1156, -52.0
        %vm1161 = vcmp.ge.f32.partialorder %v1157, -52.0
        %v1162 = vsub.f32 %v1104, 0.1
        %v1163 = vsub.f32 %v1105, 0.1
        %v1164 = vsel %vm1160, 5.0, %v1162
        %v1165 = vsel %vm1161, 5.0, %v1163
        %v1166 = vsel %vm1160, -62.0, %v1156
        %v1167 = vsel %vm1161, -62.0, %v1157
        %v1168 = vmul.f32 %v1110, 0.99004984
        %v1169 = vmul.f32 %v1111, 0.99004984
        %v1170 = vsel %vm1160, 1.0, %v1168
        %v1171 = vsel %vm1161, 1.0, %v1169
        %v1172 = vsel %vm1160, 1, 0
        %v1173 = vsel %vm1161, 1, 0
        %v1174 = vcvt.s32.f32 %v1172
        %v1175 = vcvt.s32.f32 %v1173
        %s1176 = scalar_lea.vmem [#allocation2], 112
        %1177 = vst [vmem:[%s1176] sm:$0xff] %v1174
        %1178 = vst [vmem:[%s1176 + $0x8] sm:$0xff] %v1175
        %s1179 = scalar_lea.vmem %s519, 128 [#allocation3]
        %v1180 = vld [vmem:[%s1179] sm:$0xff]
        %v1181 = vld [vmem:[%s1179 + $0x8] sm:$0xff]
        %vm1182 = vcmp.le.f32.partialorder %v1164, 0.0
        %vm1183 = vcmp.le.f32.partialorder %v1165, 0.0
        %v1184 = vadd.f32 %v1180, -62.0
        %v1185 = vadd.f32 %v1181, -62.0
        %v1186 = vsub.f32 %v1184, %v1166
        %v1187 = vsub.f32 %v1185, %v1167
        %v1188 = vsub.f32 %v1166, -60.0
        %v1189 = vsub.f32 %v1167, -60.0
        %v1190 = vmul.f32 %v1188, 1.442695
        %v1191 = vpow.pop %v1190
        %v1192 = vmul.f32 %v1189, 1.442695
        %v1193 = vpow.pop %v1192
        %v1194 = vadd.f32 %v1186, %v1191
        %v1195 = vadd.f32 %v1187, %v1193
        %v1196 = vmul.f32 %v1158, 0.001
        %v1197 = vmul.f32 %v1159, 0.001
        %v1198 = vsub.f32 %v1194, %v1196
        %v1199 = vsub.f32 %v1195, %v1197
        %v1200 = vmul.f32 %v1198, 0.01
        %v1201 = vmul.f32 %v1199, 0.01
        %v1202 = vadd.f32 %v1166, %v1200
        %v1203 = vadd.f32 %v1167, %v1201
        %v1204 = vsub.f32 %v1202, -62.0
        %v1205 = vsub.f32 %v1203, -62.0
        %v1206 = vsub.f32 %v1204, %v1158
        %v1207 = vsub.f32 %v1205, %v1159
        %v1208 = vmul.f32 %v1206, 0.025
        %v1209 = vmul.f32 %v1207, 0.025
        %v1210 = vadd.f32 %v1158, %v1208
        %v1211 = vadd.f32 %v1159, %v1209
        %v1212 = vmul.f32 %v1174, 0.2
        %v1213 = vmul.f32 %v1175, 0.2
        %v1214 = vadd.f32 %v1210, %v1212
        %v1215 = vadd.f32 %v1211, %v1213
        %v1216 = vsel %vm1182, %v1202, %v1166
        %v1217 = vsel %vm1183, %v1203, %v1167
        %v1218 = vsel %vm1182, %v1214, %v1158
        %v1219 = vsel %vm1183, %v1215, %v1159
        %vm1220 = vcmp.ge.f32.partialorder %v1216, -52.0
        %vm1221 = vcmp.ge.f32.partialorder %v1217, -52.0
        %v1222 = vsub.f32 %v1164, 0.1
        %v1223 = vsub.f32 %v1165, 0.1
        %v1224 = vsel %vm1220, 5.0, %v1222
        %v1225 = vsel %vm1221, 5.0, %v1223
        %v1226 = vsel %vm1220, -62.0, %v1216
        %v1227 = vsel %vm1221, -62.0, %v1217
        %v1228 = vmul.f32 %v1170, 0.99004984
        %v1229 = vmul.f32 %v1171, 0.99004984
        %v1230 = vsel %vm1220, 1.0, %v1228
        %v1231 = vsel %vm1221, 1.0, %v1229
        %v1232 = vsel %vm1220, 1, 0
        %v1233 = vsel %vm1221, 1, 0
        %v1234 = vcvt.s32.f32 %v1232
        %v1235 = vcvt.s32.f32 %v1233
        %s1236 = scalar_lea.vmem [#allocation2], 128
        %1237 = vst [vmem:[%s1236] sm:$0xff] %v1234
        %1238 = vst [vmem:[%s1236 + $0x8] sm:$0xff] %v1235
        %s1239 = scalar_lea.vmem %s519, 144 [#allocation3]
        %v1240 = vld [vmem:[%s1239] sm:$0xff]
        %v1241 = vld [vmem:[%s1239 + $0x8] sm:$0xff]
        %vm1242 = vcmp.le.f32.partialorder %v1224, 0.0
        %vm1243 = vcmp.le.f32.partialorder %v1225, 0.0
        %v1244 = vadd.f32 %v1240, -62.0
        %v1245 = vadd.f32 %v1241, -62.0
        %v1246 = vsub.f32 %v1244, %v1226
        %v1247 = vsub.f32 %v1245, %v1227
        %v1248 = vsub.f32 %v1226, -60.0
        %v1249 = vsub.f32 %v1227, -60.0
        %v1250 = vmul.f32 %v1248, 1.442695
        %v1251 = vpow.pop %v1250
        %v1252 = vmul.f32 %v1249, 1.442695
        %v1253 = vpow.pop %v1252
        %v1254 = vadd.f32 %v1246, %v1251
        %v1255 = vadd.f32 %v1247, %v1253
        %v1256 = vmul.f32 %v1218, 0.001
        %v1257 = vmul.f32 %v1219, 0.001
        %v1258 = vsub.f32 %v1254, %v1256
        %v1259 = vsub.f32 %v1255, %v1257
        %v1260 = vmul.f32 %v1258, 0.01
        %v1261 = vmul.f32 %v1259, 0.01
        %v1262 = vadd.f32 %v1226, %v1260
        %v1263 = vadd.f32 %v1227, %v1261
        %v1264 = vsub.f32 %v1262, -62.0
        %v1265 = vsub.f32 %v1263, -62.0
        %v1266 = vsub.f32 %v1264, %v1218
        %v1267 = vsub.f32 %v1265, %v1219
        %v1268 = vmul.f32 %v1266, 0.025
        %v1269 = vmul.f32 %v1267, 0.025
        %v1270 = vadd.f32 %v1218, %v1268
        %v1271 = vadd.f32 %v1219, %v1269
        %v1272 = vmul.f32 %v1234, 0.2
        %v1273 = vmul.f32 %v1235, 0.2
        %v1274 = vadd.f32 %v1270, %v1272
        %v1275 = vadd.f32 %v1271, %v1273
        %v1276 = vsel %vm1242, %v1262, %v1226
        %v1277 = vsel %vm1243, %v1263, %v1227
        %v1278 = vsel %vm1242, %v1274, %v1218
        %v1279 = vsel %vm1243, %v1275, %v1219
        %vm1280 = vcmp.ge.f32.partialorder %v1276, -52.0
        %vm1281 = vcmp.ge.f32.partialorder %v1277, -52.0
        %v1282 = vsub.f32 %v1224, 0.1
        %v1283 = vsub.f32 %v1225, 0.1
        %v1284 = vsel %vm1280, 5.0, %v1282
        %v1285 = vsel %vm1281, 5.0, %v1283
        %v1286 = vsel %vm1280, -62.0, %v1276
        %v1287 = vsel %vm1281, -62.0, %v1277
        %v1288 = vmul.f32 %v1230, 0.99004984
        %v1289 = vmul.f32 %v1231, 0.99004984
        %v1290 = vsel %vm1280, 1.0, %v1288
        %v1291 = vsel %vm1281, 1.0, %v1289
        %v1292 = vsel %vm1280, 1, 0
        %v1293 = vsel %vm1281, 1, 0
        %v1294 = vcvt.s32.f32 %v1292
        %v1295 = vcvt.s32.f32 %v1293
        %s1296 = scalar_lea.vmem [#allocation2], 144
        %1297 = vst [vmem:[%s1296] sm:$0xff] %v1294
        %1298 = vst [vmem:[%s1296 + $0x8] sm:$0xff] %v1295
        %s1299 = scalar_lea.vmem %s519, 160 [#allocation3]
        %v1300 = vld [vmem:[%s1299] sm:$0xff]
        %v1301 = vld [vmem:[%s1299 + $0x8] sm:$0xff]
        %vm1302 = vcmp.le.f32.partialorder %v1284, 0.0
        %vm1303 = vcmp.le.f32.partialorder %v1285, 0.0
        %v1304 = vadd.f32 %v1300, -62.0
        %v1305 = vadd.f32 %v1301, -62.0
        %v1306 = vsub.f32 %v1304, %v1286
        %v1307 = vsub.f32 %v1305, %v1287
        %v1308 = vsub.f32 %v1286, -60.0
        %v1309 = vsub.f32 %v1287, -60.0
        %v1310 = vmul.f32 %v1308, 1.442695
        %v1311 = vpow.pop %v1310
        %v1312 = vmul.f32 %v1309, 1.442695
        %v1313 = vpow.pop %v1312
        %v1314 = vadd.f32 %v1306, %v1311
        %v1315 = vadd.f32 %v1307, %v1313
        %v1316 = vmul.f32 %v1278, 0.001
        %v1317 = vmul.f32 %v1279, 0.001
        %v1318 = vsub.f32 %v1314, %v1316
        %v1319 = vsub.f32 %v1315, %v1317
        %v1320 = vmul.f32 %v1318, 0.01
        %v1321 = vmul.f32 %v1319, 0.01
        %v1322 = vadd.f32 %v1286, %v1320
        %v1323 = vadd.f32 %v1287, %v1321
        %v1324 = vsub.f32 %v1322, -62.0
        %v1325 = vsub.f32 %v1323, -62.0
        %v1326 = vsub.f32 %v1324, %v1278
        %v1327 = vsub.f32 %v1325, %v1279
        %v1328 = vmul.f32 %v1326, 0.025
        %v1329 = vmul.f32 %v1327, 0.025
        %v1330 = vadd.f32 %v1278, %v1328
        %v1331 = vadd.f32 %v1279, %v1329
        %v1332 = vmul.f32 %v1294, 0.2
        %v1333 = vmul.f32 %v1295, 0.2
        %v1334 = vadd.f32 %v1330, %v1332
        %v1335 = vadd.f32 %v1331, %v1333
        %v1336 = vsel %vm1302, %v1322, %v1286
        %v1337 = vsel %vm1303, %v1323, %v1287
        %v1338 = vsel %vm1302, %v1334, %v1278
        %v1339 = vsel %vm1303, %v1335, %v1279
        %vm1340 = vcmp.ge.f32.partialorder %v1336, -52.0
        %vm1341 = vcmp.ge.f32.partialorder %v1337, -52.0
        %v1342 = vsub.f32 %v1284, 0.1
        %v1343 = vsub.f32 %v1285, 0.1
        %v1344 = vsel %vm1340, 5.0, %v1342
        %v1345 = vsel %vm1341, 5.0, %v1343
        %v1346 = vsel %vm1340, -62.0, %v1336
        %v1347 = vsel %vm1341, -62.0, %v1337
        %v1348 = vmul.f32 %v1290, 0.99004984
        %v1349 = vmul.f32 %v1291, 0.99004984
        %v1350 = vsel %vm1340, 1.0, %v1348
        %v1351 = vsel %vm1341, 1.0, %v1349
        %v1352 = vsel %vm1340, 1, 0
        %v1353 = vsel %vm1341, 1, 0
        %v1354 = vcvt.s32.f32 %v1352
        %v1355 = vcvt.s32.f32 %v1353
        %s1356 = scalar_lea.vmem [#allocation2], 160
        %1357 = vst [vmem:[%s1356] sm:$0xff] %v1354
        %1358 = vst [vmem:[%s1356 + $0x8] sm:$0xff] %v1355
        %s1359 = scalar_lea.vmem %s519, 176 [#allocation3]
        %v1360 = vld [vmem:[%s1359] sm:$0xff]
        %v1361 = vld [vmem:[%s1359 + $0x8] sm:$0xff]
        %vm1362 = vcmp.le.f32.partialorder %v1344, 0.0
        %vm1363 = vcmp.le.f32.partialorder %v1345, 0.0
        %v1364 = vadd.f32 %v1360, -62.0
        %v1365 = vadd.f32 %v1361, -62.0
        %v1366 = vsub.f32 %v1364, %v1346
        %v1367 = vsub.f32 %v1365, %v1347
        %v1368 = vsub.f32 %v1346, -60.0
        %v1369 = vsub.f32 %v1347, -60.0
        %v1370 = vmul.f32 %v1368, 1.442695
        %v1371 = vpow.pop %v1370
        %v1372 = vmul.f32 %v1369, 1.442695
        %v1373 = vpow.pop %v1372
        %v1374 = vadd.f32 %v1366, %v1371
        %v1375 = vadd.f32 %v1367, %v1373
        %v1376 = vmul.f32 %v1338, 0.001
        %v1377 = vmul.f32 %v1339, 0.001
        %v1378 = vsub.f32 %v1374, %v1376
        %v1379 = vsub.f32 %v1375, %v1377
        %v1380 = vmul.f32 %v1378, 0.01
        %v1381 = vmul.f32 %v1379, 0.01
        %v1382 = vadd.f32 %v1346, %v1380
        %v1383 = vadd.f32 %v1347, %v1381
        %v1384 = vsub.f32 %v1382, -62.0
        %v1385 = vsub.f32 %v1383, -62.0
        %v1386 = vsub.f32 %v1384, %v1338
        %v1387 = vsub.f32 %v1385, %v1339
        %v1388 = vmul.f32 %v1386, 0.025
        %v1389 = vmul.f32 %v1387, 0.025
        %v1390 = vadd.f32 %v1338, %v1388
        %v1391 = vadd.f32 %v1339, %v1389
        %v1392 = vmul.f32 %v1354, 0.2
        %v1393 = vmul.f32 %v1355, 0.2
        %v1394 = vadd.f32 %v1390, %v1392
        %v1395 = vadd.f32 %v1391, %v1393
        %v1396 = vsel %vm1362, %v1382, %v1346
        %v1397 = vsel %vm1363, %v1383, %v1347
        %v1398 = vsel %vm1362, %v1394, %v1338
        %v1399 = vsel %vm1363, %v1395, %v1339
        %vm1400 = vcmp.ge.f32.partialorder %v1396, -52.0
        %vm1401 = vcmp.ge.f32.partialorder %v1397, -52.0
        %v1402 = vsub.f32 %v1344, 0.1
        %v1403 = vsub.f32 %v1345, 0.1
        %v1404 = vsel %vm1400, 5.0, %v1402
        %v1405 = vsel %vm1401, 5.0, %v1403
        %v1406 = vsel %vm1400, -62.0, %v1396
        %v1407 = vsel %vm1401, -62.0, %v1397
        %v1408 = vmul.f32 %v1350, 0.99004984
        %v1409 = vmul.f32 %v1351, 0.99004984
        %v1410 = vsel %vm1400, 1.0, %v1408
        %v1411 = vsel %vm1401, 1.0, %v1409
        %v1412 = vsel %vm1400, 1, 0
        %v1413 = vsel %vm1401, 1, 0
        %v1414 = vcvt.s32.f32 %v1412
        %v1415 = vcvt.s32.f32 %v1413
        %s1416 = scalar_lea.vmem [#allocation2], 176
        %1417 = vst [vmem:[%s1416] sm:$0xff] %v1414
        %1418 = vst [vmem:[%s1416 + $0x8] sm:$0xff] %v1415
        %s1419 = scalar_lea.vmem %s519, 192 [#allocation3]
        %v1420 = vld [vmem:[%s1419] sm:$0xff]
        %v1421 = vld [vmem:[%s1419 + $0x8] sm:$0xff]
        %vm1422 = vcmp.le.f32.partialorder %v1404, 0.0
        %vm1423 = vcmp.le.f32.partialorder %v1405, 0.0
        %v1424 = vadd.f32 %v1420, -62.0
        %v1425 = vadd.f32 %v1421, -62.0
        %v1426 = vsub.f32 %v1424, %v1406
        %v1427 = vsub.f32 %v1425, %v1407
        %v1428 = vsub.f32 %v1406, -60.0
        %v1429 = vsub.f32 %v1407, -60.0
        %v1430 = vmul.f32 %v1428, 1.442695
        %v1431 = vpow.pop %v1430
        %v1432 = vmul.f32 %v1429, 1.442695
        %v1433 = vpow.pop %v1432
        %v1434 = vadd.f32 %v1426, %v1431
        %v1435 = vadd.f32 %v1427, %v1433
        %v1436 = vmul.f32 %v1398, 0.001
        %v1437 = vmul.f32 %v1399, 0.001
        %v1438 = vsub.f32 %v1434, %v1436
        %v1439 = vsub.f32 %v1435, %v1437
        %v1440 = vmul.f32 %v1438, 0.01
        %v1441 = vmul.f32 %v1439, 0.01
        %v1442 = vadd.f32 %v1406, %v1440
        %v1443 = vadd.f32 %v1407, %v1441
        %v1444 = vsub.f32 %v1442, -62.0
        %v1445 = vsub.f32 %v1443, -62.0
        %v1446 = vsub.f32 %v1444, %v1398
        %v1447 = vsub.f32 %v1445, %v1399
        %v1448 = vmul.f32 %v1446, 0.025
        %v1449 = vmul.f32 %v1447, 0.025
        %v1450 = vadd.f32 %v1398, %v1448
        %v1451 = vadd.f32 %v1399, %v1449
        %v1452 = vmul.f32 %v1414, 0.2
        %v1453 = vmul.f32 %v1415, 0.2
        %v1454 = vadd.f32 %v1450, %v1452
        %v1455 = vadd.f32 %v1451, %v1453
        %v1456 = vsel %vm1422, %v1442, %v1406
        %v1457 = vsel %vm1423, %v1443, %v1407
        %v1458 = vsel %vm1422, %v1454, %v1398
        %v1459 = vsel %vm1423, %v1455, %v1399
        %vm1460 = vcmp.ge.f32.partialorder %v1456, -52.0
        %vm1461 = vcmp.ge.f32.partialorder %v1457, -52.0
        %v1462 = vsub.f32 %v1404, 0.1
        %v1463 = vsub.f32 %v1405, 0.1
        %v1464 = vsel %vm1460, 5.0, %v1462
        %v1465 = vsel %vm1461, 5.0, %v1463
        %v1466 = vsel %vm1460, -62.0, %v1456
        %v1467 = vsel %vm1461, -62.0, %v1457
        %v1468 = vmul.f32 %v1410, 0.99004984
        %v1469 = vmul.f32 %v1411, 0.99004984
        %v1470 = vsel %vm1460, 1.0, %v1468
        %v1471 = vsel %vm1461, 1.0, %v1469
        %v1472 = vsel %vm1460, 1, 0
        %v1473 = vsel %vm1461, 1, 0
        %v1474 = vcvt.s32.f32 %v1472
        %v1475 = vcvt.s32.f32 %v1473
        %s1476 = scalar_lea.vmem [#allocation2], 192
        %1477 = vst [vmem:[%s1476] sm:$0xff] %v1474
        %1478 = vst [vmem:[%s1476 + $0x8] sm:$0xff] %v1475
        %s1479 = scalar_lea.vmem %s519, 208 [#allocation3]
        %v1480 = vld [vmem:[%s1479] sm:$0xff]
        %v1481 = vld [vmem:[%s1479 + $0x8] sm:$0xff]
        %vm1482 = vcmp.le.f32.partialorder %v1464, 0.0
        %vm1483 = vcmp.le.f32.partialorder %v1465, 0.0
        %v1484 = vadd.f32 %v1480, -62.0
        %v1485 = vadd.f32 %v1481, -62.0
        %v1486 = vsub.f32 %v1484, %v1466
        %v1487 = vsub.f32 %v1485, %v1467
        %v1488 = vsub.f32 %v1466, -60.0
        %v1489 = vsub.f32 %v1467, -60.0
        %v1490 = vmul.f32 %v1488, 1.442695
        %v1491 = vpow.pop %v1490
        %v1492 = vmul.f32 %v1489, 1.442695
        %v1493 = vpow.pop %v1492
        %v1494 = vadd.f32 %v1486, %v1491
        %v1495 = vadd.f32 %v1487, %v1493
        %v1496 = vmul.f32 %v1458, 0.001
        %v1497 = vmul.f32 %v1459, 0.001
        %v1498 = vsub.f32 %v1494, %v1496
        %v1499 = vsub.f32 %v1495, %v1497
        %v1500 = vmul.f32 %v1498, 0.01
        %v1501 = vmul.f32 %v1499, 0.01
        %v1502 = vadd.f32 %v1466, %v1500
        %v1503 = vadd.f32 %v1467, %v1501
        %v1504 = vsub.f32 %v1502, -62.0
        %v1505 = vsub.f32 %v1503, -62.0
        %v1506 = vsub.f32 %v1504, %v1458
        %v1507 = vsub.f32 %v1505, %v1459
        %v1508 = vmul.f32 %v1506, 0.025
        %v1509 = vmul.f32 %v1507, 0.025
        %v1510 = vadd.f32 %v1458, %v1508
        %v1511 = vadd.f32 %v1459, %v1509
        %v1512 = vmul.f32 %v1474, 0.2
        %v1513 = vmul.f32 %v1475, 0.2
        %v1514 = vadd.f32 %v1510, %v1512
        %v1515 = vadd.f32 %v1511, %v1513
        %v1516 = vsel %vm1482, %v1502, %v1466
        %v1517 = vsel %vm1483, %v1503, %v1467
        %v1518 = vsel %vm1482, %v1514, %v1458
        %v1519 = vsel %vm1483, %v1515, %v1459
        %vm1520 = vcmp.ge.f32.partialorder %v1516, -52.0
        %vm1521 = vcmp.ge.f32.partialorder %v1517, -52.0
        %v1522 = vsub.f32 %v1464, 0.1
        %v1523 = vsub.f32 %v1465, 0.1
        %v1524 = vsel %vm1520, 5.0, %v1522
        %v1525 = vsel %vm1521, 5.0, %v1523
        %v1526 = vsel %vm1520, -62.0, %v1516
        %v1527 = vsel %vm1521, -62.0, %v1517
        %v1528 = vmul.f32 %v1470, 0.99004984
        %v1529 = vmul.f32 %v1471, 0.99004984
        %v1530 = vsel %vm1520, 1.0, %v1528
        %v1531 = vsel %vm1521, 1.0, %v1529
        %v1532 = vsel %vm1520, 1, 0
        %v1533 = vsel %vm1521, 1, 0
        %v1534 = vcvt.s32.f32 %v1532
        %v1535 = vcvt.s32.f32 %v1533
        %s1536 = scalar_lea.vmem [#allocation2], 208
        %1537 = vst [vmem:[%s1536] sm:$0xff] %v1534
        %1538 = vst [vmem:[%s1536 + $0x8] sm:$0xff] %v1535
        %s1539 = scalar_lea.vmem %s519, 224 [#allocation3]
        %v1540 = vld [vmem:[%s1539] sm:$0xff]
        %v1541 = vld [vmem:[%s1539 + $0x8] sm:$0xff]
        %vm1542 = vcmp.le.f32.partialorder %v1524, 0.0
        %vm1543 = vcmp.le.f32.partialorder %v1525, 0.0
        %v1544 = vadd.f32 %v1540, -62.0
        %v1545 = vadd.f32 %v1541, -62.0
        %v1546 = vsub.f32 %v1544, %v1526
        %v1547 = vsub.f32 %v1545, %v1527
        %v1548 = vsub.f32 %v1526, -60.0
        %v1549 = vsub.f32 %v1527, -60.0
        %v1550 = vmul.f32 %v1548, 1.442695
        %v1551 = vpow.pop %v1550
        %v1552 = vmul.f32 %v1549, 1.442695
        %v1553 = vpow.pop %v1552
        %v1554 = vadd.f32 %v1546, %v1551
        %v1555 = vadd.f32 %v1547, %v1553
        %v1556 = vmul.f32 %v1518, 0.001
        %v1557 = vmul.f32 %v1519, 0.001
        %v1558 = vsub.f32 %v1554, %v1556
        %v1559 = vsub.f32 %v1555, %v1557
        %v1560 = vmul.f32 %v1558, 0.01
        %v1561 = vmul.f32 %v1559, 0.01
        %v1562 = vadd.f32 %v1526, %v1560
        %v1563 = vadd.f32 %v1527, %v1561
        %v1564 = vsub.f32 %v1562, -62.0
        %v1565 = vsub.f32 %v1563, -62.0
        %v1566 = vsub.f32 %v1564, %v1518
        %v1567 = vsub.f32 %v1565, %v1519
        %v1568 = vmul.f32 %v1566, 0.025
        %v1569 = vmul.f32 %v1567, 0.025
        %v1570 = vadd.f32 %v1518, %v1568
        %v1571 = vadd.f32 %v1519, %v1569
        %v1572 = vmul.f32 %v1534, 0.2
        %v1573 = vmul.f32 %v1535, 0.2
        %v1574 = vadd.f32 %v1570, %v1572
        %v1575 = vadd.f32 %v1571, %v1573
        %v1576 = vsel %vm1542, %v1562, %v1526
        %v1577 = vsel %vm1543, %v1563, %v1527
        %v1578 = vsel %vm1542, %v1574, %v1518
        %v1579 = vsel %vm1543, %v1575, %v1519
        %vm1580 = vcmp.ge.f32.partialorder %v1576, -52.0
        %vm1581 = vcmp.ge.f32.partialorder %v1577, -52.0
        %v1582 = vsub.f32 %v1524, 0.1
        %v1583 = vsub.f32 %v1525, 0.1
        %v1584 = vsel %vm1580, 5.0, %v1582
        %v1585 = vsel %vm1581, 5.0, %v1583
        %v1586 = vsel %vm1580, -62.0, %v1576
        %v1587 = vsel %vm1581, -62.0, %v1577
        %v1588 = vmul.f32 %v1530, 0.99004984
        %v1589 = vmul.f32 %v1531, 0.99004984
        %v1590 = vsel %vm1580, 1.0, %v1588
        %v1591 = vsel %vm1581, 1.0, %v1589
        %v1592 = vsel %vm1580, 1, 0
        %v1593 = vsel %vm1581, 1, 0
        %v1594 = vcvt.s32.f32 %v1592
        %v1595 = vcvt.s32.f32 %v1593
        %s1596 = scalar_lea.vmem [#allocation2], 224
        %1597 = vst [vmem:[%s1596] sm:$0xff] %v1594
        %1598 = vst [vmem:[%s1596 + $0x8] sm:$0xff] %v1595
        %s1599 = scalar_lea.vmem %s519, 240 [#allocation3]
        %v1600 = vld [vmem:[%s1599] sm:$0xff]
        %v1601 = vld [vmem:[%s1599 + $0x8] sm:$0xff]
        %vm1602 = vcmp.le.f32.partialorder %v1584, 0.0
        %vm1603 = vcmp.le.f32.partialorder %v1585, 0.0
        %v1604 = vadd.f32 %v1600, -62.0
        %v1605 = vadd.f32 %v1601, -62.0
        %v1606 = vsub.f32 %v1604, %v1586
        %v1607 = vsub.f32 %v1605, %v1587
        %v1608 = vsub.f32 %v1586, -60.0
        %v1609 = vsub.f32 %v1587, -60.0
        %v1610 = vmul.f32 %v1608, 1.442695
        %v1611 = vpow.pop %v1610
        %v1612 = vmul.f32 %v1609, 1.442695
        %v1613 = vpow.pop %v1612
        %v1614 = vadd.f32 %v1606, %v1611
        %v1615 = vadd.f32 %v1607, %v1613
        %v1616 = vmul.f32 %v1578, 0.001
        %v1617 = vmul.f32 %v1579, 0.001
        %v1618 = vsub.f32 %v1614, %v1616
        %v1619 = vsub.f32 %v1615, %v1617
        %v1620 = vmul.f32 %v1618, 0.01
        %v1621 = vmul.f32 %v1619, 0.01
        %v1622 = vadd.f32 %v1586, %v1620
        %v1623 = vadd.f32 %v1587, %v1621
        %v1624 = vsub.f32 %v1622, -62.0
        %v1625 = vsub.f32 %v1623, -62.0
        %v1626 = vsub.f32 %v1624, %v1578
        %v1627 = vsub.f32 %v1625, %v1579
        %v1628 = vmul.f32 %v1626, 0.025
        %v1629 = vmul.f32 %v1627, 0.025
        %v1630 = vadd.f32 %v1578, %v1628
        %v1631 = vadd.f32 %v1579, %v1629
        %v1632 = vmul.f32 %v1594, 0.2
        %v1633 = vmul.f32 %v1595, 0.2
        %v1634 = vadd.f32 %v1630, %v1632
        %v1635 = vadd.f32 %v1631, %v1633
        %v1636 = vsel %vm1602, %v1622, %v1586
        %v1637 = vsel %vm1603, %v1623, %v1587
        %v1638 = vsel %vm1602, %v1634, %v1578
        %v1639 = vsel %vm1603, %v1635, %v1579
        %vm1640 = vcmp.ge.f32.partialorder %v1636, -52.0
        %vm1641 = vcmp.ge.f32.partialorder %v1637, -52.0
        %v1642 = vsub.f32 %v1584, 0.1
        %v1643 = vsub.f32 %v1585, 0.1
        %v1644 = vsel %vm1640, 5.0, %v1642
        %v1645 = vsel %vm1641, 5.0, %v1643
        %v1646 = vsel %vm1640, -62.0, %v1636
        %v1647 = vsel %vm1641, -62.0, %v1637
        %v1648 = vmul.f32 %v1590, 0.99004984
        %v1649 = vmul.f32 %v1591, 0.99004984
        %v1650 = vsel %vm1640, 1.0, %v1648
        %v1651 = vsel %vm1641, 1.0, %v1649
        %v1652 = vsel %vm1640, 1, 0
        %v1653 = vsel %vm1641, 1, 0
        %v1654 = vcvt.s32.f32 %v1652
        %v1655 = vcvt.s32.f32 %v1653
        %s1656 = scalar_lea.vmem [#allocation2], 240
        %1657 = vst [vmem:[%s1656] sm:$0xff] %v1654
        %1658 = vst [vmem:[%s1656 + $0x8] sm:$0xff] %v1655
        %1659 = vst [vmem:[%s617] sm:$0xff] %v1646
        %1660 = vst [vmem:[%s617 + $0x8] sm:$0xff] %v1647
        %1661 = vst [vmem:[%s624] sm:$0xff] %v1638
        %1662 = vst [vmem:[%s624 + $0x8] sm:$0xff] %v1639
        %1663 = vst [vmem:[%s631] sm:$0xff] %v1644
        %1664 = vst [vmem:[%s631 + $0x8] sm:$0xff] %v1645
        %1665 = vst [vmem:[%s638] sm:$0xff] %v1654
        %1666 = vst [vmem:[%s638 + $0x8] sm:$0xff] %v1655
        %1667 = vst [vmem:[%s645] sm:$0xff] %v1650
        %1668 = vst [vmem:[%s645 + $0x8] sm:$0xff] %v1651
        %v1669 = vld [vmem:[#allocation2] sm:$0xff]
        %v1670 = vld [vmem:[#allocation2 + $0x8] sm:$0xff]
        %v1671 = vld [vmem:[#allocation2 + $0x10] sm:$0xff]
        %v1672 = vld [vmem:[#allocation2 + $0x18] sm:$0xff]
        %v1673 = vld [vmem:[#allocation2 + $0x20] sm:$0xff]
        %v1674 = vld [vmem:[#allocation2 + $0x28] sm:$0xff]
        %v1675 = vld [vmem:[#allocation2 + $0x30] sm:$0xff]
        %v1676 = vld [vmem:[#allocation2 + $0x38] sm:$0xff]
        %v1677 = vld [vmem:[#allocation2 + $0x40] sm:$0xff]
        %v1678 = vld [vmem:[#allocation2 + $0x48] sm:$0xff]
        %v1679 = vld [vmem:[#allocation2 + $0x50] sm:$0xff]
        %v1680 = vld [vmem:[#allocation2 + $0x58] sm:$0xff]
        %v1681 = vld [vmem:[#allocation2 + $0x60] sm:$0xff]
        %v1682 = vld [vmem:[#allocation2 + $0x68] sm:$0xff]
        %v1683 = vld [vmem:[#allocation2 + $0x70] sm:$0xff]
        %v1684 = vld [vmem:[#allocation2 + $0x78] sm:$0xff]
        %v1685 = vld [vmem:[#allocation2 + $0x80] sm:$0xff]
        %v1686 = vld [vmem:[#allocation2 + $0x88] sm:$0xff]
        %v1687 = vld [vmem:[#allocation2 + $0x90] sm:$0xff]
        %v1688 = vld [vmem:[#allocation2 + $0x98] sm:$0xff]
        %v1689 = vld [vmem:[#allocation2 + $0xa0] sm:$0xff]
        %v1690 = vld [vmem:[#allocation2 + $0xa8] sm:$0xff]
        %v1691 = vld [vmem:[#allocation2 + $0xb0] sm:$0xff]
        %v1692 = vld [vmem:[#allocation2 + $0xb8] sm:$0xff]
        %v1693 = vld [vmem:[#allocation2 + $0xc0] sm:$0xff]
        %v1694 = vld [vmem:[#allocation2 + $0xc8] sm:$0xff]
        %v1695 = vld [vmem:[#allocation2 + $0xd0] sm:$0xff]
        %v1696 = vld [vmem:[#allocation2 + $0xd8] sm:$0xff]
        %v1697 = vld [vmem:[#allocation2 + $0xe0] sm:$0xff]
        %v1698 = vld [vmem:[#allocation2 + $0xe8] sm:$0xff]
        %v1699 = vld [vmem:[#allocation2 + $0xf0] sm:$0xff]
        %v1700 = vld [vmem:[#allocation2 + $0xf8] sm:$0xff]
        %v1701 = vpack.c.bf16 %v1669, %v1669
        %v1702 = vpack.c.bf16 %v1670, %v1670
        %v1703 = vpack.c.bf16 %v1671, %v1671
        %v1704 = vpack.c.bf16 %v1672, %v1672
        %v1705 = vpack.c.bf16 %v1673, %v1673
        %v1706 = vpack.c.bf16 %v1674, %v1674
        %v1707 = vpack.c.bf16 %v1675, %v1675
        %v1708 = vpack.c.bf16 %v1676, %v1676
        %v1709 = vpack.c.bf16 %v1677, %v1677
        %v1710 = vpack.c.bf16 %v1678, %v1678
        %v1711 = vpack.c.bf16 %v1679, %v1679
        %v1712 = vpack.c.bf16 %v1680, %v1680
        %v1713 = vpack.c.bf16 %v1681, %v1681
        %v1714 = vpack.c.bf16 %v1682, %v1682
        %v1715 = vpack.c.bf16 %v1683, %v1683
        %v1716 = vpack.c.bf16 %v1684, %v1684
        %v1717 = vpack.c.bf16 %v1685, %v1685
        %v1718 = vpack.c.bf16 %v1686, %v1686
        %v1719 = vpack.c.bf16 %v1687, %v1687
        %v1720 = vpack.c.bf16 %v1688, %v1688
        %v1721 = vpack.c.bf16 %v1689, %v1689
        %v1722 = vpack.c.bf16 %v1690, %v1690
        %v1723 = vpack.c.bf16 %v1691, %v1691
        %v1724 = vpack.c.bf16 %v1692, %v1692
        %v1725 = vpack.c.bf16 %v1693, %v1693
        %v1726 = vpack.c.bf16 %v1694, %v1694
        %v1727 = vpack.c.bf16 %v1695, %v1695
        %v1728 = vpack.c.bf16 %v1696, %v1696
        %v1729 = vpack.c.bf16 %v1697, %v1697
        %v1730 = vpack.c.bf16 %v1698, %v1698
        %v1731 = vpack.c.bf16 %v1699, %v1699
        %v1732 = vpack.c.bf16 %v1700, %v1700
        %v1765 = vunpack.c.l.b16 %v1701
        %v1766 = vunpack.c.l.b16 %v1702
        %v1767 = vunpack.c.l.b16 %v1703
        %v1768 = vunpack.c.l.b16 %v1704
        %v1769 = vunpack.c.l.b16 %v1705
        %v1770 = vunpack.c.l.b16 %v1706
        %v1771 = vunpack.c.l.b16 %v1707
        %v1772 = vunpack.c.l.b16 %v1708
        %v1773 = vunpack.c.l.b16 %v1709
        %v1774 = vunpack.c.l.b16 %v1710
        %v1775 = vunpack.c.l.b16 %v1711
        %v1776 = vunpack.c.l.b16 %v1712
        %v1777 = vunpack.c.l.b16 %v1713
        %v1778 = vunpack.c.l.b16 %v1714
        %v1779 = vunpack.c.l.b16 %v1715
        %v1780 = vunpack.c.l.b16 %v1716
        %v1781 = vunpack.c.l.b16 %v1717
        %v1782 = vunpack.c.l.b16 %v1718
        %v1783 = vunpack.c.l.b16 %v1719
        %v1784 = vunpack.c.l.b16 %v1720
        %v1785 = vunpack.c.l.b16 %v1721
        %v1786 = vunpack.c.l.b16 %v1722
        %v1787 = vunpack.c.l.b16 %v1723
        %v1788 = vunpack.c.l.b16 %v1724
        %v1789 = vunpack.c.l.b16 %v1725
        %v1790 = vunpack.c.l.b16 %v1726
        %v1791 = vunpack.c.l.b16 %v1727
        %v1792 = vunpack.c.l.b16 %v1728
        %v1793 = vunpack.c.l.b16 %v1729
        %v1794 = vunpack.c.l.b16 %v1730
        %v1795 = vunpack.c.l.b16 %v1731
        %v1796 = vunpack.c.l.b16 %v1732
        %v1797 = vpack.c.b16 %v1766, %v1765
        %v1798 = vpack.c.b16 %v1768, %v1767
        %v1799 = vpack.c.b16 %v1770, %v1769
        %v1800 = vpack.c.b16 %v1772, %v1771
        %v1801 = vpack.c.b16 %v1774, %v1773
        %v1802 = vpack.c.b16 %v1776, %v1775
        %v1803 = vpack.c.b16 %v1778, %v1777
        %v1804 = vpack.c.b16 %v1780, %v1779
        %v1805 = vpack.c.b16 %v1782, %v1781
        %v1806 = vpack.c.b16 %v1784, %v1783
        %v1807 = vpack.c.b16 %v1786, %v1785
        %v1808 = vpack.c.b16 %v1788, %v1787
        %v1809 = vpack.c.b16 %v1790, %v1789
        %v1810 = vpack.c.b16 %v1792, %v1791
        %v1811 = vpack.c.b16 %v1794, %v1793
        %v1812 = vpack.c.b16 %v1796, %v1795
        %1829 = vst [vmem:[%s652] sm:$0xff] %v1797
        %1830 = vst [vmem:[%s652 + $0x8] sm:$0xff] %v1798
        %1831 = vst [vmem:[%s652 + $0x10] sm:$0xff] %v1799
        %1832 = vst [vmem:[%s652 + $0x18] sm:$0xff] %v1800
        %1833 = vst [vmem:[%s652 + $0x20] sm:$0xff] %v1801
        %1834 = vst [vmem:[%s652 + $0x28] sm:$0xff] %v1802
        %1835 = vst [vmem:[%s652 + $0x30] sm:$0xff] %v1803
        %1836 = vst [vmem:[%s652 + $0x38] sm:$0xff] %v1804
        %1837 = vst [vmem:[%s652 + $0x40] sm:$0xff] %v1805
        %1838 = vst [vmem:[%s652 + $0x48] sm:$0xff] %v1806
        %1839 = vst [vmem:[%s652 + $0x50] sm:$0xff] %v1807
        %1840 = vst [vmem:[%s652 + $0x58] sm:$0xff] %v1808
        %1841 = vst [vmem:[%s652 + $0x60] sm:$0xff] %v1809
        %1842 = vst [vmem:[%s652 + $0x68] sm:$0xff] %v1810
        %1843 = vst [vmem:[%s652 + $0x70] sm:$0xff] %v1811
        %1844 = vst [vmem:[%s652 + $0x78] sm:$0xff] %v1812
        %s1845 = sand.u32 %s225, 1
        %s1846 = scalar_lea.sflag [#allocation5], %s1845
        %s1847 = sand.u32 %s225, 1
        %s1848 = smul.addr %s1847, 16
        %s1849 = scalar_lea.vmem [#allocation14], %s1848
        %s1850 = sand.u32 %s47, 1
        %s1851 = scalar_lea.sflag [#allocation16], %s1850
        %s1852 = sand.u32 %s251, 1
        %s1853 = smul.addr %s1852, 16
        %s1854 = scalar_lea.vmem [#allocation15], %s1853
        %s1855 = sand.u32 %s47, 1
        %s1856 = scalar_lea.sflag [#allocation16], %s1855
        %s1857 = sand.u32 %s277, 1
        %s1858 = smul.addr %s1857, 16
        %s1859 = scalar_lea.vmem [#allocation17], %s1858
        %s1860 = sand.u32 %s47, 1
        %s1861 = scalar_lea.sflag [#allocation19], %s1860
        %s1862 = sand.u32 %s303, 1
        %s1863 = smul.addr %s1862, 16
        %s1864 = scalar_lea.vmem [#allocation18], %s1863
        %s1865 = sand.u32 %s47, 1
        %s1866 = scalar_lea.sflag [#allocation19], %s1865
        %s1867 = sand.u32 %s329, 1
        %s1868 = smul.addr %s1867, 16
        %s1869 = scalar_lea.vmem [#allocation20], %s1868
        %s1870 = sand.u32 %s357, 1
        %s1871 = scalar_lea.sflag [#allocation22], %s1870
        %s1872 = sand.u32 %s357, 1
        %s1873 = smul.addr %s1872, 128
        %s1874 = scalar_lea.vmem [#allocation21], %s1873
        // Predicated region
        $region73: #{aelif_run.1} parent=43 // pred_check
          %p1875 = pneg %p235
        $region74: #{aelif_run.1} parent=43 // pred_check_branch
          %1877 = sbr.rel (%p1875) target = $region76
        $region75: #{aelif_run.1} parent=43 // pred_region
          %s1878 = smul.u32 2, %s51
          %s1880 = ssub.s32 256, 256
          %1881 = vsyncadd %s1846, %s1880
          %s1882 = smul.addr %s1878, 128
          %s1883 = scalar_lea.hbm %s6, %s1882
          %s1885 = sshll.u32 %s1849, 4
          %s1886 = int_to_ptr.vmem [resolvable:$true] %s1885
          %1888 = dma.vmem_to_hbm [thread:$0]  %s1886, 256, %s1883, %s1846
        $region76: #{aelif_run.1} parent=43 // pred_fallthru
          _
        // Predicated region
        $region77: #{aelif_run.1} parent=43 // pred_check
          %p1889 = pneg %p261
        $region78: #{aelif_run.1} parent=43 // pred_check_branch
          %1891 = sbr.rel (%p1889) target = $region80
        $region79: #{aelif_run.1} parent=43 // pred_region
          %s1892 = smul.u32 2, %s51
          %s1894 = ssub.s32 256, 256
          %1895 = vsyncadd %s1851, %s1894
          %s1896 = smul.addr %s1892, 128
          %s1897 = scalar_lea.hbm %s7, %s1896
          %s1899 = sshll.u32 %s1854, 4
          %s1900 = int_to_ptr.vmem [resolvable:$true] %s1899
          %1902 = dma.vmem_to_hbm [thread:$0]  %s1900, 256, %s1897, %s1851
        $region80: #{aelif_run.1} parent=43 // pred_fallthru
          _
        // Predicated region
        $region81: #{aelif_run.1} parent=43 // pred_check
          %p1903 = pneg %p287
        $region82: #{aelif_run.1} parent=43 // pred_check_branch
          %1905 = sbr.rel (%p1903) target = $region84
        $region83: #{aelif_run.1} parent=43 // pred_region
          %s1906 = smul.u32 2, %s51
          %s1908 = ssub.s32 256, 256
          %1909 = vsyncadd %s1856, %s1908
          %s1910 = smul.addr %s1906, 128
          %s1911 = scalar_lea.hbm %s8, %s1910
          %s1913 = sshll.u32 %s1859, 4
          %s1914 = int_to_ptr.vmem [resolvable:$true] %s1913
          %1916 = dma.vmem_to_hbm [thread:$0]  %s1914, 256, %s1911, %s1856
        $region84: #{aelif_run.1} parent=43 // pred_fallthru
          _
        // Predicated region
        $region85: #{aelif_run.1} parent=43 // pred_check
          %p1917 = pneg %p313
        $region86: #{aelif_run.1} parent=43 // pred_check_branch
          %1919 = sbr.rel (%p1917) target = $region88
        $region87: #{aelif_run.1} parent=43 // pred_region
          %s1920 = smul.u32 2, %s51
          %s1922 = ssub.s32 256, 256
          %1923 = vsyncadd %s1861, %s1922
          %s1924 = smul.addr %s1920, 128
          %s1925 = scalar_lea.hbm %s9, %s1924
          %s1927 = sshll.u32 %s1864, 4
          %s1928 = int_to_ptr.vmem [resolvable:$true] %s1927
          %1930 = dma.vmem_to_hbm [thread:$0]  %s1928, 256, %s1925, %s1861
        $region88: #{aelif_run.1} parent=43 // pred_fallthru
          _
        // Predicated region
        $region89: #{aelif_run.1} parent=43 // pred_check
          %p1931 = pneg %p339
        $region90: #{aelif_run.1} parent=43 // pred_check_branch
          %1933 = sbr.rel (%p1931) target = $region92
        $region91: #{aelif_run.1} parent=43 // pred_region
          %s1934 = smul.u32 2, %s51
          %s1936 = ssub.s32 256, 256
          %1937 = vsyncadd %s1866, %s1936
          %s1938 = smul.addr %s1934, 128
          %s1939 = scalar_lea.hbm %s10, %s1938
          %s1941 = sshll.u32 %s1869, 4
          %s1942 = int_to_ptr.vmem [resolvable:$true] %s1941
          %1944 = dma.vmem_to_hbm [thread:$0]  %s1942, 256, %s1939, %s1866
        $region92: #{aelif_run.1} parent=43 // pred_fallthru
          _
        // Predicated region
        $region93: #{aelif_run.1} parent=43 // pred_check
          %p1945 = pneg %p367
        $region94: #{aelif_run.1} parent=43 // pred_check_branch
          %1947 = sbr.rel (%p1945) target = $region96
        $region95: #{aelif_run.1} parent=43 // pred_region
          %s1948 = smul.u32 16, %s52
          %s1949 = smul.u32 2, %s51
          %s1951 = ssub.s32 2048, 2048
          %1952 = vsyncadd %s1871, %s1951
          %s1953 = smul.addr %s1948, 4
          %s1954 = sadd.s32 %s1949, %s1953
          %s1955 = smul.addr %s1954, 64
          %s1956 = scalar_lea.hbm %s11, %s1955
          %s1957 = sshll.u32 %s1874, 4
          %s1958 = int_to_ptr.vmem [resolvable:$true] %s1957
          %1963 = dma.vmem_to_hbm [thread:$0]  %s1958, 2048, %s1956, %s1871, 128, 256, 8
        $region96: #{aelif_run.1} parent=43 // pred_fallthru
          _
      $region44: #{aelif_run.1} parent=5 // pred_fallthru
        _
      %p1964 = scmp.le.s32.totalorder 2, %s42
      // Predicated region
      $region97: #{aelif_run.1} parent=5 // pred_check
        %p1965 = pneg %p1964
      $region98: #{aelif_run.1} parent=5 // pred_check_branch
        %1967 = sbr.rel (%p1965) target = $region100
      $region99: #{aelif_run.1} parent=5 // pred_region
        %s1968 = ssub.s32 %s42, 2
        // Predicated region
        $region101: #{aelif_run.1} parent=99 // pred_check
          %p1969 = pneg %p241
        $region102: #{aelif_run.1} parent=99 // pred_check_branch
          %1971 = sbr.rel (%p1969) target = $region104
        $region103: #{aelif_run.1} parent=99 // pred_region
          %s1972 = sand.u32 %s226, 1
          %s1973 = scalar_lea.sflag [#allocation5], %s1972
          %s1974 = sand.u32 %s226, 1
          %s1975 = smul.addr %s1974, 16
          %s1976 = scalar_lea.vmem [#allocation14], %s1975
          %1977 = dma.done %s1973, 256
        $region104: #{aelif_run.1} parent=99 // pred_fallthru
          _
        // Predicated region
        $region105: #{aelif_run.1} parent=99 // pred_check
          %p1978 = pneg %p267
        $region106: #{aelif_run.1} parent=99 // pred_check_branch
          %1980 = sbr.rel (%p1978) target = $region108
        $region107: #{aelif_run.1} parent=99 // pred_region
          %s1981 = sand.u32 %s48, 1
          %s1982 = scalar_lea.sflag [#allocation16], %s1981
          %s1983 = sand.u32 %s252, 1
          %s1984 = smul.addr %s1983, 16
          %s1985 = scalar_lea.vmem [#allocation15], %s1984
          %1986 = dma.done %s1982, 256
        $region108: #{aelif_run.1} parent=99 // pred_fallthru
          _
        // Predicated region
        $region109: #{aelif_run.1} parent=99 // pred_check
          %p1987 = pneg %p293
        $region110: #{aelif_run.1} parent=99 // pred_check_branch
          %1989 = sbr.rel (%p1987) target = $region112
        $region111: #{aelif_run.1} parent=99 // pred_region
          %s1990 = sand.u32 %s48, 1
          %s1991 = scalar_lea.sflag [#allocation16], %s1990
          %s1992 = sand.u32 %s278, 1
          %s1993 = smul.addr %s1992, 16
          %s1994 = scalar_lea.vmem [#allocation17], %s1993
          %1995 = dma.done %s1991, 256
        $region112: #{aelif_run.1} parent=99 // pred_fallthru
          _
        // Predicated region
        $region113: #{aelif_run.1} parent=99 // pred_check
          %p1996 = pneg %p319
        $region114: #{aelif_run.1} parent=99 // pred_check_branch
          %1998 = sbr.rel (%p1996) target = $region116
        $region115: #{aelif_run.1} parent=99 // pred_region
          %s1999 = sand.u32 %s48, 1
          %s2000 = scalar_lea.sflag [#allocation19], %s1999
          %s2001 = sand.u32 %s304, 1
          %s2002 = smul.addr %s2001, 16
          %s2003 = scalar_lea.vmem [#allocation18], %s2002
          %2004 = dma.done %s2000, 256
        $region116: #{aelif_run.1} parent=99 // pred_fallthru
          _
        // Predicated region
        $region117: #{aelif_run.1} parent=99 // pred_check
          %p2005 = pneg %p345
        $region118: #{aelif_run.1} parent=99 // pred_check_branch
          %2007 = sbr.rel (%p2005) target = $region120
        $region119: #{aelif_run.1} parent=99 // pred_region
          %s2008 = sand.u32 %s48, 1
          %s2009 = scalar_lea.sflag [#allocation19], %s2008
          %s2010 = sand.u32 %s330, 1
          %s2011 = smul.addr %s2010, 16
          %s2012 = scalar_lea.vmem [#allocation20], %s2011
          %2013 = dma.done %s2009, 256
        $region120: #{aelif_run.1} parent=99 // pred_fallthru
          _
        // Predicated region
        $region121: #{aelif_run.1} parent=99 // pred_check
          %p2014 = pneg %p373
        $region122: #{aelif_run.1} parent=99 // pred_check_branch
          %2016 = sbr.rel (%p2014) target = $region124
        $region123: #{aelif_run.1} parent=99 // pred_region
          %s2017 = sand.u32 %s358, 1
          %s2018 = scalar_lea.sflag [#allocation22], %s2017
          %s2019 = sand.u32 %s358, 1
          %s2020 = smul.addr %s2019, 128
          %s2021 = scalar_lea.vmem [#allocation21], %s2020
          %2022 = dma.done %s2018, 2048
        $region124: #{aelif_run.1} parent=99 // pred_fallthru
          _
      $region100: #{aelif_run.1} parent=5 // pred_fallthru
        _
    $region6: #{aelif_run.1} parent=1 // loop_footer
      %s46 = sadd.s32 1, %s42
    $region7: #{aelif_run.1} parent=1 // loop_footer_branch
      %41 = sbr.rel target = $region3
    $region8: #{aelif_run.1} parent=1 // loop_exit
      _
    %2023 = vsyncpa [#allocation4], 1
    %s2024 = scalar_lea.sflag [#allocation4], 1
    %2025 = vsyncpa %s2024, 1
    %2026 = vsyncpa [#allocation7], 1
    %s2027 = scalar_lea.sflag [#allocation7], 1
    %2028 = vsyncpa %s2027, 1
    %2029 = vsyncpa [#allocation10], 1
    %s2030 = scalar_lea.sflag [#allocation10], 1
    %2031 = vsyncpa %s2030, 1
    %2032 = vsyncpa [#allocation13], 1
    %s2033 = scalar_lea.sflag [#allocation13], 1
    %2034 = vsyncpa %s2033, 1
    %2035 = vsyncpa [#allocation5], 1
    %s2036 = scalar_lea.sflag [#allocation5], 1
    %2037 = vsyncpa %s2036, 1
    %2038 = vsyncpa [#allocation16], 1
    %s2039 = scalar_lea.sflag [#allocation16], 1
    %2040 = vsyncpa %s2039, 1
    %2041 = vsyncpa [#allocation19], 1
    %s2042 = scalar_lea.sflag [#allocation19], 1
    %2043 = vsyncpa %s2042, 1
    %2044 = vsyncpa [#allocation22], 1
    %s2045 = scalar_lea.sflag [#allocation22], 1
    %2046 = vsyncpa %s2045, 1

</llo_original>
